<compile_context>
chip_gen: v6e
topology: v6e:2x2x1
jax: 0.10.0
libtpu: 0.0.40
codegen_flags: <defaults>
</compile_context>

<pallas_src>
import functools

import jax
import jax.numpy as jnp
from jax.experimental import pallas as pl
from jax.experimental.pallas import tpu as pltpu


# ----------------------------------------------------------------------------
# Fused kernel
# ----------------------------------------------------------------------------
def _eigen_block_kernel(
    z_ref, l_ref,                        # SMEM: (bs, nb), (1, nb)
    u2d_ref, urow_ref, murow_ref,        # (nb, dim), (nb, H, Cin*W), (H, Cin*W)
    xstk_ref,                            # (bs*H, Cin*W)
    w1big_ref, b1row_ref,                # (Cin*W, Cin*W), (1, Cin*W)
    g1row_ref, be1row_ref, ones1_ref,    # (1, Cin*W) x2, (Cin*W, Cin*W)
    a2blk_ref, cb1_ref, cd2_ref,         # (3, bs*2H, bs*H), (3, Cin*W, Cout*2W) x2
    bias12_ref,                          # (1, Cout*2W)  (block1 + dconv2 biases)
    g2row_ref, be2row_ref, ones2_ref,    # (1, Cout*2W) x2, (Cout*2W, Cout*2W)
    a1blk_ref, cb2_ref, biasb2_ref,      # (3, bs*2H, bs*2H), (3, Cout*2W, Cout*2W), (1, Cout*2W)
    out_ref, ortho_ref,                  # (bs*2H, Cout*2W), (1, 1)
    h_scr):                              # VMEM scratch (bs*H, Cin*W)
  f32 = jnp.float32
  bs, nb = z_ref.shape
  h1 = urow_ref.shape[1]                 # H (square images: W == H)
  h2 = out_ref.shape[0] // bs            # 2H (== 2W)

  dot = functools.partial(jnp.dot, preferred_element_type=f32)

  # ---- ortho_reg = mean((U @ U^T - I)^2)   (MXU, contract dim 1 with dim 1) ----
  u = u2d_ref[...]
  gram = jax.lax.dot_general(u, u, (((1,), (1,)), ((), ())),
                             preferred_element_type=f32)
  eye = (jax.lax.broadcasted_iota(jnp.int32, (nb, nb), 0)
         == jax.lax.broadcasted_iota(jnp.int32, (nb, nb), 1)).astype(f32)
  diff = gram - eye
  ortho_ref[...] = jnp.sum(diff * diff, axis=(0, 1), keepdims=True) * (1.0 / (nb * nb))

  # ---- SubspaceLayer:  h = (z * L) @ U + mu, as batch-stacked rows (bs*H, Cin*W) ----
  murow = murow_ref[...]
  for b in range(bs):
    acc = murow
    for k in range(nb):
      acc = acc + (z_ref[b, k] * l_ref[0, k]) * urow_ref[k]
    h_scr[pl.ds(b * h1, h1), :] = acc
  h_stk = h_scr[...]                                           # (bs*H, Cin*W)

  # ---- y1 = x + dconv1(h)   (1x1 transposed conv == blocked channel matmul) ----
  y1 = xstk_ref[...] + dot(h_stk, w1big_ref[...]) + b1row_ref[...]

  # ---- BN1 (training-mode batch stats) + LeakyReLU(0.2) ----
  inv_n1 = 1.0 / float(bs * h1 * h1)
  ones1 = ones1_ref[...]
  s1 = jnp.sum(y1, axis=0, keepdims=True)
  q1 = jnp.sum(y1 * y1, axis=0, keepdims=True)
  mean1 = dot(s1, ones1) * inv_n1                              # per-channel, lane-broadcast
  msq1 = dot(q1, ones1) * inv_n1
  scale1 = jax.lax.rsqrt(msq1 - mean1 * mean1 + 1e-5) * g1row_ref[...]
  t1 = (y1 - mean1) * scale1 + be1row_ref[...]
  a1 = jnp.where(t1 > 0, t1, 0.2 * t1)

  # ---- x2 = block1-tconv(a1) + dconv2-tconv(h)   (stride-2: 16x16 -> 32x32) ----
  x2 = None
  for ky in range(3):
    inner = dot(a1, cb1_ref[ky]) + dot(h_stk, cd2_ref[ky])     # (bs*H, Cout*2W)
    contrib = dot(a2blk_ref[ky], inner)                        # (bs*2H, Cout*2W)
    x2 = contrib if x2 is None else x2 + contrib
  x2 = x2 + bias12_ref[...]

  # ---- BN2 + LeakyReLU(0.2) ----
  inv_n2 = 1.0 / float(bs * h2 * h2)
  ones2 = ones2_ref[...]
  s2 = jnp.sum(x2, axis=0, keepdims=True)
  q2 = jnp.sum(x2 * x2, axis=0, keepdims=True)
  mean2 = dot(s2, ones2) * inv_n2
  msq2 = dot(q2, ones2) * inv_n2
  scale2 = jax.lax.rsqrt(msq2 - mean2 * mean2 + 1e-5) * g2row_ref[...]
  t2 = (x2 - mean2) * scale2 + be2row_ref[...]
  acts = jnp.where(t2 > 0, t2, 0.2 * t2)

  # ---- block2: 3x3 stride-1 transposed conv (32x32 -> 32x32) ----
  out = None
  for ky in range(3):
    c = dot(a1blk_ref[ky], dot(acts, cb2_ref[ky]))
    out = c if out is None else out + c
  out_ref[...] = out + biasb2_ref[...]


def _full_spec(shape):
  shape = tuple(int(s) for s in shape)
  return pl.BlockSpec(shape, lambda i: (0,) * len(shape))


# ----------------------------------------------------------------------------
# Weight-side preprocessing (done once, outside the jitted forward)
# ----------------------------------------------------------------------------
def prepare_kernel_params(p, in_ch, out_ch, size, n_basis, batch):
  f32 = jnp.float32
  H = W = size
  H2 = 2 * size

  def scatter(out_sz, in_sz, stride, pad):
    # M[k][o, i] = 1  iff  o == stride * i - pad + k   (transposed-conv index relation)
    o = jnp.arange(out_sz)[:, None]
    i = jnp.arange(in_sz)[None, :]
    return jnp.stack([(o == stride * i - pad + k).astype(f32) for k in range(3)])

  a_s2 = scatter(H2, H, 2, 1)        # ConvT(k=3, s=2, p=1, op=1): 16 -> 32
  a_s1 = scatter(H2, H2, 1, 1)       # ConvT(k=3, s=1, p=1):       32 -> 32
  eye_b = jnp.eye(batch, dtype=f32)
  a2blk = jnp.stack([jnp.kron(eye_b, a_s2[k]) for k in range(3)])  # per-image block-diag
  a1blk = jnp.stack([jnp.kron(eye_b, a_s1[k]) for k in range(3)])

  def big_c(w, bmats):
    # w: (ci, co, ky, kx) ConvTranspose2d weight; bmats[kx, ox, ix] = column scatter.
    # BigC[ky][ci*inW + ix, co*outW + ox] = sum_kx w[ci, co, ky, kx] * bmats[kx, ox, ix]
    c = jnp.einsum("coyx,xpi->yciop", w.astype(f32), bmats)
    ky, ci, iw, co, ow = c.shape
    return c.reshape(ky, ci * iw, co * ow)

  def rep(v, r):
    return jnp.repeat(v.astype(f32), r)[None, :]

  return {
      "L2d": p["L"].astype(f32).reshape(1, n_basis),
      "u2d": p["U"].astype(f32),
      "urow": p["U"].reshape(n_basis, in_ch, H, W).transpose(0, 2, 1, 3)
                    .reshape(n_basis, H, in_ch * W),
      "murow": p["mu"].reshape(in_ch, H, W).transpose(1, 0, 2).reshape(H, in_ch * W),
      "w1big": jnp.kron(p["w_dconv1"][:, :, 0, 0].astype(f32), jnp.eye(W, dtype=f32)),
      "b1row": rep(p["b_dconv1"], W),
      "g1row": rep(p["bn1_gamma"], W),
      "be1row": rep(p["bn1_beta"], W),
      "ones1": jnp.kron(jnp.eye(in_ch, dtype=f32), jnp.ones((W, W), f32)),
      "a2blk": a2blk,
      "cbig_b1": big_c(p["w_block1"], a_s2),
      "cbig_d2": big_c(p["w_dconv2"], a_s2),
      "bias12": rep(p["b_block1"], H2) + rep(p["b_dconv2"], H2),
      "g2row": rep(p["bn2_gamma"], H2),
      "be2row": rep(p["bn2_beta"], H2),
      "ones2": jnp.kron(jnp.eye(out_ch, dtype=f32), jnp.ones((H2, H2), f32)),
      "a1blk": a1blk,
      "cbig_b2": big_c(p["w_block2"], a_s1),
      "bias_b2": rep(p["b_block2"], H2),
  }


# ----------------------------------------------------------------------------
# Forward: one pallas_call + pure layout plumbing on x / output
# ----------------------------------------------------------------------------
@jax.jit
def eigen_block_forward(x_nchw, z, kp):
  bs, cin, H, W = x_nchw.shape
  nb, dim = kp["u2d"].shape
  c1w = cin * W
  h2 = 2 * H
  c2w = kp["bias_b2"].shape[1]
  cout = c2w // (2 * W)

  # (bs, C, H, W) -> batch-stacked "spatial rows x channel-stacked columns"
  xstk = jnp.transpose(x_nchw, (0, 2, 1, 3)).reshape(bs * H, c1w)

  out_stk, ortho = pl.pallas_call(
      _eigen_block_kernel,
      out_shape=(jax.ShapeDtypeStruct((bs * h2, c2w), jnp.float32),
                 jax.ShapeDtypeStruct((1, 1), jnp.float32)),
      grid=(1,),
      in_specs=[
          pl.BlockSpec(memory_space=pltpu.MemorySpace.SMEM),   # z
          pl.BlockSpec(memory_space=pltpu.MemorySpace.SMEM),   # L (1, nb)
          _full_spec((nb, dim)),                               # u2d
          _full_spec((nb, H, c1w)),                            # urow
          _full_spec((H, c1w)),                                # murow
          _full_spec((bs * H, c1w)),                           # xstk
          _full_spec((c1w, c1w)),                              # w1big
          _full_spec((1, c1w)),                                # b1row
          _full_spec((1, c1w)),                                # g1row
          _full_spec((1, c1w)),                                # be1row
          _full_spec((c1w, c1w)),                              # ones1
          _full_spec((3, bs * h2, bs * H)),                    # a2blk
          _full_spec((3, c1w, c2w)),                           # cbig_b1
          _full_spec((3, c1w, c2w)),                           # cbig_d2
          _full_spec((1, c2w)),                                # bias12
          _full_spec((1, c2w)),                                # g2row
          _full_spec((1, c2w)),                                # be2row
          _full_spec((c2w, c2w)),                              # ones2
          _full_spec((3, bs * h2, bs * h2)),                   # a1blk
          _full_spec((3, c2w, c2w)),                           # cbig_b2
          _full_spec((1, c2w)),                                # bias_b2
      ],
      out_specs=(_full_spec((bs * h2, c2w)), _full_spec((1, 1))),
      scratch_shapes=[pltpu.VMEM((bs * H, c1w), jnp.float32)],
      compiler_params=pltpu.CompilerParams(dimension_semantics=("arbitrary",)),
  )(z, kp["L2d"], kp["u2d"], kp["urow"], kp["murow"], xstk,
    kp["w1big"], kp["b1row"], kp["g1row"], kp["be1row"], kp["ones1"],
    kp["a2blk"], kp["cbig_b1"], kp["cbig_d2"], kp["bias12"],
    kp["g2row"], kp["be2row"], kp["ones2"],
    kp["a1blk"], kp["cbig_b2"], kp["bias_b2"])

  out = jnp.transpose(out_stk.reshape(bs, h2, cout, 2 * W), (0, 2, 1, 3))
  return out, ortho[0, 0]


# ----------------------------------------------------------------------------
# Deterministic parameter construction (shapes from EigenBlock.__init__)
# ----------------------------------------------------------------------------
def make_params(key, n_basis, in_ch, out_ch, size):
  dim = in_ch * size * size
  ks = jax.random.split(key, 10)
  a = jax.random.normal(ks[0], (dim, n_basis), jnp.float32)
  q, _ = jnp.linalg.qr(a)                      # orthonormal columns -> orthonormal rows of U
  return {
      "U": q.T.astype(jnp.float32),            # (n_basis, dim)
      "L": jnp.ones((n_basis,), jnp.float32),
      "mu": jnp.zeros((dim,), jnp.float32),
      "w_dconv1": 0.1 * jax.random.normal(ks[1], (in_ch, in_ch, 1, 1), jnp.float32),
      "b_dconv1": 0.1 * jax.random.normal(ks[2], (in_ch,), jnp.float32),
      "w_dconv2": 0.1 * jax.random.normal(ks[3], (in_ch, out_ch, 3, 3), jnp.float32),
      "b_dconv2": 0.1 * jax.random.normal(ks[4], (out_ch,), jnp.float32),
      "w_block1": 0.1 * jax.random.normal(ks[5], (in_ch, out_ch, 3, 3), jnp.float32),
      "b_block1": 0.1 * jax.random.normal(ks[6], (out_ch,), jnp.float32),
      "w_block2": 0.1 * jax.random.normal(ks[7], (out_ch, out_ch, 3, 3), jnp.float32),
      "b_block2": 0.1 * jax.random.normal(ks[8], (out_ch,), jnp.float32),
      "bn1_gamma": jnp.ones((in_ch,), jnp.float32),
      "bn1_beta": jnp.zeros((in_ch,), jnp.float32),
      "bn2_gamma": jnp.ones((out_ch,), jnp.float32),
      "bn2_beta": jnp.zeros((out_ch,), jnp.float32),
  }


if __name__ == "__main__":
  bs, n_basis, in_ch, out_ch, size = 2, 8, 4, 8, 16

  key = jax.random.PRNGKey(0)
  k_p, k_x, k_z = jax.random.split(key, 3)
  raw_params = make_params(k_p, n_basis, in_ch, out_ch, size)
  kparams = prepare_kernel_params(raw_params, in_ch, out_ch, size, n_basis, bs)

  x = jax.random.normal(k_x, (bs, in_ch, size, size), jnp.float32)   # NCHW, like PyTorch
  z = jax.random.normal(k_z, (bs, n_basis), jnp.float32)

  out, ortho_reg = eigen_block_forward(x, z, kparams)
  out = jax.block_until_ready(out)
  ortho_reg = jax.block_until_ready(ortho_reg)

  assert out.shape == (bs, out_ch, 2 * size, 2 * size), out.shape
  assert ortho_reg.shape == (), ortho_reg.shape
  print("KERNEL_OK")
</pallas_src>

<mosaic_0001>
module attributes {stable_mosaic.version = 11 : i64} {
  func.func @_eigen_block_kernel(%arg0: i32, %arg1: memref<2x8xf32, #tpu.memory_space<smem>>, %arg2: memref<1x8xf32, #tpu.memory_space<smem>>, %arg3: memref<8x1024xf32, #tpu.memory_space<vmem>>, %arg4: memref<8x16x64xf32, #tpu.memory_space<vmem>>, %arg5: memref<16x64xf32, #tpu.memory_space<vmem>>, %arg6: memref<32x64xf32, #tpu.memory_space<vmem>>, %arg7: memref<64x64xf32, #tpu.memory_space<vmem>>, %arg8: memref<1x64xf32, #tpu.memory_space<vmem>>, %arg9: memref<1x64xf32, #tpu.memory_space<vmem>>, %arg10: memref<1x64xf32, #tpu.memory_space<vmem>>, %arg11: memref<64x64xf32, #tpu.memory_space<vmem>>, %arg12: memref<3x64x32xf32, #tpu.memory_space<vmem>>, %arg13: memref<3x64x256xf32, #tpu.memory_space<vmem>>, %arg14: memref<3x64x256xf32, #tpu.memory_space<vmem>>, %arg15: memref<1x256xf32, #tpu.memory_space<vmem>>, %arg16: memref<1x256xf32, #tpu.memory_space<vmem>>, %arg17: memref<1x256xf32, #tpu.memory_space<vmem>>, %arg18: memref<256x256xf32, #tpu.memory_space<vmem>>, %arg19: memref<3x64x64xf32, #tpu.memory_space<vmem>>, %arg20: memref<3x256x256xf32, #tpu.memory_space<vmem>>, %arg21: memref<1x256xf32, #tpu.memory_space<vmem>>, %arg22: memref<64x256xf32, #tpu.memory_space<vmem>>, %arg23: memref<1x1xf32, #tpu.memory_space<vmem>>, %arg24: memref<32x64xf32, #tpu.memory_space<vmem>>) attributes {dimension_semantics = [#tpu.dimension_semantics<arbitrary>], iteration_bounds = array<i64: 1>, scalar_prefetch = 0 : i64, scratch_operands = 1 : i64, tpu.core_type = #tpu.core_type<tc>, window_params = [{transform_indices = @transform_0, window_bounds = array<i64: 2, 8>}, {transform_indices = @transform_1, window_bounds = array<i64: 1, 8>}, {pipeline_mode = #tpu.pipeline_mode<synchronous>, transform_indices = @transform_2, window_bounds = array<i64: 8, 1024>}, {pipeline_mode = #tpu.pipeline_mode<synchronous>, transform_indices = @transform_3, window_bounds = array<i64: 8, 16, 64>}, {pipeline_mode = #tpu.pipeline_mode<synchronous>, transform_indices = @transform_4, window_bounds = array<i64: 16, 64>}, {pipeline_mode = #tpu.pipeline_mode<synchronous>, transform_indices = @transform_5, window_bounds = array<i64: 32, 64>}, {pipeline_mode = #tpu.pipeline_mode<synchronous>, transform_indices = @transform_6, window_bounds = array<i64: 64, 64>}, {pipeline_mode = #tpu.pipeline_mode<synchronous>, transform_indices = @transform_7, window_bounds = array<i64: 1, 64>}, {pipeline_mode = #tpu.pipeline_mode<synchronous>, transform_indices = @transform_8, window_bounds = array<i64: 1, 64>}, {pipeline_mode = #tpu.pipeline_mode<synchronous>, transform_indices = @transform_9, window_bounds = array<i64: 1, 64>}, {pipeline_mode = #tpu.pipeline_mode<synchronous>, transform_indices = @transform_10, window_bounds = array<i64: 64, 64>}, {pipeline_mode = #tpu.pipeline_mode<synchronous>, transform_indices = @transform_11, window_bounds = array<i64: 3, 64, 32>}, {pipeline_mode = #tpu.pipeline_mode<synchronous>, transform_indices = @transform_12, window_bounds = array<i64: 3, 64, 256>}, {pipeline_mode = #tpu.pipeline_mode<synchronous>, transform_indices = @transform_13, window_bounds = array<i64: 3, 64, 256>}, {pipeline_mode = #tpu.pipeline_mode<synchronous>, transform_indices = @transform_14, window_bounds = array<i64: 1, 256>}, {pipeline_mode = #tpu.pipeline_mode<synchronous>, transform_indices = @transform_15, window_bounds = array<i64: 1, 256>}, {pipeline_mode = #tpu.pipeline_mode<synchronous>, transform_indices = @transform_16, window_bounds = array<i64: 1, 256>}, {pipeline_mode = #tpu.pipeline_mode<synchronous>, transform_indices = @transform_17, window_bounds = array<i64: 256, 256>}, {pipeline_mode = #tpu.pipeline_mode<synchronous>, transform_indices = @transform_18, window_bounds = array<i64: 3, 64, 64>}, {pipeline_mode = #tpu.pipeline_mode<synchronous>, transform_indices = @transform_19, window_bounds = array<i64: 3, 256, 256>}, {pipeline_mode = #tpu.pipeline_mode<synchronous>, transform_indices = @transform_20, window_bounds = array<i64: 1, 256>}, {pipeline_mode = #tpu.pipeline_mode<synchronous>, transform_indices = @transform_21, window_bounds = array<i64: 64, 256>}, {pipeline_mode = #tpu.pipeline_mode<synchronous>, transform_indices = @transform_22, window_bounds = array<i64: 1, 1>}]} {
    %c0 = arith.constant 0 : index
    %c0_0 = arith.constant 0 : index
    %0 = vector.load %arg3[%c0, %c0_0] : memref<8x1024xf32, #tpu.memory_space<vmem>>, vector<8x1024xf32>
    %cst = arith.constant dense<0.000000e+00> : vector<8x8xf32>
    %1 = tpu.matmul %0, %0, %cst {dimension_numbers = #tpu.dot_dimension_numbers<[1], [1], [0], [0], [0, 0, 1, 0], [], []>} : vector<8x1024xf32>, vector<8x1024xf32>, vector<8x8xf32> -> vector<8x8xf32>
    %2 = tpu.iota {dimensions = array<i32: 0>} : vector<8x8xi32>
    %3 = tpu.iota {dimensions = array<i32: 1>} : vector<8x8xi32>
    %4 = arith.cmpi eq, %2, %3 : vector<8x8xi32>
    %5 = arith.extui %4 : vector<8x8xi1> to vector<8x8xi32>
    %6 = arith.sitofp %5 : vector<8x8xi32> to vector<8x8xf32>
    %7 = arith.subf %1, %6 : vector<8x8xf32>
    %8 = arith.mulf %7, %7 : vector<8x8xf32>
    %9 = vector.shape_cast %8 : vector<8x8xf32> to vector<1x8x8xf32>
    %cst_1 = arith.constant dense<0.000000e+00> : vector<1xf32>
    %10 = vector.multi_reduction <add>, %9, %cst_1 [1, 2] : vector<1x8x8xf32> to vector<1xf32>
    %11 = vector.shape_cast %10 : vector<1xf32> to vector<1x1x1xf32>
    %12 = vector.extract %11[0, 0, 0] : f32 from vector<1x1x1xf32>
    %13 = vector.broadcast %12 : f32 to vector<1x1xf32>
    %cst_2 = arith.constant 1.562500e-02 : f32
    %14 = vector.broadcast %cst_2 : f32 to vector<1x1xf32>
    %15 = arith.mulf %13, %14 : vector<1x1xf32>
    %c0_3 = arith.constant 0 : index
    %c0_4 = arith.constant 0 : index
    %16 = vector.load %arg23[%c0_3, %c0_4] : memref<1x1xf32, #tpu.memory_space<vmem>>, vector<1x1xf32>
    tpu.vector_store %arg23[%c0_3, %c0_4], %15 {strides = array<i32>} : memref<1x1xf32, #tpu.memory_space<vmem>>, vector<1x1xf32>,
    %c0_5 = arith.constant 0 : index
    %c0_6 = arith.constant 0 : index
    %17 = vector.load %arg5[%c0_5, %c0_6] : memref<16x64xf32, #tpu.memory_space<vmem>>, vector<16x64xf32>
    %c0_7 = arith.constant 0 : index
    %c0_8 = arith.constant 0 : index
    %18 = memref.load %arg1[%c0_7, %c0_8] : memref<2x8xf32, #tpu.memory_space<smem>>
    %c0_9 = arith.constant 0 : index
    %c0_10 = arith.constant 0 : index
    %19 = memref.load %arg2[%c0_9, %c0_10] : memref<1x8xf32, #tpu.memory_space<smem>>
    %20 = arith.mulf %18, %19 : f32
    %c0_11 = arith.constant 0 : index
    %c0_12 = arith.constant 0 : index
    %c0_13 = arith.constant 0 : index
    %21 = vector.load %arg4[%c0_11, %c0_12, %c0_13] : memref<8x16x64xf32, #tpu.memory_space<vmem>>, vector<1x16x64xf32>
    %22 = vector.shape_cast %21 : vector<1x16x64xf32> to vector<16x64xf32>
    %23 = vector.broadcast %20 : f32 to vector<16x64xf32>
    %24 = arith.mulf %23, %22 : vector<16x64xf32>
    %25 = arith.addf %17, %24 : vector<16x64xf32>
    %c0_14 = arith.constant 0 : index
    %c1 = arith.constant 1 : index
    %26 = memref.load %arg1[%c0_14, %c1] : memref<2x8xf32, #tpu.memory_space<smem>>
    %c0_15 = arith.constant 0 : index
    %c1_16 = arith.constant 1 : index
    %27 = memref.load %arg2[%c0_15, %c1_16] : memref<1x8xf32, #tpu.memory_space<smem>>
    %28 = arith.mulf %26, %27 : f32
    %c1_17 = arith.constant 1 : index
    %c0_18 = arith.constant 0 : index
    %c0_19 = arith.constant 0 : index
    %29 = vector.load %arg4[%c1_17, %c0_18, %c0_19] : memref<8x16x64xf32, #tpu.memory_space<vmem>>, vector<1x16x64xf32>
    %30 = vector.shape_cast %29 : vector<1x16x64xf32> to vector<16x64xf32>
    %31 = vector.broadcast %28 : f32 to vector<16x64xf32>
    %32 = arith.mulf %31, %30 : vector<16x64xf32>
    %33 = arith.addf %25, %32 : vector<16x64xf32>
    %c0_20 = arith.constant 0 : index
    %c2 = arith.constant 2 : index
    %34 = memref.load %arg1[%c0_20, %c2] : memref<2x8xf32, #tpu.memory_space<smem>>
    %c0_21 = arith.constant 0 : index
    %c2_22 = arith.constant 2 : index
    %35 = memref.load %arg2[%c0_21, %c2_22] : memref<1x8xf32, #tpu.memory_space<smem>>
    %36 = arith.mulf %34, %35 : f32
    %c2_23 = arith.constant 2 : index
    %c0_24 = arith.constant 0 : index
    %c0_25 = arith.constant 0 : index
    %37 = vector.load %arg4[%c2_23, %c0_24, %c0_25] : memref<8x16x64xf32, #tpu.memory_space<vmem>>, vector<1x16x64xf32>
    %38 = vector.shape_cast %37 : vector<1x16x64xf32> to vector<16x64xf32>
    %39 = vector.broadcast %36 : f32 to vector<16x64xf32>
    %40 = arith.mulf %39, %38 : vector<16x64xf32>
    %41 = arith.addf %33, %40 : vector<16x64xf32>
    %c0_26 = arith.constant 0 : index
    %c3 = arith.constant 3 : index
    %42 = memref.load %arg1[%c0_26, %c3] : memref<2x8xf32, #tpu.memory_space<smem>>
    %c0_27 = arith.constant 0 : index
    %c3_28 = arith.constant 3 : index
    %43 = memref.load %arg2[%c0_27, %c3_28] : memref<1x8xf32, #tpu.memory_space<smem>>
    %44 = arith.mulf %42, %43 : f32
    %c3_29 = arith.constant 3 : index
    %c0_30 = arith.constant 0 : index
    %c0_31 = arith.constant 0 : index
    %45 = vector.load %arg4[%c3_29, %c0_30, %c0_31] : memref<8x16x64xf32, #tpu.memory_space<vmem>>, vector<1x16x64xf32>
    %46 = vector.shape_cast %45 : vector<1x16x64xf32> to vector<16x64xf32>
    %47 = vector.broadcast %44 : f32 to vector<16x64xf32>
    %48 = arith.mulf %47, %46 : vector<16x64xf32>
    %49 = arith.addf %41, %48 : vector<16x64xf32>
    %c0_32 = arith.constant 0 : index
    %c4 = arith.constant 4 : index
    %50 = memref.load %arg1[%c0_32, %c4] : memref<2x8xf32, #tpu.memory_space<smem>>
    %c0_33 = arith.constant 0 : index
    %c4_34 = arith.constant 4 : index
    %51 = memref.load %arg2[%c0_33, %c4_34] : memref<1x8xf32, #tpu.memory_space<smem>>
    %52 = arith.mulf %50, %51 : f32
    %c4_35 = arith.constant 4 : index
    %c0_36 = arith.constant 0 : index
    %c0_37 = arith.constant 0 : index
    %53 = vector.load %arg4[%c4_35, %c0_36, %c0_37] : memref<8x16x64xf32, #tpu.memory_space<vmem>>, vector<1x16x64xf32>
    %54 = vector.shape_cast %53 : vector<1x16x64xf32> to vector<16x64xf32>
    %55 = vector.broadcast %52 : f32 to vector<16x64xf32>
    %56 = arith.mulf %55, %54 : vector<16x64xf32>
    %57 = arith.addf %49, %56 : vector<16x64xf32>
    %c0_38 = arith.constant 0 : index
    %c5 = arith.constant 5 : index
    %58 = memref.load %arg1[%c0_38, %c5] : memref<2x8xf32, #tpu.memory_space<smem>>
    %c0_39 = arith.constant 0 : index
    %c5_40 = arith.constant 5 : index
    %59 = memref.load %arg2[%c0_39, %c5_40] : memref<1x8xf32, #tpu.memory_space<smem>>
    %60 = arith.mulf %58, %59 : f32
    %c5_41 = arith.constant 5 : index
    %c0_42 = arith.constant 0 : index
    %c0_43 = arith.constant 0 : index
    %61 = vector.load %arg4[%c5_41, %c0_42, %c0_43] : memref<8x16x64xf32, #tpu.memory_space<vmem>>, vector<1x16x64xf32>
    %62 = vector.shape_cast %61 : vector<1x16x64xf32> to vector<16x64xf32>
    %63 = vector.broadcast %60 : f32 to vector<16x64xf32>
    %64 = arith.mulf %63, %62 : vector<16x64xf32>
    %65 = arith.addf %57, %64 : vector<16x64xf32>
    %c0_44 = arith.constant 0 : index
    %c6 = arith.constant 6 : index
    %66 = memref.load %arg1[%c0_44, %c6] : memref<2x8xf32, #tpu.memory_space<smem>>
    %c0_45 = arith.constant 0 : index
    %c6_46 = arith.constant 6 : index
    %67 = memref.load %arg2[%c0_45, %c6_46] : memref<1x8xf32, #tpu.memory_space<smem>>
    %68 = arith.mulf %66, %67 : f32
    %c6_47 = arith.constant 6 : index
    %c0_48 = arith.constant 0 : index
    %c0_49 = arith.constant 0 : index
    %69 = vector.load %arg4[%c6_47, %c0_48, %c0_49] : memref<8x16x64xf32, #tpu.memory_space<vmem>>, vector<1x16x64xf32>
    %70 = vector.shape_cast %69 : vector<1x16x64xf32> to vector<16x64xf32>
    %71 = vector.broadcast %68 : f32 to vector<16x64xf32>
    %72 = arith.mulf %71, %70 : vector<16x64xf32>
    %73 = arith.addf %65, %72 : vector<16x64xf32>
    %c0_50 = arith.constant 0 : index
    %c7 = arith.constant 7 : index
    %74 = memref.load %arg1[%c0_50, %c7] : memref<2x8xf32, #tpu.memory_space<smem>>
    %c0_51 = arith.constant 0 : index
    %c7_52 = arith.constant 7 : index
    %75 = memref.load %arg2[%c0_51, %c7_52] : memref<1x8xf32, #tpu.memory_space<smem>>
    %76 = arith.mulf %74, %75 : f32
    %c7_53 = arith.constant 7 : index
    %c0_54 = arith.constant 0 : index
    %c0_55 = arith.constant 0 : index
    %77 = vector.load %arg4[%c7_53, %c0_54, %c0_55] : memref<8x16x64xf32, #tpu.memory_space<vmem>>, vector<1x16x64xf32>
    %78 = vector.shape_cast %77 : vector<1x16x64xf32> to vector<16x64xf32>
    %79 = vector.broadcast %76 : f32 to vector<16x64xf32>
    %80 = arith.mulf %79, %78 : vector<16x64xf32>
    %81 = arith.addf %73, %80 : vector<16x64xf32>
    %c0_56 = arith.constant 0 : index
    %c0_57 = arith.constant 0 : index
    %82 = vector.load %arg24[%c0_56, %c0_57] : memref<32x64xf32, #tpu.memory_space<vmem>>, vector<16x64xf32>
    tpu.vector_store %arg24[%c0_56, %c0_57], %81 {strides = array<i32>} : memref<32x64xf32, #tpu.memory_space<vmem>>, vector<16x64xf32>,
    %c1_58 = arith.constant 1 : index
    %c0_59 = arith.constant 0 : index
    %83 = memref.load %arg1[%c1_58, %c0_59] : memref<2x8xf32, #tpu.memory_space<smem>>
    %c0_60 = arith.constant 0 : index
    %c0_61 = arith.constant 0 : index
    %84 = memref.load %arg2[%c0_60, %c0_61] : memref<1x8xf32, #tpu.memory_space<smem>>
    %85 = arith.mulf %83, %84 : f32
    %c0_62 = arith.constant 0 : index
    %c0_63 = arith.constant 0 : index
    %c0_64 = arith.constant 0 : index
    %86 = vector.load %arg4[%c0_62, %c0_63, %c0_64] : memref<8x16x64xf32, #tpu.memory_space<vmem>>, vector<1x16x64xf32>
    %87 = vector.shape_cast %86 : vector<1x16x64xf32> to vector<16x64xf32>
    %88 = vector.broadcast %85 : f32 to vector<16x64xf32>
    %89 = arith.mulf %88, %87 : vector<16x64xf32>
    %90 = arith.addf %17, %89 : vector<16x64xf32>
    %c1_65 = arith.constant 1 : index
    %c1_66 = arith.constant 1 : index
    %91 = memref.load %arg1[%c1_65, %c1_66] : memref<2x8xf32, #tpu.memory_space<smem>>
    %c0_67 = arith.constant 0 : index
    %c1_68 = arith.constant 1 : index
    %92 = memref.load %arg2[%c0_67, %c1_68] : memref<1x8xf32, #tpu.memory_space<smem>>
    %93 = arith.mulf %91, %92 : f32
    %c1_69 = arith.constant 1 : index
    %c0_70 = arith.constant 0 : index
    %c0_71 = arith.constant 0 : index
    %94 = vector.load %arg4[%c1_69, %c0_70, %c0_71] : memref<8x16x64xf32, #tpu.memory_space<vmem>>, vector<1x16x64xf32>
    %95 = vector.shape_cast %94 : vector<1x16x64xf32> to vector<16x64xf32>
    %96 = vector.broadcast %93 : f32 to vector<16x64xf32>
    %97 = arith.mulf %96, %95 : vector<16x64xf32>
    %98 = arith.addf %90, %97 : vector<16x64xf32>
    %c1_72 = arith.constant 1 : index
    %c2_73 = arith.constant 2 : index
    %99 = memref.load %arg1[%c1_72, %c2_73] : memref<2x8xf32, #tpu.memory_space<smem>>
    %c0_74 = arith.constant 0 : index
    %c2_75 = arith.constant 2 : index
    %100 = memref.load %arg2[%c0_74, %c2_75] : memref<1x8xf32, #tpu.memory_space<smem>>
    %101 = arith.mulf %99, %100 : f32
    %c2_76 = arith.constant 2 : index
    %c0_77 = arith.constant 0 : index
    %c0_78 = arith.constant 0 : index
    %102 = vector.load %arg4[%c2_76, %c0_77, %c0_78] : memref<8x16x64xf32, #tpu.memory_space<vmem>>, vector<1x16x64xf32>
    %103 = vector.shape_cast %102 : vector<1x16x64xf32> to vector<16x64xf32>
    %104 = vector.broadcast %101 : f32 to vector<16x64xf32>
    %105 = arith.mulf %104, %103 : vector<16x64xf32>
    %106 = arith.addf %98, %105 : vector<16x64xf32>
    %c1_79 = arith.constant 1 : index
    %c3_80 = arith.constant 3 : index
    %107 = memref.load %arg1[%c1_79, %c3_80] : memref<2x8xf32, #tpu.memory_space<smem>>
    %c0_81 = arith.constant 0 : index
    %c3_82 = arith.constant 3 : index
    %108 = memref.load %arg2[%c0_81, %c3_82] : memref<1x8xf32, #tpu.memory_space<smem>>
    %109 = arith.mulf %107, %108 : f32
    %c3_83 = arith.constant 3 : index
    %c0_84 = arith.constant 0 : index
    %c0_85 = arith.constant 0 : index
    %110 = vector.load %arg4[%c3_83, %c0_84, %c0_85] : memref<8x16x64xf32, #tpu.memory_space<vmem>>, vector<1x16x64xf32>
    %111 = vector.shape_cast %110 : vector<1x16x64xf32> to vector<16x64xf32>
    %112 = vector.broadcast %109 : f32 to vector<16x64xf32>
    %113 = arith.mulf %112, %111 : vector<16x64xf32>
    %114 = arith.addf %106, %113 : vector<16x64xf32>
    %c1_86 = arith.constant 1 : index
    %c4_87 = arith.constant 4 : index
    %115 = memref.load %arg1[%c1_86, %c4_87] : memref<2x8xf32, #tpu.memory_space<smem>>
    %c0_88 = arith.constant 0 : index
    %c4_89 = arith.constant 4 : index
    %116 = memref.load %arg2[%c0_88, %c4_89] : memref<1x8xf32, #tpu.memory_space<smem>>
    %117 = arith.mulf %115, %116 : f32
    %c4_90 = arith.constant 4 : index
    %c0_91 = arith.constant 0 : index
    %c0_92 = arith.constant 0 : index
    %118 = vector.load %arg4[%c4_90, %c0_91, %c0_92] : memref<8x16x64xf32, #tpu.memory_space<vmem>>, vector<1x16x64xf32>
    %119 = vector.shape_cast %118 : vector<1x16x64xf32> to vector<16x64xf32>
    %120 = vector.broadcast %117 : f32 to vector<16x64xf32>
    %121 = arith.mulf %120, %119 : vector<16x64xf32>
    %122 = arith.addf %114, %121 : vector<16x64xf32>
    %c1_93 = arith.constant 1 : index
    %c5_94 = arith.constant 5 : index
    %123 = memref.load %arg1[%c1_93, %c5_94] : memref<2x8xf32, #tpu.memory_space<smem>>
    %c0_95 = arith.constant 0 : index
    %c5_96 = arith.constant 5 : index
    %124 = memref.load %arg2[%c0_95, %c5_96] : memref<1x8xf32, #tpu.memory_space<smem>>
    %125 = arith.mulf %123, %124 : f32
    %c5_97 = arith.constant 5 : index
    %c0_98 = arith.constant 0 : index
    %c0_99 = arith.constant 0 : index
    %126 = vector.load %arg4[%c5_97, %c0_98, %c0_99] : memref<8x16x64xf32, #tpu.memory_space<vmem>>, vector<1x16x64xf32>
    %127 = vector.shape_cast %126 : vector<1x16x64xf32> to vector<16x64xf32>
    %128 = vector.broadcast %125 : f32 to vector<16x64xf32>
    %129 = arith.mulf %128, %127 : vector<16x64xf32>
    %130 = arith.addf %122, %129 : vector<16x64xf32>
    %c1_100 = arith.constant 1 : index
    %c6_101 = arith.constant 6 : index
    %131 = memref.load %arg1[%c1_100, %c6_101] : memref<2x8xf32, #tpu.memory_space<smem>>
    %c0_102 = arith.constant 0 : index
    %c6_103 = arith.constant 6 : index
    %132 = memref.load %arg2[%c0_102, %c6_103] : memref<1x8xf32, #tpu.memory_space<smem>>
    %133 = arith.mulf %131, %132 : f32
    %c6_104 = arith.constant 6 : index
    %c0_105 = arith.constant 0 : index
    %c0_106 = arith.constant 0 : index
    %134 = vector.load %arg4[%c6_104, %c0_105, %c0_106] : memref<8x16x64xf32, #tpu.memory_space<vmem>>, vector<1x16x64xf32>
    %135 = vector.shape_cast %134 : vector<1x16x64xf32> to vector<16x64xf32>
    %136 = vector.broadcast %133 : f32 to vector<16x64xf32>
    %137 = arith.mulf %136, %135 : vector<16x64xf32>
    %138 = arith.addf %130, %137 : vector<16x64xf32>
    %c1_107 = arith.constant 1 : index
    %c7_108 = arith.constant 7 : index
    %139 = memref.load %arg1[%c1_107, %c7_108] : memref<2x8xf32, #tpu.memory_space<smem>>
    %c0_109 = arith.constant 0 : index
    %c7_110 = arith.constant 7 : index
    %140 = memref.load %arg2[%c0_109, %c7_110] : memref<1x8xf32, #tpu.memory_space<smem>>
    %141 = arith.mulf %139, %140 : f32
    %c7_111 = arith.constant 7 : index
    %c0_112 = arith.constant 0 : index
    %c0_113 = arith.constant 0 : index
    %142 = vector.load %arg4[%c7_111, %c0_112, %c0_113] : memref<8x16x64xf32, #tpu.memory_space<vmem>>, vector<1x16x64xf32>
    %143 = vector.shape_cast %142 : vector<1x16x64xf32> to vector<16x64xf32>
    %144 = vector.broadcast %141 : f32 to vector<16x64xf32>
    %145 = arith.mulf %144, %143 : vector<16x64xf32>
    %146 = arith.addf %138, %145 : vector<16x64xf32>
    %c16 = arith.constant 16 : index
    %c0_114 = arith.constant 0 : index
    %147 = vector.load %arg24[%c16, %c0_114] : memref<32x64xf32, #tpu.memory_space<vmem>>, vector<16x64xf32>
    tpu.vector_store %arg24[%c16, %c0_114], %146 {strides = array<i32>} : memref<32x64xf32, #tpu.memory_space<vmem>>, vector<16x64xf32>,
    %c0_115 = arith.constant 0 : index
    %c0_116 = arith.constant 0 : index
    %148 = vector.load %arg24[%c0_115, %c0_116] : memref<32x64xf32, #tpu.memory_space<vmem>>, vector<32x64xf32>
    %c0_117 = arith.constant 0 : index
    %c0_118 = arith.constant 0 : index
    %149 = vector.load %arg6[%c0_117, %c0_118] : memref<32x64xf32, #tpu.memory_space<vmem>>, vector<32x64xf32>
    %c0_119 = arith.constant 0 : index
    %c0_120 = arith.constant 0 : index
    %150 = vector.load %arg7[%c0_119, %c0_120] : memref<64x64xf32, #tpu.memory_space<vmem>>, vector<64x64xf32>
    %cst_121 = arith.constant dense<0.000000e+00> : vector<32x64xf32>
    %151 = tpu.matmul %148, %150, %cst_121 {dimension_numbers = #tpu.dot_dimension_numbers<[1], [0], [0], [1], [0, 0, 1, 1], [], []>} : vector<32x64xf32>, vector<64x64xf32>, vector<32x64xf32> -> vector<32x64xf32>
    %152 = arith.addf %149, %151 : vector<32x64xf32>
    %c0_122 = arith.constant 0 : index
    %c0_123 = arith.constant 0 : index
    %153 = vector.load %arg8[%c0_122, %c0_123] : memref<1x64xf32, #tpu.memory_space<vmem>>, vector<1x64xf32>
    %154 = vector.broadcast %153 : vector<1x64xf32> to vector<32x64xf32>
    %155 = arith.addf %152, %154 : vector<32x64xf32>
    %c0_124 = arith.constant 0 : index
    %c0_125 = arith.constant 0 : index
    %156 = vector.load %arg11[%c0_124, %c0_125] : memref<64x64xf32, #tpu.memory_space<vmem>>, vector<64x64xf32>
    %cst_126 = arith.constant dense<0.000000e+00> : vector<64xf32>
    %157 = vector.multi_reduction <add>, %155, %cst_126 [0] : vector<32x64xf32> to vector<64xf32>
    %158 = vector.shape_cast %157 : vector<64xf32> to vector<1x64xf32>
    %159 = arith.mulf %155, %155 : vector<32x64xf32>
    %cst_127 = arith.constant dense<0.000000e+00> : vector<64xf32>
    %160 = vector.multi_reduction <add>, %159, %cst_127 [0] : vector<32x64xf32> to vector<64xf32>
    %161 = vector.shape_cast %160 : vector<64xf32> to vector<1x64xf32>
    %cst_128 = arith.constant dense<0.000000e+00> : vector<1x64xf32>
    %162 = tpu.matmul %158, %156, %cst_128 {dimension_numbers = #tpu.dot_dimension_numbers<[1], [0], [0], [1], [0, 0, 1, 1], [], []>} : vector<1x64xf32>, vector<64x64xf32>, vector<1x64xf32> -> vector<1x64xf32>
    %cst_129 = arith.constant 0.001953125 : f32
    %163 = vector.broadcast %cst_129 : f32 to vector<1x64xf32>
    %164 = arith.mulf %162, %163 : vector<1x64xf32>
    %cst_130 = arith.constant dense<0.000000e+00> : vector<1x64xf32>
    %165 = tpu.matmul %161, %156, %cst_130 {dimension_numbers = #tpu.dot_dimension_numbers<[1], [0], [0], [1], [0, 0, 1, 1], [], []>} : vector<1x64xf32>, vector<64x64xf32>, vector<1x64xf32> -> vector<1x64xf32>
    %cst_131 = arith.constant 0.001953125 : f32
    %166 = vector.broadcast %cst_131 : f32 to vector<1x64xf32>
    %167 = arith.mulf %165, %166 : vector<1x64xf32>
    %168 = arith.mulf %164, %164 : vector<1x64xf32>
    %169 = arith.subf %167, %168 : vector<1x64xf32>
    %cst_132 = arith.constant 9.99999974E-6 : f32
    %170 = vector.broadcast %cst_132 : f32 to vector<1x64xf32>
    %171 = arith.addf %169, %170 : vector<1x64xf32>
    %172 = math.rsqrt %171 : vector<1x64xf32>
    %c0_133 = arith.constant 0 : index
    %c0_134 = arith.constant 0 : index
    %173 = vector.load %arg9[%c0_133, %c0_134] : memref<1x64xf32, #tpu.memory_space<vmem>>, vector<1x64xf32>
    %174 = arith.mulf %172, %173 : vector<1x64xf32>
    %175 = vector.broadcast %164 : vector<1x64xf32> to vector<32x64xf32>
    %176 = arith.subf %155, %175 : vector<32x64xf32>
    %177 = vector.broadcast %174 : vector<1x64xf32> to vector<32x64xf32>
    %178 = arith.mulf %176, %177 : vector<32x64xf32>
    %c0_135 = arith.constant 0 : index
    %c0_136 = arith.constant 0 : index
    %179 = vector.load %arg10[%c0_135, %c0_136] : memref<1x64xf32, #tpu.memory_space<vmem>>, vector<1x64xf32>
    %180 = vector.broadcast %179 : vector<1x64xf32> to vector<32x64xf32>
    %181 = arith.addf %178, %180 : vector<32x64xf32>
    %cst_137 = arith.constant 0.000000e+00 : f32
    %182 = vector.broadcast %cst_137 : f32 to vector<32x64xf32>
    %183 = arith.cmpf ogt, %181, %182 : vector<32x64xf32>
    %cst_138 = arith.constant 2.000000e-01 : f32
    %184 = vector.broadcast %cst_138 : f32 to vector<32x64xf32>
    %185 = arith.mulf %184, %181 : vector<32x64xf32>
    %186 = arith.select %183, %181, %185 : vector<32x64xi1>, vector<32x64xf32>
    %c0_139 = arith.constant 0 : index
    %c0_140 = arith.constant 0 : index
    %c0_141 = arith.constant 0 : index
    %187 = vector.load %arg13[%c0_139, %c0_140, %c0_141] : memref<3x64x256xf32, #tpu.memory_space<vmem>>, vector<1x64x256xf32>
    %188 = vector.shape_cast %187 : vector<1x64x256xf32> to vector<64x256xf32>
    %cst_142 = arith.constant dense<0.000000e+00> : vector<32x256xf32>
    %189 = tpu.matmul %186, %188, %cst_142 {dimension_numbers = #tpu.dot_dimension_numbers<[1], [0], [0], [1], [0, 0, 1, 1], [], []>} : vector<32x64xf32>, vector<64x256xf32>, vector<32x256xf32> -> vector<32x256xf32>
    %c0_143 = arith.constant 0 : index
    %c0_144 = arith.constant 0 : index
    %c0_145 = arith.constant 0 : index
    %190 = vector.load %arg14[%c0_143, %c0_144, %c0_145] : memref<3x64x256xf32, #tpu.memory_space<vmem>>, vector<1x64x256xf32>
    %191 = vector.shape_cast %190 : vector<1x64x256xf32> to vector<64x256xf32>
    %cst_146 = arith.constant dense<0.000000e+00> : vector<32x256xf32>
    %192 = tpu.matmul %148, %191, %cst_146 {dimension_numbers = #tpu.dot_dimension_numbers<[1], [0], [0], [1], [0, 0, 1, 1], [], []>} : vector<32x64xf32>, vector<64x256xf32>, vector<32x256xf32> -> vector<32x256xf32>
    %193 = arith.addf %189, %192 : vector<32x256xf32>
    %c0_147 = arith.constant 0 : index
    %c0_148 = arith.constant 0 : index
    %c0_149 = arith.constant 0 : index
    %194 = vector.load %arg12[%c0_147, %c0_148, %c0_149] : memref<3x64x32xf32, #tpu.memory_space<vmem>>, vector<1x64x32xf32>
    %195 = vector.shape_cast %194 : vector<1x64x32xf32> to vector<64x32xf32>
    %cst_150 = arith.constant dense<0.000000e+00> : vector<64x256xf32>
    %196 = tpu.matmul %195, %193, %cst_150 {dimension_numbers = #tpu.dot_dimension_numbers<[1], [0], [0], [1], [0, 0, 1, 1], [], []>} : vector<64x32xf32>, vector<32x256xf32>, vector<64x256xf32> -> vector<64x256xf32>
    %c1_151 = arith.constant 1 : index
    %c0_152 = arith.constant 0 : index
    %c0_153 = arith.constant 0 : index
    %197 = vector.load %arg13[%c1_151, %c0_152, %c0_153] : memref<3x64x256xf32, #tpu.memory_space<vmem>>, vector<1x64x256xf32>
    %198 = vector.shape_cast %197 : vector<1x64x256xf32> to vector<64x256xf32>
    %cst_154 = arith.constant dense<0.000000e+00> : vector<32x256xf32>
    %199 = tpu.matmul %186, %198, %cst_154 {dimension_numbers = #tpu.dot_dimension_numbers<[1], [0], [0], [1], [0, 0, 1, 1], [], []>} : vector<32x64xf32>, vector<64x256xf32>, vector<32x256xf32> -> vector<32x256xf32>
    %c1_155 = arith.constant 1 : index
    %c0_156 = arith.constant 0 : index
    %c0_157 = arith.constant 0 : index
    %200 = vector.load %arg14[%c1_155, %c0_156, %c0_157] : memref<3x64x256xf32, #tpu.memory_space<vmem>>, vector<1x64x256xf32>
    %201 = vector.shape_cast %200 : vector<1x64x256xf32> to vector<64x256xf32>
    %cst_158 = arith.constant dense<0.000000e+00> : vector<32x256xf32>
    %202 = tpu.matmul %148, %201, %cst_158 {dimension_numbers = #tpu.dot_dimension_numbers<[1], [0], [0], [1], [0, 0, 1, 1], [], []>} : vector<32x64xf32>, vector<64x256xf32>, vector<32x256xf32> -> vector<32x256xf32>
    %203 = arith.addf %199, %202 : vector<32x256xf32>
    %c1_159 = arith.constant 1 : index
    %c0_160 = arith.constant 0 : index
    %c0_161 = arith.constant 0 : index
    %204 = vector.load %arg12[%c1_159, %c0_160, %c0_161] : memref<3x64x32xf32, #tpu.memory_space<vmem>>, vector<1x64x32xf32>
    %205 = vector.shape_cast %204 : vector<1x64x32xf32> to vector<64x32xf32>
    %cst_162 = arith.constant dense<0.000000e+00> : vector<64x256xf32>
    %206 = tpu.matmul %205, %203, %cst_162 {dimension_numbers = #tpu.dot_dimension_numbers<[1], [0], [0], [1], [0, 0, 1, 1], [], []>} : vector<64x32xf32>, vector<32x256xf32>, vector<64x256xf32> -> vector<64x256xf32>
    %207 = arith.addf %196, %206 : vector<64x256xf32>
    %c2_163 = arith.constant 2 : index
    %c0_164 = arith.constant 0 : index
    %c0_165 = arith.constant 0 : index
    %208 = vector.load %arg13[%c2_163, %c0_164, %c0_165] : memref<3x64x256xf32, #tpu.memory_space<vmem>>, vector<1x64x256xf32>
    %209 = vector.shape_cast %208 : vector<1x64x256xf32> to vector<64x256xf32>
    %cst_166 = arith.constant dense<0.000000e+00> : vector<32x256xf32>
    %210 = tpu.matmul %186, %209, %cst_166 {dimension_numbers = #tpu.dot_dimension_numbers<[1], [0], [0], [1], [0, 0, 1, 1], [], []>} : vector<32x64xf32>, vector<64x256xf32>, vector<32x256xf32> -> vector<32x256xf32>
    %c2_167 = arith.constant 2 : index
    %c0_168 = arith.constant 0 : index
    %c0_169 = arith.constant 0 : index
    %211 = vector.load %arg14[%c2_167, %c0_168, %c0_169] : memref<3x64x256xf32, #tpu.memory_space<vmem>>, vector<1x64x256xf32>
    %212 = vector.shape_cast %211 : vector<1x64x256xf32> to vector<64x256xf32>
    %cst_170 = arith.constant dense<0.000000e+00> : vector<32x256xf32>
    %213 = tpu.matmul %148, %212, %cst_170 {dimension_numbers = #tpu.dot_dimension_numbers<[1], [0], [0], [1], [0, 0, 1, 1], [], []>} : vector<32x64xf32>, vector<64x256xf32>, vector<32x256xf32> -> vector<32x256xf32>
    %214 = arith.addf %210, %213 : vector<32x256xf32>
    %c2_171 = arith.constant 2 : index
    %c0_172 = arith.constant 0 : index
    %c0_173 = arith.constant 0 : index
    %215 = vector.load %arg12[%c2_171, %c0_172, %c0_173] : memref<3x64x32xf32, #tpu.memory_space<vmem>>, vector<1x64x32xf32>
    %216 = vector.shape_cast %215 : vector<1x64x32xf32> to vector<64x32xf32>
    %cst_174 = arith.constant dense<0.000000e+00> : vector<64x256xf32>
    %217 = tpu.matmul %216, %214, %cst_174 {dimension_numbers = #tpu.dot_dimension_numbers<[1], [0], [0], [1], [0, 0, 1, 1], [], []>} : vector<64x32xf32>, vector<32x256xf32>, vector<64x256xf32> -> vector<64x256xf32>
    %218 = arith.addf %207, %217 : vector<64x256xf32>
    %c0_175 = arith.constant 0 : index
    %c0_176 = arith.constant 0 : index
    %219 = vector.load %arg15[%c0_175, %c0_176] : memref<1x256xf32, #tpu.memory_space<vmem>>, vector<1x256xf32>
    %220 = vector.broadcast %219 : vector<1x256xf32> to vector<64x256xf32>
    %221 = arith.addf %218, %220 : vector<64x256xf32>
    %c0_177 = arith.constant 0 : index
    %c0_178 = arith.constant 0 : index
    %222 = vector.load %arg18[%c0_177, %c0_178] : memref<256x256xf32, #tpu.memory_space<vmem>>, vector<256x256xf32>
    %cst_179 = arith.constant dense<0.000000e+00> : vector<256xf32>
    %223 = vector.multi_reduction <add>, %221, %cst_179 [0] : vector<64x256xf32> to vector<256xf32>
    %224 = vector.shape_cast %223 : vector<256xf32> to vector<1x256xf32>
    %225 = arith.mulf %221, %221 : vector<64x256xf32>
    %cst_180 = arith.constant dense<0.000000e+00> : vector<256xf32>
    %226 = vector.multi_reduction <add>, %225, %cst_180 [0] : vector<64x256xf32> to vector<256xf32>
    %227 = vector.shape_cast %226 : vector<256xf32> to vector<1x256xf32>
    %cst_181 = arith.constant dense<0.000000e+00> : vector<1x256xf32>
    %228 = tpu.matmul %224, %222, %cst_181 {dimension_numbers = #tpu.dot_dimension_numbers<[1], [0], [0], [1], [0, 0, 1, 1], [], []>} : vector<1x256xf32>, vector<256x256xf32>, vector<1x256xf32> -> vector<1x256xf32>
    %cst_182 = arith.constant 4.8828125E-4 : f32
    %229 = vector.broadcast %cst_182 : f32 to vector<1x256xf32>
    %230 = arith.mulf %228, %229 : vector<1x256xf32>
    %cst_183 = arith.constant dense<0.000000e+00> : vector<1x256xf32>
    %231 = tpu.matmul %227, %222, %cst_183 {dimension_numbers = #tpu.dot_dimension_numbers<[1], [0], [0], [1], [0, 0, 1, 1], [], []>} : vector<1x256xf32>, vector<256x256xf32>, vector<1x256xf32> -> vector<1x256xf32>
    %cst_184 = arith.constant 4.8828125E-4 : f32
    %232 = vector.broadcast %cst_184 : f32 to vector<1x256xf32>
    %233 = arith.mulf %231, %232 : vector<1x256xf32>
    %234 = arith.mulf %230, %230 : vector<1x256xf32>
    %235 = arith.subf %233, %234 : vector<1x256xf32>
    %cst_185 = arith.constant 9.99999974E-6 : f32
    %236 = vector.broadcast %cst_185 : f32 to vector<1x256xf32>
    %237 = arith.addf %235, %236 : vector<1x256xf32>
    %238 = math.rsqrt %237 : vector<1x256xf32>
    %c0_186 = arith.constant 0 : index
    %c0_187 = arith.constant 0 : index
    %239 = vector.load %arg16[%c0_186, %c0_187] : memref<1x256xf32, #tpu.memory_space<vmem>>, vector<1x256xf32>
    %240 = arith.mulf %238, %239 : vector<1x256xf32>
    %241 = vector.broadcast %230 : vector<1x256xf32> to vector<64x256xf32>
    %242 = arith.subf %221, %241 : vector<64x256xf32>
    %243 = vector.broadcast %240 : vector<1x256xf32> to vector<64x256xf32>
    %244 = arith.mulf %242, %243 : vector<64x256xf32>
    %c0_188 = arith.constant 0 : index
    %c0_189 = arith.constant 0 : index
    %245 = vector.load %arg17[%c0_188, %c0_189] : memref<1x256xf32, #tpu.memory_space<vmem>>, vector<1x256xf32>
    %246 = vector.broadcast %245 : vector<1x256xf32> to vector<64x256xf32>
    %247 = arith.addf %244, %246 : vector<64x256xf32>
    %cst_190 = arith.constant 0.000000e+00 : f32
    %248 = vector.broadcast %cst_190 : f32 to vector<64x256xf32>
    %249 = arith.cmpf ogt, %247, %248 : vector<64x256xf32>
    %cst_191 = arith.constant 2.000000e-01 : f32
    %250 = vector.broadcast %cst_191 : f32 to vector<64x256xf32>
    %251 = arith.mulf %250, %247 : vector<64x256xf32>
    %252 = arith.select %249, %247, %251 : vector<64x256xi1>, vector<64x256xf32>
    %c0_192 = arith.constant 0 : index
    %c0_193 = arith.constant 0 : index
    %c0_194 = arith.constant 0 : index
    %253 = vector.load %arg19[%c0_192, %c0_193, %c0_194] : memref<3x64x64xf32, #tpu.memory_space<vmem>>, vector<1x64x64xf32>
    %254 = vector.shape_cast %253 : vector<1x64x64xf32> to vector<64x64xf32>
    %c0_195 = arith.constant 0 : index
    %c0_196 = arith.constant 0 : index
    %c0_197 = arith.constant 0 : index
    %255 = vector.load %arg20[%c0_195, %c0_196, %c0_197] : memref<3x256x256xf32, #tpu.memory_space<vmem>>, vector<1x256x256xf32>
    %256 = vector.shape_cast %255 : vector<1x256x256xf32> to vector<256x256xf32>
    %cst_198 = arith.constant dense<0.000000e+00> : vector<64x256xf32>
    %257 = tpu.matmul %252, %256, %cst_198 {dimension_numbers = #tpu.dot_dimension_numbers<[1], [0], [0], [1], [0, 0, 1, 1], [], []>} : vector<64x256xf32>, vector<256x256xf32>, vector<64x256xf32> -> vector<64x256xf32>
    %cst_199 = arith.constant dense<0.000000e+00> : vector<64x256xf32>
    %258 = tpu.matmul %254, %257, %cst_199 {dimension_numbers = #tpu.dot_dimension_numbers<[1], [0], [0], [1], [0, 0, 1, 1], [], []>} : vector<64x64xf32>, vector<64x256xf32>, vector<64x256xf32> -> vector<64x256xf32>
    %c1_200 = arith.constant 1 : index
    %c0_201 = arith.constant 0 : index
    %c0_202 = arith.constant 0 : index
    %259 = vector.load %arg19[%c1_200, %c0_201, %c0_202] : memref<3x64x64xf32, #tpu.memory_space<vmem>>, vector<1x64x64xf32>
    %260 = vector.shape_cast %259 : vector<1x64x64xf32> to vector<64x64xf32>
    %c1_203 = arith.constant 1 : index
    %c0_204 = arith.constant 0 : index
    %c0_205 = arith.constant 0 : index
    %261 = vector.load %arg20[%c1_203, %c0_204, %c0_205] : memref<3x256x256xf32, #tpu.memory_space<vmem>>, vector<1x256x256xf32>
    %262 = vector.shape_cast %261 : vector<1x256x256xf32> to vector<256x256xf32>
    %cst_206 = arith.constant dense<0.000000e+00> : vector<64x256xf32>
    %263 = tpu.matmul %252, %262, %cst_206 {dimension_numbers = #tpu.dot_dimension_numbers<[1], [0], [0], [1], [0, 0, 1, 1], [], []>} : vector<64x256xf32>, vector<256x256xf32>, vector<64x256xf32> -> vector<64x256xf32>
    %cst_207 = arith.constant dense<0.000000e+00> : vector<64x256xf32>
    %264 = tpu.matmul %260, %263, %cst_207 {dimension_numbers = #tpu.dot_dimension_numbers<[1], [0], [0], [1], [0, 0, 1, 1], [], []>} : vector<64x64xf32>, vector<64x256xf32>, vector<64x256xf32> -> vector<64x256xf32>
    %265 = arith.addf %258, %264 : vector<64x256xf32>
    %c2_208 = arith.constant 2 : index
    %c0_209 = arith.constant 0 : index
    %c0_210 = arith.constant 0 : index
    %266 = vector.load %arg19[%c2_208, %c0_209, %c0_210] : memref<3x64x64xf32, #tpu.memory_space<vmem>>, vector<1x64x64xf32>
    %267 = vector.shape_cast %266 : vector<1x64x64xf32> to vector<64x64xf32>
    %c2_211 = arith.constant 2 : index
    %c0_212 = arith.constant 0 : index
    %c0_213 = arith.constant 0 : index
    %268 = vector.load %arg20[%c2_211, %c0_212, %c0_213] : memref<3x256x256xf32, #tpu.memory_space<vmem>>, vector<1x256x256xf32>
    %269 = vector.shape_cast %268 : vector<1x256x256xf32> to vector<256x256xf32>
    %cst_214 = arith.constant dense<0.000000e+00> : vector<64x256xf32>
    %270 = tpu.matmul %252, %269, %cst_214 {dimension_numbers = #tpu.dot_dimension_numbers<[1], [0], [0], [1], [0, 0, 1, 1], [], []>} : vector<64x256xf32>, vector<256x256xf32>, vector<64x256xf32> -> vector<64x256xf32>
    %cst_215 = arith.constant dense<0.000000e+00> : vector<64x256xf32>
    %271 = tpu.matmul %267, %270, %cst_215 {dimension_numbers = #tpu.dot_dimension_numbers<[1], [0], [0], [1], [0, 0, 1, 1], [], []>} : vector<64x64xf32>, vector<64x256xf32>, vector<64x256xf32> -> vector<64x256xf32>
    %272 = arith.addf %265, %271 : vector<64x256xf32>
    %c0_216 = arith.constant 0 : index
    %c0_217 = arith.constant 0 : index
    %273 = vector.load %arg21[%c0_216, %c0_217] : memref<1x256xf32, #tpu.memory_space<vmem>>, vector<1x256xf32>
    %274 = vector.broadcast %273 : vector<1x256xf32> to vector<64x256xf32>
    %275 = arith.addf %272, %274 : vector<64x256xf32>
    %c0_218 = arith.constant 0 : index
    %c0_219 = arith.constant 0 : index
    %276 = vector.load %arg22[%c0_218, %c0_219] : memref<64x256xf32, #tpu.memory_space<vmem>>, vector<64x256xf32>
    tpu.vector_store %arg22[%c0_218, %c0_219], %275 {strides = array<i32>} : memref<64x256xf32, #tpu.memory_space<vmem>>, vector<64x256xf32>,
    return
  }
  func.func @transform_0(%arg0: i32) -> (i32, i32) {
    %c0_i32 = arith.constant 0 : i32
    %c0_i32_0 = arith.constant 0 : i32
    %c0_i32_1 = arith.constant 0 : i32
    return %c0_i32, %c0_i32_0 : i32, i32
  }
  func.func @transform_1(%arg0: i32) -> (i32, i32) {
    %c0_i32 = arith.constant 0 : i32
    %c0_i32_0 = arith.constant 0 : i32
    %c0_i32_1 = arith.constant 0 : i32
    return %c0_i32, %c0_i32_0 : i32, i32
  }
  func.func @transform_2(%arg0: i32) -> (i32, i32) {
    %c0_i32 = arith.constant 0 : i32
    %c0_i32_0 = arith.constant 0 : i32
    %c0_i32_1 = arith.constant 0 : i32
    return %c0_i32, %c0_i32_0 : i32, i32
  }
  func.func @transform_3(%arg0: i32) -> (i32, i32, i32) {
    %c0_i32 = arith.constant 0 : i32
    %c0_i32_0 = arith.constant 0 : i32
    %c0_i32_1 = arith.constant 0 : i32
    %c0_i32_2 = arith.constant 0 : i32
    return %c0_i32, %c0_i32_0, %c0_i32_1 : i32, i32, i32
  }
  func.func @transform_4(%arg0: i32) -> (i32, i32) {
    %c0_i32 = arith.constant 0 : i32
    %c0_i32_0 = arith.constant 0 : i32
    %c0_i32_1 = arith.constant 0 : i32
    return %c0_i32, %c0_i32_0 : i32, i32
  }
  func.func @transform_5(%arg0: i32) -> (i32, i32) {
    %c0_i32 = arith.constant 0 : i32
    %c0_i32_0 = arith.constant 0 : i32
    %c0_i32_1 = arith.constant 0 : i32
    return %c0_i32, %c0_i32_0 : i32, i32
  }
  func.func @transform_6(%arg0: i32) -> (i32, i32) {
    %c0_i32 = arith.constant 0 : i32
    %c0_i32_0 = arith.constant 0 : i32
    %c0_i32_1 = arith.constant 0 : i32
    return %c0_i32, %c0_i32_0 : i32, i32
  }
  func.func @transform_7(%arg0: i32) -> (i32, i32) {
    %c0_i32 = arith.constant 0 : i32
    %c0_i32_0 = arith.constant 0 : i32
    %c0_i32_1 = arith.constant 0 : i32
    return %c0_i32, %c0_i32_0 : i32, i32
  }
  func.func @transform_8(%arg0: i32) -> (i32, i32) {
    %c0_i32 = arith.constant 0 : i32
    %c0_i32_0 = arith.constant 0 : i32
    %c0_i32_1 = arith.constant 0 : i32
    return %c0_i32, %c0_i32_0 : i32, i32
  }
  func.func @transform_9(%arg0: i32) -> (i32, i32) {
    %c0_i32 = arith.constant 0 : i32
    %c0_i32_0 = arith.constant 0 : i32
    %c0_i32_1 = arith.constant 0 : i32
    return %c0_i32, %c0_i32_0 : i32, i32
  }
  func.func @transform_10(%arg0: i32) -> (i32, i32) {
    %c0_i32 = arith.constant 0 : i32
    %c0_i32_0 = arith.constant 0 : i32
    %c0_i32_1 = arith.constant 0 : i32
    return %c0_i32, %c0_i32_0 : i32, i32
  }
  func.func @transform_11(%arg0: i32) -> (i32, i32, i32) {
    %c0_i32 = arith.constant 0 : i32
    %c0_i32_0 = arith.constant 0 : i32
    %c0_i32_1 = arith.constant 0 : i32
    %c0_i32_2 = arith.constant 0 : i32
    return %c0_i32, %c0_i32_0, %c0_i32_1 : i32, i32, i32
  }
  func.func @transform_12(%arg0: i32) -> (i32, i32, i32) {
    %c0_i32 = arith.constant 0 : i32
    %c0_i32_0 = arith.constant 0 : i32
    %c0_i32_1 = arith.constant 0 : i32
    %c0_i32_2 = arith.constant 0 : i32
    return %c0_i32, %c0_i32_0, %c0_i32_1 : i32, i32, i32
  }
  func.func @transform_13(%arg0: i32) -> (i32, i32, i32) {
    %c0_i32 = arith.constant 0 : i32
    %c0_i32_0 = arith.constant 0 : i32
    %c0_i32_1 = arith.constant 0 : i32
    %c0_i32_2 = arith.constant 0 : i32
    return %c0_i32, %c0_i32_0, %c0_i32_1 : i32, i32, i32
  }
  func.func @transform_14(%arg0: i32) -> (i32, i32) {
    %c0_i32 = arith.constant 0 : i32
    %c0_i32_0 = arith.constant 0 : i32
    %c0_i32_1 = arith.constant 0 : i32
    return %c0_i32, %c0_i32_0 : i32, i32
  }
  func.func @transform_15(%arg0: i32) -> (i32, i32) {
    %c0_i32 = arith.constant 0 : i32
    %c0_i32_0 = arith.constant 0 : i32
    %c0_i32_1 = arith.constant 0 : i32
    return %c0_i32, %c0_i32_0 : i32, i32
  }
  func.func @transform_16(%arg0: i32) -> (i32, i32) {
    %c0_i32 = arith.constant 0 : i32
    %c0_i32_0 = arith.constant 0 : i32
    %c0_i32_1 = arith.constant 0 : i32
    return %c0_i32, %c0_i32_0 : i32, i32
  }
  func.func @transform_17(%arg0: i32) -> (i32, i32) {
    %c0_i32 = arith.constant 0 : i32
    %c0_i32_0 = arith.constant 0 : i32
    %c0_i32_1 = arith.constant 0 : i32
    return %c0_i32, %c0_i32_0 : i32, i32
  }
  func.func @transform_18(%arg0: i32) -> (i32, i32, i32) {
    %c0_i32 = arith.constant 0 : i32
    %c0_i32_0 = arith.constant 0 : i32
    %c0_i32_1 = arith.constant 0 : i32
    %c0_i32_2 = arith.constant 0 : i32
    return %c0_i32, %c0_i32_0, %c0_i32_1 : i32, i32, i32
  }
  func.func @transform_19(%arg0: i32) -> (i32, i32, i32) {
    %c0_i32 = arith.constant 0 : i32
    %c0_i32_0 = arith.constant 0 : i32
    %c0_i32_1 = arith.constant 0 : i32
    %c0_i32_2 = arith.constant 0 : i32
    return %c0_i32, %c0_i32_0, %c0_i32_1 : i32, i32, i32
  }
  func.func @transform_20(%arg0: i32) -> (i32, i32) {
    %c0_i32 = arith.constant 0 : i32
    %c0_i32_0 = arith.constant 0 : i32
    %c0_i32_1 = arith.constant 0 : i32
    return %c0_i32, %c0_i32_0 : i32, i32
  }
  func.func @transform_21(%arg0: i32) -> (i32, i32) {
    %c0_i32 = arith.constant 0 : i32
    %c0_i32_0 = arith.constant 0 : i32
    %c0_i32_1 = arith.constant 0 : i32
    return %c0_i32, %c0_i32_0 : i32, i32
  }
  func.func @transform_22(%arg0: i32) -> (i32, i32) {
    %c0_i32 = arith.constant 0 : i32
    %c0_i32_0 = arith.constant 0 : i32
    %c0_i32_1 = arith.constant 0 : i32
    return %c0_i32, %c0_i32_0 : i32, i32
  }
}

</mosaic_0001>

<llo_original>
// kernel: eigen_block_forward.1
$region0: #{eigen_block_forward.1}
  #allocation0 [shape = 'u32[]', space=smem, size = 0x4, offset = 0x4, fixed_abs, tag = 'smem constant byte address 0x4 - core index']
  #allocation1 [shape = 'u32[144,128]{1,0:T(1,128)}', space=vmem, size = 0x12000, scoped, tag = 'internal scratch']
  #allocation2 [shape = 'f32[32,64]{1,0:T(8,128)}', space=vmem, size = 0x4000, scoped, tag = 'scratch operand']
  %s0 = inlined_call_operand.vmem [shape: f32[2,8], index: 0, kind: input, shape index: {}]
  %s1 = inlined_call_operand.vmem [shape: f32[1,8], index: 1, kind: input, shape index: {}]
  %s2 = inlined_call_operand.hbm [shape: f32[8,1024], index: 2, kind: input, shape index: {}]
  %s3 = inlined_call_operand.hbm [shape: f32[8,16,64], index: 3, kind: input, shape index: {}]
  %s4 = inlined_call_operand.vmem [shape: f32[16,64], index: 4, kind: input, shape index: {}]
  %s5 = inlined_call_operand.vmem [shape: f32[32,64], index: 5, kind: input, shape index: {}]
  %s6 = inlined_call_operand.hbm [shape: f32[64,64], index: 6, kind: input, shape index: {}]
  %s7 = inlined_call_operand.vmem [shape: f32[1,64], index: 7, kind: input, shape index: {}]
  %s8 = inlined_call_operand.vmem [shape: f32[1,64], index: 8, kind: input, shape index: {}]
  %s9 = inlined_call_operand.vmem [shape: f32[1,64], index: 9, kind: input, shape index: {}]
  %s10 = inlined_call_operand.hbm [shape: f32[64,64], index: 10, kind: input, shape index: {}]
  %s11 = inlined_call_operand.vmem [shape: f32[3,64,32], index: 11, kind: input, shape index: {}]
  %s12 = inlined_call_operand.hbm [shape: f32[3,64,256], index: 12, kind: input, shape index: {}]
  %s13 = inlined_call_operand.hbm [shape: f32[3,64,256], index: 13, kind: input, shape index: {}]
  %s14 = inlined_call_operand.vmem [shape: f32[1,256], index: 14, kind: input, shape index: {}]
  %s15 = inlined_call_operand.vmem [shape: f32[1,256], index: 15, kind: input, shape index: {}]
  %s16 = inlined_call_operand.vmem [shape: f32[1,256], index: 16, kind: input, shape index: {}]
  %s17 = inlined_call_operand.vmem [shape: f32[256,256], index: 17, kind: input, shape index: {}]
  %s18 = inlined_call_operand.vmem [shape: f32[3,64,64], index: 18, kind: input, shape index: {}]
  %s19 = inlined_call_operand.hbm [shape: f32[3,256,256], index: 19, kind: input, shape index: {}]
  %s20 = inlined_call_operand.vmem [shape: f32[1,256], index: 20, kind: input, shape index: {}]
  %s21 = inlined_call_operand.vmem [shape: f32[64,256], index: 21, kind: output, shape index: {0}]
  %s22 = inlined_call_operand.hbm [shape: f32[1,1], index: 22, kind: output, shape index: {1}]
  %23 = xla_tuple %s21, %s22
  %s24 = sld [smem:[#allocation0]]
  $region138: #{eigen_block_forward.1} parent=0
    _
  %s26 = ssub.s32 1, %s24
  %s27 = scalar_select 0, %s26, %s24
  $region1: #{eigen_block_forward.1} parent=0
    #allocation3 [shape = 'u8[1024]{0}', space=smem, size = 0x400, scoped, tag = 'input window, operand 0, single buffered']
    #allocation4 [shape = 's32[1]{0}', space=sflag, size = 0x4, scoped, tag = 'scoped memory for eigen_block_forward.1']
    #allocation5 [shape = 's32[1]{0}', space=sflag, size = 0x4, scoped, tag = 'scoped memory for eigen_block_forward.1']
    #allocation6 [shape = 's32[1]{0}', space=sflag, size = 0x4, scoped, tag = 'scoped memory for eigen_block_forward.1']
    #allocation7 [shape = 'u8[512]{0}', space=smem, size = 0x200, scoped, tag = 'input window, operand 1, single buffered']
    #allocation8 [shape = 's32[1]{0}', space=sflag, size = 0x4, scoped, tag = 'scoped memory for eigen_block_forward.1']
    #allocation9 [shape = 'u8[32768]{0}', space=vmem, size = 0x8000, scoped, tag = 'input window, operand 2, single buffered']
    #allocation10 [shape = 'u8[65536]{0}', space=vmem, size = 0x10000, scoped, tag = 'input window, operand 3, single buffered']
    #allocation11 [shape = 's32[1]{0}', space=sflag, size = 0x4, scoped, tag = 'scoped memory for eigen_block_forward.1']
    #allocation12 [shape = 'u8[32768]{0}', space=vmem, size = 0x8000, scoped, tag = 'input window, operand 6, single buffered']
    #allocation13 [shape = 'u8[32768]{0}', space=vmem, size = 0x8000, scoped, tag = 'input window, operand 10, single buffered']
    #allocation14 [shape = 's32[1]{0}', space=sflag, size = 0x4, scoped, tag = 'scoped memory for eigen_block_forward.1']
    #allocation15 [shape = 'u8[196608]{0}', space=vmem, size = 0x30000, scoped, tag = 'input window, operand 12, single buffered']
    #allocation16 [shape = 'u8[196608]{0}', space=vmem, size = 0x30000, scoped, tag = 'input window, operand 13, single buffered']
    #allocation17 [shape = 's32[1]{0}', space=sflag, size = 0x4, scoped, tag = 'scoped memory for eigen_block_forward.1']
    #allocation18 [shape = 'u8[786432]{0}', space=vmem, size = 0xc0000, scoped, tag = 'input window, operand 19, single buffered']
    #allocation19 [shape = 'u8[512]{0}', space=vmem, size = 0x400, scoped, tag = 'output window, operand 1, single buffered']
    %28 = vsyncpa [#allocation6], 0
    %29 = vsyncpa [#allocation8], 0
    %30 = vsyncpa [#allocation4], 0
    %31 = vsyncpa [#allocation11], 0
    %32 = vsyncpa [#allocation14], 0
    %33 = vsyncpa [#allocation17], 0
    %34 = vsyncpa [#allocation5], 0
    // Predicated region
    $region2: #{eigen_block_forward.1} parent=1 // pred_check
      _
    $region3: #{eigen_block_forward.1} parent=1 // pred_check_branch
      %36 = sbr.rel (0) target = $region5
    $region4: #{eigen_block_forward.1} parent=1 // pred_region
      %s38 = ssub.s32 32, 32
      %39 = vsyncadd [#allocation6], %s38
      %s41 = sshll.u32 %s0, 4
      %s42 = int_to_ptr.vmem [resolvable:$true] %s41
      %44 = dma.vmem_to_smem %s42, 32, [#allocation3], [#allocation6]
    $region5: #{eigen_block_forward.1} parent=1 // pred_fallthru
      _
    // Predicated region
    $region6: #{eigen_block_forward.1} parent=1 // pred_check
      _
    $region7: #{eigen_block_forward.1} parent=1 // pred_check_branch
      %46 = sbr.rel (0) target = $region9
    $region8: #{eigen_block_forward.1} parent=1 // pred_region
      %s48 = ssub.s32 16, 16
      %49 = vsyncadd [#allocation8], %s48
      %s51 = sshll.u32 %s1, 4
      %s52 = int_to_ptr.vmem [resolvable:$true] %s51
      %54 = dma.vmem_to_smem %s52, 16, [#allocation7], [#allocation8]
    $region9: #{eigen_block_forward.1} parent=1 // pred_fallthru
      _
    // Predicated region
    $region10: #{eigen_block_forward.1} parent=1 // pred_check
      _
    $region11: #{eigen_block_forward.1} parent=1 // pred_check_branch
      %56 = sbr.rel (0) target = $region13
    $region12: #{eigen_block_forward.1} parent=1 // pred_region
      %s58 = ssub.s32 1024, 1024
      %59 = vsyncadd [#allocation4], %s58
      %s61 = sshll.u32 [#allocation9], 4
      %s62 = int_to_ptr.vmem [resolvable:$true] %s61
      %64 = dma.hbm_to_vmem [thread:$0]  %s2, 1024, %s62, [#allocation4]
    $region13: #{eigen_block_forward.1} parent=1 // pred_fallthru
      _
    // Predicated region
    $region14: #{eigen_block_forward.1} parent=1 // pred_check
      _
    $region15: #{eigen_block_forward.1} parent=1 // pred_check_branch
      %66 = sbr.rel (0) target = $region17
    $region16: #{eigen_block_forward.1} parent=1 // pred_region
      %s68 = ssub.s32 2048, 2048
      %69 = vsyncadd [#allocation11], %s68
      %s70 = sshll.u32 [#allocation10], 4
      %s71 = int_to_ptr.vmem [resolvable:$true] %s70
      %76 = dma.hbm_to_vmem [thread:$0]  %s3, 2048, %s71, [#allocation11], 128, 128, 8
    $region17: #{eigen_block_forward.1} parent=1 // pred_fallthru
      _
    // Predicated region
    $region18: #{eigen_block_forward.1} parent=1 // pred_check
      _
    $region19: #{eigen_block_forward.1} parent=1 // pred_check_branch
      %78 = sbr.rel (0) target = $region21
    $region20: #{eigen_block_forward.1} parent=1 // pred_region
      _
    $region21: #{eigen_block_forward.1} parent=1 // pred_fallthru
      _
    // Predicated region
    $region22: #{eigen_block_forward.1} parent=1 // pred_check
      _
    $region23: #{eigen_block_forward.1} parent=1 // pred_check_branch
      %80 = sbr.rel (0) target = $region25
    $region24: #{eigen_block_forward.1} parent=1 // pred_region
      _
    $region25: #{eigen_block_forward.1} parent=1 // pred_fallthru
      _
    // Predicated region
    $region26: #{eigen_block_forward.1} parent=1 // pred_check
      _
    $region27: #{eigen_block_forward.1} parent=1 // pred_check_branch
      %82 = sbr.rel (0) target = $region29
    $region28: #{eigen_block_forward.1} parent=1 // pred_region
      %s84 = ssub.s32 1024, 1024
      %85 = vsyncadd [#allocation11], %s84
      %s86 = sshll.u32 [#allocation12], 4
      %s87 = int_to_ptr.vmem [resolvable:$true] %s86
      %92 = dma.hbm_to_vmem [thread:$0]  %s6, 1024, %s87, [#allocation11], 128, 128, 8
    $region29: #{eigen_block_forward.1} parent=1 // pred_fallthru
      _
    // Predicated region
    $region30: #{eigen_block_forward.1} parent=1 // pred_check
      _
    $region31: #{eigen_block_forward.1} parent=1 // pred_check_branch
      %94 = sbr.rel (0) target = $region33
    $region32: #{eigen_block_forward.1} parent=1 // pred_region
      _
    $region33: #{eigen_block_forward.1} parent=1 // pred_fallthru
      _
    // Predicated region
    $region34: #{eigen_block_forward.1} parent=1 // pred_check
      _
    $region35: #{eigen_block_forward.1} parent=1 // pred_check_branch
      %96 = sbr.rel (0) target = $region37
    $region36: #{eigen_block_forward.1} parent=1 // pred_region
      _
    $region37: #{eigen_block_forward.1} parent=1 // pred_fallthru
      _
    // Predicated region
    $region38: #{eigen_block_forward.1} parent=1 // pred_check
      _
    $region39: #{eigen_block_forward.1} parent=1 // pred_check_branch
      %98 = sbr.rel (0) target = $region41
    $region40: #{eigen_block_forward.1} parent=1 // pred_region
      _
    $region41: #{eigen_block_forward.1} parent=1 // pred_fallthru
      _
    // Predicated region
    $region42: #{eigen_block_forward.1} parent=1 // pred_check
      _
    $region43: #{eigen_block_forward.1} parent=1 // pred_check_branch
      %100 = sbr.rel (0) target = $region45
    $region44: #{eigen_block_forward.1} parent=1 // pred_region
      %s102 = ssub.s32 1024, 1024
      %103 = vsyncadd [#allocation14], %s102
      %s104 = sshll.u32 [#allocation13], 4
      %s105 = int_to_ptr.vmem [resolvable:$true] %s104
      %110 = dma.hbm_to_vmem [thread:$0]  %s10, 1024, %s105, [#allocation14], 128, 128, 8
    $region45: #{eigen_block_forward.1} parent=1 // pred_fallthru
      _
    // Predicated region
    $region46: #{eigen_block_forward.1} parent=1 // pred_check
      _
    $region47: #{eigen_block_forward.1} parent=1 // pred_check_branch
      %112 = sbr.rel (0) target = $region49
    $region48: #{eigen_block_forward.1} parent=1 // pred_region
      _
    $region49: #{eigen_block_forward.1} parent=1 // pred_fallthru
      _
    // Predicated region
    $region50: #{eigen_block_forward.1} parent=1 // pred_check
      _
    $region51: #{eigen_block_forward.1} parent=1 // pred_check_branch
      %114 = sbr.rel (0) target = $region53
    $region52: #{eigen_block_forward.1} parent=1 // pred_region
      %s116 = ssub.s32 6144, 6144
      %117 = vsyncadd [#allocation14], %s116
      %s118 = sshll.u32 [#allocation15], 4
      %s119 = int_to_ptr.vmem [resolvable:$true] %s118
      %124 = dma.hbm_to_vmem [thread:$0]  %s12, 6144, %s119, [#allocation14], 256, 256, 16
    $region53: #{eigen_block_forward.1} parent=1 // pred_fallthru
      _
    // Predicated region
    $region54: #{eigen_block_forward.1} parent=1 // pred_check
      _
    $region55: #{eigen_block_forward.1} parent=1 // pred_check_branch
      %126 = sbr.rel (0) target = $region57
    $region56: #{eigen_block_forward.1} parent=1 // pred_region
      %s128 = ssub.s32 6144, 6144
      %129 = vsyncadd [#allocation17], %s128
      %s130 = sshll.u32 [#allocation16], 4
      %s131 = int_to_ptr.vmem [resolvable:$true] %s130
      %136 = dma.hbm_to_vmem [thread:$0]  %s13, 6144, %s131, [#allocation17], 256, 256, 16
    $region57: #{eigen_block_forward.1} parent=1 // pred_fallthru
      _
    // Predicated region
    $region58: #{eigen_block_forward.1} parent=1 // pred_check
      _
    $region59: #{eigen_block_forward.1} parent=1 // pred_check_branch
      %138 = sbr.rel (0) target = $region61
    $region60: #{eigen_block_forward.1} parent=1 // pred_region
      _
    $region61: #{eigen_block_forward.1} parent=1 // pred_fallthru
      _
    // Predicated region
    $region62: #{eigen_block_forward.1} parent=1 // pred_check
      _
    $region63: #{eigen_block_forward.1} parent=1 // pred_check_branch
      %140 = sbr.rel (0) target = $region65
    $region64: #{eigen_block_forward.1} parent=1 // pred_region
      _
    $region65: #{eigen_block_forward.1} parent=1 // pred_fallthru
      _
    // Predicated region
    $region66: #{eigen_block_forward.1} parent=1 // pred_check
      _
    $region67: #{eigen_block_forward.1} parent=1 // pred_check_branch
      %142 = sbr.rel (0) target = $region69
    $region68: #{eigen_block_forward.1} parent=1 // pred_region
      _
    $region69: #{eigen_block_forward.1} parent=1 // pred_fallthru
      _
    // Predicated region
    $region70: #{eigen_block_forward.1} parent=1 // pred_check
      _
    $region71: #{eigen_block_forward.1} parent=1 // pred_check_branch
      %144 = sbr.rel (0) target = $region73
    $region72: #{eigen_block_forward.1} parent=1 // pred_region
      _
    $region73: #{eigen_block_forward.1} parent=1 // pred_fallthru
      _
    // Predicated region
    $region74: #{eigen_block_forward.1} parent=1 // pred_check
      _
    $region75: #{eigen_block_forward.1} parent=1 // pred_check_branch
      %146 = sbr.rel (0) target = $region77
    $region76: #{eigen_block_forward.1} parent=1 // pred_region
      _
    $region77: #{eigen_block_forward.1} parent=1 // pred_fallthru
      _
    // Predicated region
    $region78: #{eigen_block_forward.1} parent=1 // pred_check
      _
    $region79: #{eigen_block_forward.1} parent=1 // pred_check_branch
      %148 = sbr.rel (0) target = $region81
    $region80: #{eigen_block_forward.1} parent=1 // pred_region
      %s150 = ssub.s32 24576, 24576
      %151 = vsyncadd [#allocation17], %s150
      %s152 = sshll.u32 [#allocation18], 4
      %s153 = int_to_ptr.vmem [resolvable:$true] %s152
      %158 = dma.hbm_to_vmem [thread:$0]  %s19, 24576, %s153, [#allocation17], 256, 256, 16
    $region81: #{eigen_block_forward.1} parent=1 // pred_fallthru
      _
    // Predicated region
    $region82: #{eigen_block_forward.1} parent=1 // pred_check
      _
    $region83: #{eigen_block_forward.1} parent=1 // pred_check_branch
      %160 = sbr.rel (0) target = $region85
    $region84: #{eigen_block_forward.1} parent=1 // pred_region
      _
    $region85: #{eigen_block_forward.1} parent=1 // pred_fallthru
      _
    // Predicated region
    $region86: #{eigen_block_forward.1} parent=1 // pred_check
      _
    $region87: #{eigen_block_forward.1} parent=1 // pred_check_branch
      %162 = sbr.rel (0) target = $region89
    $region88: #{eigen_block_forward.1} parent=1 // pred_region
      %163 = dma.done [#allocation6], 32
    $region89: #{eigen_block_forward.1} parent=1 // pred_fallthru
      _
    // Predicated region
    $region90: #{eigen_block_forward.1} parent=1 // pred_check
      _
    $region91: #{eigen_block_forward.1} parent=1 // pred_check_branch
      %165 = sbr.rel (0) target = $region93
    $region92: #{eigen_block_forward.1} parent=1 // pred_region
      %166 = dma.done [#allocation8], 16
    $region93: #{eigen_block_forward.1} parent=1 // pred_fallthru
      _
    // Predicated region
    $region94: #{eigen_block_forward.1} parent=1 // pred_check
      _
    $region95: #{eigen_block_forward.1} parent=1 // pred_check_branch
      %168 = sbr.rel (0) target = $region97
    $region96: #{eigen_block_forward.1} parent=1 // pred_region
      %169 = dma.done [#allocation4], 1024
    $region97: #{eigen_block_forward.1} parent=1 // pred_fallthru
      _
    // Predicated region
    $region98: #{eigen_block_forward.1} parent=1 // pred_check
      _
    $region99: #{eigen_block_forward.1} parent=1 // pred_check_branch
      %171 = sbr.rel (0) target = $region101
    $region100: #{eigen_block_forward.1} parent=1 // pred_region
      %172 = dma.done [#allocation11], 2048
    $region101: #{eigen_block_forward.1} parent=1 // pred_fallthru
      _
    // Predicated region
    $region102: #{eigen_block_forward.1} parent=1 // pred_check
      _
    $region103: #{eigen_block_forward.1} parent=1 // pred_check_branch
      %174 = sbr.rel (0) target = $region105
    $region104: #{eigen_block_forward.1} parent=1 // pred_region
      %175 = dma.done [#allocation11], 1024
    $region105: #{eigen_block_forward.1} parent=1 // pred_fallthru
      _
    // Predicated region
    $region106: #{eigen_block_forward.1} parent=1 // pred_check
      _
    $region107: #{eigen_block_forward.1} parent=1 // pred_check_branch
      %177 = sbr.rel (0) target = $region109
    $region108: #{eigen_block_forward.1} parent=1 // pred_region
      %178 = dma.done [#allocation14], 1024
    $region109: #{eigen_block_forward.1} parent=1 // pred_fallthru
      _
    // Predicated region
    $region110: #{eigen_block_forward.1} parent=1 // pred_check
      _
    $region111: #{eigen_block_forward.1} parent=1 // pred_check_branch
      %180 = sbr.rel (0) target = $region113
    $region112: #{eigen_block_forward.1} parent=1 // pred_region
      %181 = dma.done [#allocation14], 6144
    $region113: #{eigen_block_forward.1} parent=1 // pred_fallthru
      _
    // Predicated region
    $region114: #{eigen_block_forward.1} parent=1 // pred_check
      _
    $region115: #{eigen_block_forward.1} parent=1 // pred_check_branch
      %183 = sbr.rel (0) target = $region117
    $region116: #{eigen_block_forward.1} parent=1 // pred_region
      %184 = dma.done [#allocation17], 6144
    $region117: #{eigen_block_forward.1} parent=1 // pred_fallthru
      _
    // Predicated region
    $region118: #{eigen_block_forward.1} parent=1 // pred_check
      _
    $region119: #{eigen_block_forward.1} parent=1 // pred_check_branch
      %186 = sbr.rel (0) target = $region121
    $region120: #{eigen_block_forward.1} parent=1 // pred_region
      %187 = dma.done [#allocation17], 24576
    $region121: #{eigen_block_forward.1} parent=1 // pred_fallthru
      _
    %188 = sfence
    %v189 = vld [vmem:[#allocation9] sm:$0xff]
    %v190 = vld [vmem:[#allocation9 + $0x8] sm:$0xff]
    %v191 = vld [vmem:[#allocation9 + $0x10] sm:$0xff]
    %v192 = vld [vmem:[#allocation9 + $0x18] sm:$0xff]
    %v193 = vld [vmem:[#allocation9 + $0x20] sm:$0xff]
    %v194 = vld [vmem:[#allocation9 + $0x28] sm:$0xff]
    %v195 = vld [vmem:[#allocation9 + $0x30] sm:$0xff]
    %v196 = vld [vmem:[#allocation9 + $0x38] sm:$0xff]
    %197 = vmatprep.subr.mxu0 0.0
    %198 = vmatpush1.xpose.msra.mxu0 0.0
    %199 = vmatprep.subr.mxu0 0.0
    %200 = vmatpush1.xpose.msra.mxu0 0.0
    %201 = vmatprep.subr.mxu0 0.0
    %202 = vmatpush1.xpose.msra.mxu0 0.0
    %203 = vmatprep.subr.mxu0 0.0
    %204 = vmatpush1.xpose.msra.mxu0 0.0
    %205 = vmatprep.subr.mxu0 0.0
    %206 = vmatpush1.xpose.msra.mxu0 0.0
    %207 = vmatprep.subr.mxu0 0.0
    %208 = vmatpush1.xpose.msra.mxu0 0.0
    %209 = vmatprep.subr.mxu0 0.0
    %210 = vmatpush1.xpose.msra.mxu0 0.0
    %211 = vmatprep.subr.mxu0 0.0
    %212 = vmatpush1.xpose.msra.mxu0 0.0
    %213 = vmatprep.subr.mxu0 0.0
    %214 = vmatpush1.xpose.msra.mxu0 0.0
    %215 = vmatprep.subr.mxu0 0.0
    %216 = vmatpush1.xpose.msra.mxu0 0.0
    %217 = vmatprep.subr.mxu0 0.0
    %218 = vmatpush1.xpose.msra.mxu0 0.0
    %219 = vmatprep.subr.mxu0 0.0
    %220 = vmatpush1.xpose.msra.mxu0 0.0
    %221 = vmatprep.subr.mxu0 0.0
    %222 = vmatpush1.xpose.msra.mxu0 0.0
    %223 = vmatprep.subr.mxu0 0.0
    %224 = vmatpush1.xpose.msra.mxu0 0.0
    %225 = vmatprep.subr.mxu0 0.0
    %226 = vmatpush1.xpose.msra.mxu0 0.0
    %227 = vmatprep.subr.mxu0 %v190
    %228 = vmatpush1.xpose.msra.mxu0 %v189
    %229 = vmatprep.subr.mxu0 0.0
    %230 = vmatpush2.xpose.msra.mxu0 0.0
    %231 = vmatprep.subr.mxu0 0.0
    %232 = vmatpush2.xpose.msra.mxu0 0.0
    %233 = vmatprep.subr.mxu0 0.0
    %234 = vmatpush2.xpose.msra.mxu0 0.0
    %235 = vmatprep.subr.mxu0 0.0
    %236 = vmatpush2.xpose.msra.mxu0 0.0
    %237 = vmatprep.subr.mxu0 0.0
    %238 = vmatpush2.xpose.msra.mxu0 0.0
    %239 = vmatprep.subr.mxu0 0.0
    %240 = vmatpush2.xpose.msra.mxu0 0.0
    %241 = vmatprep.subr.mxu0 0.0
    %242 = vmatpush2.xpose.msra.mxu0 0.0
    %243 = vmatprep.subr.mxu0 0.0
    %244 = vmatpush2.xpose.msra.mxu0 0.0
    %245 = vmatprep.subr.mxu0 0.0
    %246 = vmatpush2.xpose.msra.mxu0 0.0
    %247 = vmatprep.subr.mxu0 0.0
    %248 = vmatpush2.xpose.msra.mxu0 0.0
    %249 = vmatprep.subr.mxu0 0.0
    %250 = vmatpush2.xpose.msra.mxu0 0.0
    %251 = vmatprep.subr.mxu0 0.0
    %252 = vmatpush2.xpose.msra.mxu0 0.0
    %253 = vmatprep.subr.mxu0 0.0
    %254 = vmatpush2.xpose.msra.mxu0 0.0
    %255 = vmatprep.subr.mxu0 0.0
    %256 = vmatpush2.xpose.msra.mxu0 0.0
    %257 = vmatprep.subr.mxu0 0.0
    %258 = vmatpush2.xpose.msra.mxu0 0.0
    %259 = vmatprep.subr.mxu0 0.0
    %260 = vmatpush2.xpose.msra.mxu0 0.0
    %261 = vmatprep.mubr.f32.mxu0 %v190
    %262 = vmatmul.mubr.f32.gmra.mxu0 %v189
    %v263 = vpop.f32.mrf.mxu0
    %v264 = vadd.f32 0.0, %v263
    %v265 = vpop.f32.mrf.mxu0
    %266 = vdwg.mxu0
    %267 = vmatprep.subr.mxu0 0.0
    %268 = vmatpush1.xpose.msra.mxu0 0.0
    %269 = vmatprep.subr.mxu0 0.0
    %270 = vmatpush1.xpose.msra.mxu0 0.0
    %271 = vmatprep.subr.mxu0 0.0
    %272 = vmatpush1.xpose.msra.mxu0 0.0
    %273 = vmatprep.subr.mxu0 0.0
    %274 = vmatpush1.xpose.msra.mxu0 0.0
    %275 = vmatprep.subr.mxu0 0.0
    %276 = vmatpush1.xpose.msra.mxu0 0.0
    %277 = vmatprep.subr.mxu0 0.0
    %278 = vmatpush1.xpose.msra.mxu0 0.0
    %279 = vmatprep.subr.mxu0 0.0
    %280 = vmatpush1.xpose.msra.mxu0 0.0
    %281 = vmatprep.subr.mxu0 0.0
    %282 = vmatpush1.xpose.msra.mxu0 0.0
    %283 = vmatprep.subr.mxu0 0.0
    %284 = vmatpush1.xpose.msra.mxu0 0.0
    %285 = vmatprep.subr.mxu0 0.0
    %286 = vmatpush1.xpose.msra.mxu0 0.0
    %287 = vmatprep.subr.mxu0 0.0
    %288 = vmatpush1.xpose.msra.mxu0 0.0
    %289 = vmatprep.subr.mxu0 0.0
    %290 = vmatpush1.xpose.msra.mxu0 0.0
    %291 = vmatprep.subr.mxu0 0.0
    %292 = vmatpush1.xpose.msra.mxu0 0.0
    %293 = vmatprep.subr.mxu0 0.0
    %294 = vmatpush1.xpose.msra.mxu0 0.0
    %295 = vmatprep.subr.mxu0 0.0
    %296 = vmatpush1.xpose.msra.mxu0 0.0
    %297 = vmatprep.subr.mxu0 %v192
    %298 = vmatpush1.xpose.msra.mxu0 %v191
    %299 = vmatprep.subr.mxu0 0.0
    %300 = vmatpush2.xpose.msra.mxu0 0.0
    %301 = vmatprep.subr.mxu0 0.0
    %302 = vmatpush2.xpose.msra.mxu0 0.0
    %303 = vmatprep.subr.mxu0 0.0
    %304 = vmatpush2.xpose.msra.mxu0 0.0
    %305 = vmatprep.subr.mxu0 0.0
    %306 = vmatpush2.xpose.msra.mxu0 0.0
    %307 = vmatprep.subr.mxu0 0.0
    %308 = vmatpush2.xpose.msra.mxu0 0.0
    %309 = vmatprep.subr.mxu0 0.0
    %310 = vmatpush2.xpose.msra.mxu0 0.0
    %311 = vmatprep.subr.mxu0 0.0
    %312 = vmatpush2.xpose.msra.mxu0 0.0
    %313 = vmatprep.subr.mxu0 0.0
    %314 = vmatpush2.xpose.msra.mxu0 0.0
    %315 = vmatprep.subr.mxu0 0.0
    %316 = vmatpush2.xpose.msra.mxu0 0.0
    %317 = vmatprep.subr.mxu0 0.0
    %318 = vmatpush2.xpose.msra.mxu0 0.0
    %319 = vmatprep.subr.mxu0 0.0
    %320 = vmatpush2.xpose.msra.mxu0 0.0
    %321 = vmatprep.subr.mxu0 0.0
    %322 = vmatpush2.xpose.msra.mxu0 0.0
    %323 = vmatprep.subr.mxu0 0.0
    %324 = vmatpush2.xpose.msra.mxu0 0.0
    %325 = vmatprep.subr.mxu0 0.0
    %326 = vmatpush2.xpose.msra.mxu0 0.0
    %327 = vmatprep.subr.mxu0 0.0
    %328 = vmatpush2.xpose.msra.mxu0 0.0
    %329 = vmatprep.subr.mxu0 0.0
    %330 = vmatpush2.xpose.msra.mxu0 0.0
    %331 = vmatprep.mubr.f32.mxu0 %v192
    %332 = vmatmul.mubr.f32.gmra.mxu0 %v191
    %v333 = vpop.f32.mrf.mxu0
    %v334 = vadd.f32 %v264, %v333
    %v335 = vpop.f32.mrf.mxu0
    %336 = vdwg.mxu0
    %337 = vmatprep.subr.mxu0 0.0
    %338 = vmatpush1.xpose.msra.mxu0 0.0
    %339 = vmatprep.subr.mxu0 0.0
    %340 = vmatpush1.xpose.msra.mxu0 0.0
    %341 = vmatprep.subr.mxu0 0.0
    %342 = vmatpush1.xpose.msra.mxu0 0.0
    %343 = vmatprep.subr.mxu0 0.0
    %344 = vmatpush1.xpose.msra.mxu0 0.0
    %345 = vmatprep.subr.mxu0 0.0
    %346 = vmatpush1.xpose.msra.mxu0 0.0
    %347 = vmatprep.subr.mxu0 0.0
    %348 = vmatpush1.xpose.msra.mxu0 0.0
    %349 = vmatprep.subr.mxu0 0.0
    %350 = vmatpush1.xpose.msra.mxu0 0.0
    %351 = vmatprep.subr.mxu0 0.0
    %352 = vmatpush1.xpose.msra.mxu0 0.0
    %353 = vmatprep.subr.mxu0 0.0
    %354 = vmatpush1.xpose.msra.mxu0 0.0
    %355 = vmatprep.subr.mxu0 0.0
    %356 = vmatpush1.xpose.msra.mxu0 0.0
    %357 = vmatprep.subr.mxu0 0.0
    %358 = vmatpush1.xpose.msra.mxu0 0.0
    %359 = vmatprep.subr.mxu0 0.0
    %360 = vmatpush1.xpose.msra.mxu0 0.0
    %361 = vmatprep.subr.mxu0 0.0
    %362 = vmatpush1.xpose.msra.mxu0 0.0
    %363 = vmatprep.subr.mxu0 0.0
    %364 = vmatpush1.xpose.msra.mxu0 0.0
    %365 = vmatprep.subr.mxu0 0.0
    %366 = vmatpush1.xpose.msra.mxu0 0.0
    %367 = vmatprep.subr.mxu0 %v194
    %368 = vmatpush1.xpose.msra.mxu0 %v193
    %369 = vmatprep.subr.mxu0 0.0
    %370 = vmatpush2.xpose.msra.mxu0 0.0
    %371 = vmatprep.subr.mxu0 0.0
    %372 = vmatpush2.xpose.msra.mxu0 0.0
    %373 = vmatprep.subr.mxu0 0.0
    %374 = vmatpush2.xpose.msra.mxu0 0.0
    %375 = vmatprep.subr.mxu0 0.0
    %376 = vmatpush2.xpose.msra.mxu0 0.0
    %377 = vmatprep.subr.mxu0 0.0
    %378 = vmatpush2.xpose.msra.mxu0 0.0
    %379 = vmatprep.subr.mxu0 0.0
    %380 = vmatpush2.xpose.msra.mxu0 0.0
    %381 = vmatprep.subr.mxu0 0.0
    %382 = vmatpush2.xpose.msra.mxu0 0.0
    %383 = vmatprep.subr.mxu0 0.0
    %384 = vmatpush2.xpose.msra.mxu0 0.0
    %385 = vmatprep.subr.mxu0 0.0
    %386 = vmatpush2.xpose.msra.mxu0 0.0
    %387 = vmatprep.subr.mxu0 0.0
    %388 = vmatpush2.xpose.msra.mxu0 0.0
    %389 = vmatprep.subr.mxu0 0.0
    %390 = vmatpush2.xpose.msra.mxu0 0.0
    %391 = vmatprep.subr.mxu0 0.0
    %392 = vmatpush2.xpose.msra.mxu0 0.0
    %393 = vmatprep.subr.mxu0 0.0
    %394 = vmatpush2.xpose.msra.mxu0 0.0
    %395 = vmatprep.subr.mxu0 0.0
    %396 = vmatpush2.xpose.msra.mxu0 0.0
    %397 = vmatprep.subr.mxu0 0.0
    %398 = vmatpush2.xpose.msra.mxu0 0.0
    %399 = vmatprep.subr.mxu0 0.0
    %400 = vmatpush2.xpose.msra.mxu0 0.0
    %401 = vmatprep.mubr.f32.mxu0 %v194
    %402 = vmatmul.mubr.f32.gmra.mxu0 %v193
    %v403 = vpop.f32.mrf.mxu0
    %v404 = vadd.f32 %v334, %v403
    %v405 = vpop.f32.mrf.mxu0
    %406 = vdwg.mxu0
    %407 = vmatprep.subr.mxu0 0.0
    %408 = vmatpush1.xpose.msra.mxu0 0.0
    %409 = vmatprep.subr.mxu0 0.0
    %410 = vmatpush1.xpose.msra.mxu0 0.0
    %411 = vmatprep.subr.mxu0 0.0
    %412 = vmatpush1.xpose.msra.mxu0 0.0
    %413 = vmatprep.subr.mxu0 0.0
    %414 = vmatpush1.xpose.msra.mxu0 0.0
    %415 = vmatprep.subr.mxu0 0.0
    %416 = vmatpush1.xpose.msra.mxu0 0.0
    %417 = vmatprep.subr.mxu0 0.0
    %418 = vmatpush1.xpose.msra.mxu0 0.0
    %419 = vmatprep.subr.mxu0 0.0
    %420 = vmatpush1.xpose.msra.mxu0 0.0
    %421 = vmatprep.subr.mxu0 0.0
    %422 = vmatpush1.xpose.msra.mxu0 0.0
    %423 = vmatprep.subr.mxu0 0.0
    %424 = vmatpush1.xpose.msra.mxu0 0.0
    %425 = vmatprep.subr.mxu0 0.0
    %426 = vmatpush1.xpose.msra.mxu0 0.0
    %427 = vmatprep.subr.mxu0 0.0
    %428 = vmatpush1.xpose.msra.mxu0 0.0
    %429 = vmatprep.subr.mxu0 0.0
    %430 = vmatpush1.xpose.msra.mxu0 0.0
    %431 = vmatprep.subr.mxu0 0.0
    %432 = vmatpush1.xpose.msra.mxu0 0.0
    %433 = vmatprep.subr.mxu0 0.0
    %434 = vmatpush1.xpose.msra.mxu0 0.0
    %435 = vmatprep.subr.mxu0 0.0
    %436 = vmatpush1.xpose.msra.mxu0 0.0
    %437 = vmatprep.subr.mxu0 %v196
    %438 = vmatpush1.xpose.msra.mxu0 %v195
    %439 = vmatprep.subr.mxu0 0.0
    %440 = vmatpush2.xpose.msra.mxu0 0.0
    %441 = vmatprep.subr.mxu0 0.0
    %442 = vmatpush2.xpose.msra.mxu0 0.0
    %443 = vmatprep.subr.mxu0 0.0
    %444 = vmatpush2.xpose.msra.mxu0 0.0
    %445 = vmatprep.subr.mxu0 0.0
    %446 = vmatpush2.xpose.msra.mxu0 0.0
    %447 = vmatprep.subr.mxu0 0.0
    %448 = vmatpush2.xpose.msra.mxu0 0.0
    %449 = vmatprep.subr.mxu0 0.0
    %450 = vmatpush2.xpose.msra.mxu0 0.0
    %451 = vmatprep.subr.mxu0 0.0
    %452 = vmatpush2.xpose.msra.mxu0 0.0
    %453 = vmatprep.subr.mxu0 0.0
    %454 = vmatpush2.xpose.msra.mxu0 0.0
    %455 = vmatprep.subr.mxu0 0.0
    %456 = vmatpush2.xpose.msra.mxu0 0.0
    %457 = vmatprep.subr.mxu0 0.0
    %458 = vmatpush2.xpose.msra.mxu0 0.0
    %459 = vmatprep.subr.mxu0 0.0
    %460 = vmatpush2.xpose.msra.mxu0 0.0
    %461 = vmatprep.subr.mxu0 0.0
    %462 = vmatpush2.xpose.msra.mxu0 0.0
    %463 = vmatprep.subr.mxu0 0.0
    %464 = vmatpush2.xpose.msra.mxu0 0.0
    %465 = vmatprep.subr.mxu0 0.0
    %466 = vmatpush2.xpose.msra.mxu0 0.0
    %467 = vmatprep.subr.mxu0 0.0
    %468 = vmatpush2.xpose.msra.mxu0 0.0
    %469 = vmatprep.subr.mxu0 0.0
    %470 = vmatpush2.xpose.msra.mxu0 0.0
    %471 = vmatprep.mubr.f32.mxu0 %v196
    %472 = vmatmul.mubr.f32.gmra.mxu0 %v195
    %v473 = vpop.f32.mrf.mxu0
    %v474 = vadd.f32 %v404, %v473
    %v475 = vpop.f32.mrf.mxu0
    %476 = vdwg.mxu0
    %v477 = vlaneseq
    %v478 = vshrl.u32 %v477, 7
    %v479 = vlaneseq
    %v480 = vand.u32 %v479, 127
    %vm481 = vcmp.eq.s32.totalorder %v478, %v480
    %v482 = vsel %vm481, 1, 0
    %v483 = vcvt.s32.f32 %v482
    %v484 = vsub.f32 %v474, %v483
    %v485 = vmul.f32 %v484, %v484
    %vm486 = vcmask 64512
    %v487 = vsel %vm486, %v485, 0.0
    %488 = vadd.xlane.f32.xlu0 %v487
    %v489 = vpop.xlane.xlu0 %488
    %v490 = vrot.slane %v489, 4
    %v491 = vadd.f32 %v489, %v490
    %v492 = vrot.slane %v491, 2
    %v493 = vadd.f32 %v491, %v492
    %v494 = vrot.slane %v493, 1
    %v495 = vadd.f32 %v493, %v494
    %s496 = vtos %v495
    %v497 = vstv %s496
    %v498 = vmul.f32 %v497, 0.015625
    %vm499 = vcmask 0
    %500 = vst.msk [vmem:[#allocation19] sm:$0x1] %vm499, %v498
    %v501 = vld [vmem:[%s4] sm:$0xff]
    %v502 = vld [vmem:[%s4 + $0x8] sm:$0xff]
    %s503 = sld [smem:[#allocation3]]
    %s504 = sld [smem:[#allocation7]]
    %s505 = smul.f32 %s503, %s504
    %v506 = vld [vmem:[#allocation10] sm:$0xff]
    %v507 = vld [vmem:[#allocation10 + $0x8] sm:$0xff]
    %v508 = vstv %s505
    %v509 = vmul.f32 %v508, %v506
    %v510 = vmul.f32 %v508, %v507
    %v511 = vadd.f32 %v501, %v509
    %v512 = vadd.f32 %v502, %v510
    %s513 = sld [smem:[#allocation3 + $0x1]]
    %s514 = sld [smem:[#allocation7 + $0x1]]
    %s515 = smul.f32 %s513, %s514
    %s516 = scalar_lea.vmem [#allocation10], 16
    %v517 = vld [vmem:[%s516] sm:$0xff]
    %v518 = vld [vmem:[%s516 + $0x8] sm:$0xff]
    %v519 = vstv %s515
    %v520 = vmul.f32 %v519, %v517
    %v521 = vmul.f32 %v519, %v518
    %v522 = vadd.f32 %v511, %v520
    %v523 = vadd.f32 %v512, %v521
    %s524 = sld [smem:[#allocation3 + $0x2]]
    %s525 = sld [smem:[#allocation7 + $0x2]]
    %s526 = smul.f32 %s524, %s525
    %s527 = scalar_lea.vmem [#allocation10], 32
    %v528 = vld [vmem:[%s527] sm:$0xff]
    %v529 = vld [vmem:[%s527 + $0x8] sm:$0xff]
    %v530 = vstv %s526
    %v531 = vmul.f32 %v530, %v528
    %v532 = vmul.f32 %v530, %v529
    %v533 = vadd.f32 %v522, %v531
    %v534 = vadd.f32 %v523, %v532
    %s535 = sld [smem:[#allocation3 + $0x3]]
    %s536 = sld [smem:[#allocation7 + $0x3]]
    %s537 = smul.f32 %s535, %s536
    %s538 = scalar_lea.vmem [#allocation10], 48
    %v539 = vld [vmem:[%s538] sm:$0xff]
    %v540 = vld [vmem:[%s538 + $0x8] sm:$0xff]
    %v541 = vstv %s537
    %v542 = vmul.f32 %v541, %v539
    %v543 = vmul.f32 %v541, %v540
    %v544 = vadd.f32 %v533, %v542
    %v545 = vadd.f32 %v534, %v543
    %s546 = sld [smem:[#allocation3 + $0x4]]
    %s547 = sld [smem:[#allocation7 + $0x4]]
    %s548 = smul.f32 %s546, %s547
    %s549 = scalar_lea.vmem [#allocation10], 64
    %v550 = vld [vmem:[%s549] sm:$0xff]
    %v551 = vld [vmem:[%s549 + $0x8] sm:$0xff]
    %v552 = vstv %s548
    %v553 = vmul.f32 %v552, %v550
    %v554 = vmul.f32 %v552, %v551
    %v555 = vadd.f32 %v544, %v553
    %v556 = vadd.f32 %v545, %v554
    %s557 = sld [smem:[#allocation3 + $0x5]]
    %s558 = sld [smem:[#allocation7 + $0x5]]
    %s559 = smul.f32 %s557, %s558
    %s560 = scalar_lea.vmem [#allocation10], 80
    %v561 = vld [vmem:[%s560] sm:$0xff]
    %v562 = vld [vmem:[%s560 + $0x8] sm:$0xff]
    %v563 = vstv %s559
    %v564 = vmul.f32 %v563, %v561
    %v565 = vmul.f32 %v563, %v562
    %v566 = vadd.f32 %v555, %v564
    %v567 = vadd.f32 %v556, %v565
    %s568 = sld [smem:[#allocation3 + $0x6]]
    %s569 = sld [smem:[#allocation7 + $0x6]]
    %s570 = smul.f32 %s568, %s569
    %s571 = scalar_lea.vmem [#allocation10], 96
    %v572 = vld [vmem:[%s571] sm:$0xff]
    %v573 = vld [vmem:[%s571 + $0x8] sm:$0xff]
    %v574 = vstv %s570
    %v575 = vmul.f32 %v574, %v572
    %v576 = vmul.f32 %v574, %v573
    %v577 = vadd.f32 %v566, %v575
    %v578 = vadd.f32 %v567, %v576
    %s579 = sld [smem:[#allocation3 + $0x7]]
    %s580 = sld [smem:[#allocation7 + $0x7]]
    %s581 = smul.f32 %s579, %s580
    %s582 = scalar_lea.vmem [#allocation10], 112
    %v583 = vld [vmem:[%s582] sm:$0xff]
    %v584 = vld [vmem:[%s582 + $0x8] sm:$0xff]
    %v585 = vstv %s581
    %v586 = vmul.f32 %v585, %v583
    %v587 = vmul.f32 %v585, %v584
    %v588 = vadd.f32 %v577, %v586
    %v589 = vadd.f32 %v578, %v587
    %vm590 = vcmask 523264
    %591 = vst.msk [vmem:[#allocation2] sm:$0xff] %vm590, %v588
    %592 = vst.msk [vmem:[#allocation2 + $0x8] sm:$0xff] %vm590, %v589
    %s593 = sld [smem:[#allocation3 + $0x80]]
    %s594 = sld [smem:[#allocation7]]
    %s595 = smul.f32 %s593, %s594
    %v596 = vld [vmem:[#allocation10] sm:$0xff]
    %v597 = vld [vmem:[#allocation10 + $0x8] sm:$0xff]
    %v598 = vstv %s595
    %v599 = vmul.f32 %v598, %v596
    %v600 = vmul.f32 %v598, %v597
    %v601 = vadd.f32 %v501, %v599
    %v602 = vadd.f32 %v502, %v600
    %s603 = sld [smem:[#allocation3 + $0x81]]
    %s604 = sld [smem:[#allocation7 + $0x1]]
    %s605 = smul.f32 %s603, %s604
    %v606 = vld [vmem:[%s516] sm:$0xff]
    %v607 = vld [vmem:[%s516 + $0x8] sm:$0xff]
    %v608 = vstv %s605
    %v609 = vmul.f32 %v608, %v606
    %v610 = vmul.f32 %v608, %v607
    %v611 = vadd.f32 %v601, %v609
    %v612 = vadd.f32 %v602, %v610
    %s613 = sld [smem:[#allocation3 + $0x82]]
    %s614 = sld [smem:[#allocation7 + $0x2]]
    %s615 = smul.f32 %s613, %s614
    %v616 = vld [vmem:[%s527] sm:$0xff]
    %v617 = vld [vmem:[%s527 + $0x8] sm:$0xff]
    %v618 = vstv %s615
    %v619 = vmul.f32 %v618, %v616
    %v620 = vmul.f32 %v618, %v617
    %v621 = vadd.f32 %v611, %v619
    %v622 = vadd.f32 %v612, %v620
    %s623 = sld [smem:[#allocation3 + $0x83]]
    %s624 = sld [smem:[#allocation7 + $0x3]]
    %s625 = smul.f32 %s623, %s624
    %v626 = vld [vmem:[%s538] sm:$0xff]
    %v627 = vld [vmem:[%s538 + $0x8] sm:$0xff]
    %v628 = vstv %s625
    %v629 = vmul.f32 %v628, %v626
    %v630 = vmul.f32 %v628, %v627
    %v631 = vadd.f32 %v621, %v629
    %v632 = vadd.f32 %v622, %v630
    %s633 = sld [smem:[#allocation3 + $0x84]]
    %s634 = sld [smem:[#allocation7 + $0x4]]
    %s635 = smul.f32 %s633, %s634
    %v636 = vld [vmem:[%s549] sm:$0xff]
    %v637 = vld [vmem:[%s549 + $0x8] sm:$0xff]
    %v638 = vstv %s635
    %v639 = vmul.f32 %v638, %v636
    %v640 = vmul.f32 %v638, %v637
    %v641 = vadd.f32 %v631, %v639
    %v642 = vadd.f32 %v632, %v640
    %s643 = sld [smem:[#allocation3 + $0x85]]
    %s644 = sld [smem:[#allocation7 + $0x5]]
    %s645 = smul.f32 %s643, %s644
    %v646 = vld [vmem:[%s560] sm:$0xff]
    %v647 = vld [vmem:[%s560 + $0x8] sm:$0xff]
    %v648 = vstv %s645
    %v649 = vmul.f32 %v648, %v646
    %v650 = vmul.f32 %v648, %v647
    %v651 = vadd.f32 %v641, %v649
    %v652 = vadd.f32 %v642, %v650
    %s653 = sld [smem:[#allocation3 + $0x86]]
    %s654 = sld [smem:[#allocation7 + $0x6]]
    %s655 = smul.f32 %s653, %s654
    %v656 = vld [vmem:[%s571] sm:$0xff]
    %v657 = vld [vmem:[%s571 + $0x8] sm:$0xff]
    %v658 = vstv %s655
    %v659 = vmul.f32 %v658, %v656
    %v660 = vmul.f32 %v658, %v657
    %v661 = vadd.f32 %v651, %v659
    %v662 = vadd.f32 %v652, %v660
    %s663 = sld [smem:[#allocation3 + $0x87]]
    %s664 = sld [smem:[#allocation7 + $0x7]]
    %s665 = smul.f32 %s663, %s664
    %v666 = vld [vmem:[%s582] sm:$0xff]
    %v667 = vld [vmem:[%s582 + $0x8] sm:$0xff]
    %v668 = vstv %s665
    %v669 = vmul.f32 %v668, %v666
    %v670 = vmul.f32 %v668, %v667
    %v671 = vadd.f32 %v661, %v669
    %v672 = vadd.f32 %v662, %v670
    %673 = vst.msk [vmem:[#allocation2 + $0x10] sm:$0xff] %vm590, %v671
    %674 = vst.msk [vmem:[#allocation2 + $0x18] sm:$0xff] %vm590, %v672
    %v675 = vld [vmem:[#allocation2] sm:$0xff]
    %v676 = vld [vmem:[#allocation2 + $0x8] sm:$0xff]
    %v677 = vld [vmem:[#allocation2 + $0x10] sm:$0xff]
    %v678 = vld [vmem:[#allocation2 + $0x18] sm:$0xff]
    %v679 = vld [vmem:[%s5] sm:$0xff]
    %v680 = vld [vmem:[%s5 + $0x8] sm:$0xff]
    %v681 = vld [vmem:[%s5 + $0x10] sm:$0xff]
    %v682 = vld [vmem:[%s5 + $0x18] sm:$0xff]
    %v683 = vld [vmem:[#allocation12] sm:$0xff]
    %v684 = vld [vmem:[#allocation12 + $0x8] sm:$0xff]
    %v685 = vld [vmem:[#allocation12 + $0x10] sm:$0xff]
    %v686 = vld [vmem:[#allocation12 + $0x18] sm:$0xff]
    %v687 = vld [vmem:[#allocation12 + $0x20] sm:$0xff]
    %v688 = vld [vmem:[#allocation12 + $0x28] sm:$0xff]
    %v689 = vld [vmem:[#allocation12 + $0x30] sm:$0xff]
    %v690 = vld [vmem:[#allocation12 + $0x38] sm:$0xff]
    %v692 = vsel %vm590, %v675, 0
    %v695 = vsel %vm590, %v676, 0
    %v698 = vsel %vm590, %v677, 0
    %v701 = vsel %vm590, %v678, 0
    %703 = vmatprep.subr.mxu0 0.0
    %704 = vmatpush1.msra.mxu0 0.0
    %705 = vmatprep.subr.mxu0 0.0
    %706 = vmatpush1.msra.mxu0 0.0
    %707 = vmatprep.subr.mxu0 0.0
    %708 = vmatpush1.msra.mxu0 0.0
    %709 = vmatprep.subr.mxu0 0.0
    %710 = vmatpush1.msra.mxu0 0.0
    %711 = vmatprep.subr.mxu0 0.0
    %712 = vmatpush1.msra.mxu0 0.0
    %713 = vmatprep.subr.mxu0 0.0
    %714 = vmatpush1.msra.mxu0 0.0
    %715 = vmatprep.subr.mxu0 0.0
    %716 = vmatpush1.msra.mxu0 0.0
    %717 = vmatprep.subr.mxu0 0.0
    %718 = vmatpush1.msra.mxu0 0.0
    %719 = vmatprep.subr.mxu0 0.0
    %720 = vmatpush1.msra.mxu0 %v690
    %721 = vmatprep.subr.mxu0 0.0
    %722 = vmatpush1.msra.mxu0 %v689
    %723 = vmatprep.subr.mxu0 0.0
    %724 = vmatpush1.msra.mxu0 %v688
    %725 = vmatprep.subr.mxu0 0.0
    %726 = vmatpush1.msra.mxu0 %v687
    %727 = vmatprep.subr.mxu0 0.0
    %728 = vmatpush1.msra.mxu0 %v686
    %729 = vmatprep.subr.mxu0 0.0
    %730 = vmatpush1.msra.mxu0 %v685
    %731 = vmatprep.subr.mxu0 0.0
    %732 = vmatpush1.msra.mxu0 %v684
    %733 = vmatprep.subr.mxu0 0.0
    %734 = vmatpush1.msra.mxu0 %v683
    %735 = vmatprep.subr.mxu0 0.0
    %736 = vmatpush2.msra.mxu0 0.0
    %737 = vmatprep.subr.mxu0 0.0
    %738 = vmatpush2.msra.mxu0 0.0
    %739 = vmatprep.subr.mxu0 0.0
    %740 = vmatpush2.msra.mxu0 0.0
    %741 = vmatprep.subr.mxu0 0.0
    %742 = vmatpush2.msra.mxu0 0.0
    %743 = vmatprep.subr.mxu0 0.0
    %744 = vmatpush2.msra.mxu0 0.0
    %745 = vmatprep.subr.mxu0 0.0
    %746 = vmatpush2.msra.mxu0 0.0
    %747 = vmatprep.subr.mxu0 0.0
    %748 = vmatpush2.msra.mxu0 0.0
    %749 = vmatprep.subr.mxu0 0.0
    %750 = vmatpush2.msra.mxu0 0.0
    %751 = vmatprep.subr.mxu0 0.0
    %752 = vmatpush2.msra.mxu0 0.0
    %753 = vmatprep.subr.mxu0 0.0
    %754 = vmatpush2.msra.mxu0 0.0
    %755 = vmatprep.subr.mxu0 0.0
    %756 = vmatpush2.msra.mxu0 0.0
    %757 = vmatprep.subr.mxu0 0.0
    %758 = vmatpush2.msra.mxu0 0.0
    %759 = vmatprep.subr.mxu0 0.0
    %760 = vmatpush2.msra.mxu0 0.0
    %761 = vmatprep.subr.mxu0 0.0
    %762 = vmatpush2.msra.mxu0 0.0
    %763 = vmatprep.subr.mxu0 0.0
    %764 = vmatpush2.msra.mxu0 0.0
    %765 = vmatprep.subr.mxu0 0.0
    %766 = vmatpush2.msra.mxu0 0.0
    %767 = vmatprep.mubr.f32.mxu0 0.0
    %768 = vmatmul.mubr.f32.gmra.mxu0 %v692
    %v769 = vpop.f32.mrf.mxu0
    %v770 = vadd.f32 0.0, %v769
    %v771 = vpop.f32.mrf.mxu0
    %772 = vmatprep.mubr.f32.mxu0 0.0
    %773 = vmatmul.mubr.f32.gmra.mxu0 %v695
    %v774 = vpop.f32.mrf.mxu0
    %v775 = vadd.f32 0.0, %v774
    %v776 = vpop.f32.mrf.mxu0
    %777 = vmatprep.mubr.f32.mxu0 0.0
    %778 = vmatmul.mubr.f32.gmra.mxu0 %v698
    %v779 = vpop.f32.mrf.mxu0
    %v780 = vadd.f32 0.0, %v779
    %v781 = vpop.f32.mrf.mxu0
    %782 = vmatprep.mubr.f32.mxu0 0.0
    %783 = vmatmul.mubr.f32.gmra.mxu0 %v701
    %v784 = vpop.f32.mrf.mxu0
    %v785 = vadd.f32 0.0, %v784
    %v786 = vpop.f32.mrf.mxu0
    %787 = vdwg.mxu0
    %v788 = vadd.f32 %v679, %v770
    %v789 = vadd.f32 %v680, %v775
    %v790 = vadd.f32 %v681, %v780
    %v791 = vadd.f32 %v682, %v785
    %v792 = vld [vmem:[%s7] sm:$0x1]
    %v794 = vlaneseq
    %v795 = vshrl.u32 %v794, 7
    %v796 = vsub.s32 0, %v795
    %v797 = vrot.slane %v792, %v796
    %v799 = vadd.f32 %v788, %v797
    %v800 = vadd.f32 %v789, %v797
    %v801 = vadd.f32 %v790, %v797
    %v802 = vadd.f32 %v791, %v797
    %v803 = vld [vmem:[#allocation13] sm:$0xff]
    %v804 = vld [vmem:[#allocation13 + $0x8] sm:$0xff]
    %v805 = vld [vmem:[#allocation13 + $0x10] sm:$0xff]
    %v806 = vld [vmem:[#allocation13 + $0x18] sm:$0xff]
    %v807 = vld [vmem:[#allocation13 + $0x20] sm:$0xff]
    %v808 = vld [vmem:[#allocation13 + $0x28] sm:$0xff]
    %v809 = vld [vmem:[#allocation13 + $0x30] sm:$0xff]
    %v810 = vld [vmem:[#allocation13 + $0x38] sm:$0xff]
    %v811 = vsel %vm590, %v799, 0.0
    %v812 = vsel %vm590, %v800, 0.0
    %v813 = vadd.f32 %v811, %v812
    %v814 = vsel %vm590, %v801, 0.0
    %v815 = vadd.f32 %v813, %v814
    %v816 = vsel %vm590, %v802, 0.0
    %v817 = vadd.f32 %v815, %v816
    %v818 = vrot.slane %v817, 4
    %v819 = vadd.f32 %v817, %v818
    %v820 = vrot.slane %v819, 2
    %v821 = vadd.f32 %v819, %v820
    %v822 = vrot.slane %v821, 1
    %v823 = vadd.f32 %v821, %v822
    %v824 = vmul.f32 %v799, %v799
    %v825 = vmul.f32 %v800, %v800
    %v826 = vmul.f32 %v801, %v801
    %v827 = vmul.f32 %v802, %v802
    %v828 = vsel %vm590, %v824, 0.0
    %v829 = vsel %vm590, %v825, 0.0
    %v830 = vadd.f32 %v828, %v829
    %v831 = vsel %vm590, %v826, 0.0
    %v832 = vadd.f32 %v830, %v831
    %v833 = vsel %vm590, %v827, 0.0
    %v834 = vadd.f32 %v832, %v833
    %v835 = vrot.slane %v834, 4
    %v836 = vadd.f32 %v834, %v835
    %v837 = vrot.slane %v836, 2
    %v838 = vadd.f32 %v836, %v837
    %v839 = vrot.slane %v838, 1
    %v840 = vadd.f32 %v838, %v839
    %v842 = vsel %vm590, %v823, 0
    %844 = vmatprep.subr.mxu0 0.0
    %845 = vmatpush1.msra.mxu0 0.0
    %846 = vmatprep.subr.mxu0 0.0
    %847 = vmatpush1.msra.mxu0 0.0
    %848 = vmatprep.subr.mxu0 0.0
    %849 = vmatpush1.msra.mxu0 0.0
    %850 = vmatprep.subr.mxu0 0.0
    %851 = vmatpush1.msra.mxu0 0.0
    %852 = vmatprep.subr.mxu0 0.0
    %853 = vmatpush1.msra.mxu0 0.0
    %854 = vmatprep.subr.mxu0 0.0
    %855 = vmatpush1.msra.mxu0 0.0
    %856 = vmatprep.subr.mxu0 0.0
    %857 = vmatpush1.msra.mxu0 0.0
    %858 = vmatprep.subr.mxu0 0.0
    %859 = vmatpush1.msra.mxu0 0.0
    %860 = vmatprep.subr.mxu0 0.0
    %861 = vmatpush1.msra.mxu0 %v810
    %862 = vmatprep.subr.mxu0 0.0
    %863 = vmatpush1.msra.mxu0 %v809
    %864 = vmatprep.subr.mxu0 0.0
    %865 = vmatpush1.msra.mxu0 %v808
    %866 = vmatprep.subr.mxu0 0.0
    %867 = vmatpush1.msra.mxu0 %v807
    %868 = vmatprep.subr.mxu0 0.0
    %869 = vmatpush1.msra.mxu0 %v806
    %870 = vmatprep.subr.mxu0 0.0
    %871 = vmatpush1.msra.mxu0 %v805
    %872 = vmatprep.subr.mxu0 0.0
    %873 = vmatpush1.msra.mxu0 %v804
    %874 = vmatprep.subr.mxu0 0.0
    %875 = vmatpush1.msra.mxu0 %v803
    %876 = vmatprep.subr.mxu0 0.0
    %877 = vmatpush2.msra.mxu0 0.0
    %878 = vmatprep.subr.mxu0 0.0
    %879 = vmatpush2.msra.mxu0 0.0
    %880 = vmatprep.subr.mxu0 0.0
    %881 = vmatpush2.msra.mxu0 0.0
    %882 = vmatprep.subr.mxu0 0.0
    %883 = vmatpush2.msra.mxu0 0.0
    %884 = vmatprep.subr.mxu0 0.0
    %885 = vmatpush2.msra.mxu0 0.0
    %886 = vmatprep.subr.mxu0 0.0
    %887 = vmatpush2.msra.mxu0 0.0
    %888 = vmatprep.subr.mxu0 0.0
    %889 = vmatpush2.msra.mxu0 0.0
    %890 = vmatprep.subr.mxu0 0.0
    %891 = vmatpush2.msra.mxu0 0.0
    %892 = vmatprep.subr.mxu0 0.0
    %893 = vmatpush2.msra.mxu0 0.0
    %894 = vmatprep.subr.mxu0 0.0
    %895 = vmatpush2.msra.mxu0 0.0
    %896 = vmatprep.subr.mxu0 0.0
    %897 = vmatpush2.msra.mxu0 0.0
    %898 = vmatprep.subr.mxu0 0.0
    %899 = vmatpush2.msra.mxu0 0.0
    %900 = vmatprep.subr.mxu0 0.0
    %901 = vmatpush2.msra.mxu0 0.0
    %902 = vmatprep.subr.mxu0 0.0
    %903 = vmatpush2.msra.mxu0 0.0
    %904 = vmatprep.subr.mxu0 0.0
    %905 = vmatpush2.msra.mxu0 0.0
    %906 = vmatprep.subr.mxu0 0.0
    %907 = vmatpush2.msra.mxu0 0.0
    %908 = vmatprep.mubr.f32.mxu0 0.0
    %909 = vmatmul.mubr.f32.gmra.mxu0 %v842
    %v910 = vpop.f32.mrf.mxu0
    %v911 = vadd.f32 0.0, %v910
    %v912 = vpop.f32.mrf.mxu0
    %913 = vdwg.mxu0
    %v914 = vmul.f32 %v911, 0.001953125
    %v916 = vsel %vm590, %v840, 0
    %918 = vmatprep.subr.mxu0 0.0
    %919 = vmatpush1.msra.mxu0 0.0
    %920 = vmatprep.subr.mxu0 0.0
    %921 = vmatpush1.msra.mxu0 0.0
    %922 = vmatprep.subr.mxu0 0.0
    %923 = vmatpush1.msra.mxu0 0.0
    %924 = vmatprep.subr.mxu0 0.0
    %925 = vmatpush1.msra.mxu0 0.0
    %926 = vmatprep.subr.mxu0 0.0
    %927 = vmatpush1.msra.mxu0 0.0
    %928 = vmatprep.subr.mxu0 0.0
    %929 = vmatpush1.msra.mxu0 0.0
    %930 = vmatprep.subr.mxu0 0.0
    %931 = vmatpush1.msra.mxu0 0.0
    %932 = vmatprep.subr.mxu0 0.0
    %933 = vmatpush1.msra.mxu0 0.0
    %934 = vmatprep.subr.mxu0 0.0
    %935 = vmatpush1.msra.mxu0 %v810
    %936 = vmatprep.subr.mxu0 0.0
    %937 = vmatpush1.msra.mxu0 %v809
    %938 = vmatprep.subr.mxu0 0.0
    %939 = vmatpush1.msra.mxu0 %v808
    %940 = vmatprep.subr.mxu0 0.0
    %941 = vmatpush1.msra.mxu0 %v807
    %942 = vmatprep.subr.mxu0 0.0
    %943 = vmatpush1.msra.mxu0 %v806
    %944 = vmatprep.subr.mxu0 0.0
    %945 = vmatpush1.msra.mxu0 %v805
    %946 = vmatprep.subr.mxu0 0.0
    %947 = vmatpush1.msra.mxu0 %v804
    %948 = vmatprep.subr.mxu0 0.0
    %949 = vmatpush1.msra.mxu0 %v803
    %950 = vmatprep.subr.mxu0 0.0
    %951 = vmatpush2.msra.mxu0 0.0
    %952 = vmatprep.subr.mxu0 0.0
    %953 = vmatpush2.msra.mxu0 0.0
    %954 = vmatprep.subr.mxu0 0.0
    %955 = vmatpush2.msra.mxu0 0.0
    %956 = vmatprep.subr.mxu0 0.0
    %957 = vmatpush2.msra.mxu0 0.0
    %958 = vmatprep.subr.mxu0 0.0
    %959 = vmatpush2.msra.mxu0 0.0
    %960 = vmatprep.subr.mxu0 0.0
    %961 = vmatpush2.msra.mxu0 0.0
    %962 = vmatprep.subr.mxu0 0.0
    %963 = vmatpush2.msra.mxu0 0.0
    %964 = vmatprep.subr.mxu0 0.0
    %965 = vmatpush2.msra.mxu0 0.0
    %966 = vmatprep.subr.mxu0 0.0
    %967 = vmatpush2.msra.mxu0 0.0
    %968 = vmatprep.subr.mxu0 0.0
    %969 = vmatpush2.msra.mxu0 0.0
    %970 = vmatprep.subr.mxu0 0.0
    %971 = vmatpush2.msra.mxu0 0.0
    %972 = vmatprep.subr.mxu0 0.0
    %973 = vmatpush2.msra.mxu0 0.0
    %974 = vmatprep.subr.mxu0 0.0
    %975 = vmatpush2.msra.mxu0 0.0
    %976 = vmatprep.subr.mxu0 0.0
    %977 = vmatpush2.msra.mxu0 0.0
    %978 = vmatprep.subr.mxu0 0.0
    %979 = vmatpush2.msra.mxu0 0.0
    %980 = vmatprep.subr.mxu0 0.0
    %981 = vmatpush2.msra.mxu0 0.0
    %982 = vmatprep.mubr.f32.mxu0 0.0
    %983 = vmatmul.mubr.f32.gmra.mxu0 %v916
    %v984 = vpop.f32.mrf.mxu0
    %v985 = vadd.f32 0.0, %v984
    %v986 = vpop.f32.mrf.mxu0
    %987 = vdwg.mxu0
    %v988 = vmul.f32 %v985, 0.001953125
    %v989 = vmul.f32 %v914, %v914
    %v990 = vsub.f32 %v988, %v989
    %v991 = vadd.f32 %v990, 1e-05
    %v992 = vrsqrt.pop %v991
    %v993 = vld [vmem:[%s8] sm:$0x1]
    %v994 = vmul.f32 %v992, %v993
    %v995 = vlaneseq
    %v996 = vshrl.u32 %v995, 7
    %v997 = vsub.s32 0, %v996
    %v998 = vrot.slane %v914, %v997
    %v999 = vsub.f32 %v799, %v998
    %v1000 = vsub.f32 %v800, %v998
    %v1001 = vsub.f32 %v801, %v998
    %v1002 = vsub.f32 %v802, %v998
    %v1003 = vlaneseq
    %v1004 = vshrl.u32 %v1003, 7
    %v1005 = vsub.s32 0, %v1004
    %v1006 = vrot.slane %v994, %v1005
    %v1007 = vmul.f32 %v999, %v1006
    %v1008 = vmul.f32 %v1000, %v1006
    %v1009 = vmul.f32 %v1001, %v1006
    %v1010 = vmul.f32 %v1002, %v1006
    %v1011 = vld [vmem:[%s9] sm:$0x1]
    %v1013 = vlaneseq
    %v1014 = vshrl.u32 %v1013, 7
    %v1015 = vsub.s32 0, %v1014
    %v1016 = vrot.slane %v1011, %v1015
    %v1018 = vadd.f32 %v1007, %v1016
    %v1019 = vadd.f32 %v1008, %v1016
    %v1020 = vadd.f32 %v1009, %v1016
    %v1021 = vadd.f32 %v1010, %v1016
    %vm1022 = vcmp.gt.f32.partialorder %v1018, 0.0
    %vm1023 = vcmp.gt.f32.partialorder %v1019, 0.0
    %vm1024 = vcmp.gt.f32.partialorder %v1020, 0.0
    %vm1025 = vcmp.gt.f32.partialorder %v1021, 0.0
    %v1026 = vmul.f32 %v1018, 0.2
    %v1027 = vmul.f32 %v1019, 0.2
    %v1028 = vmul.f32 %v1020, 0.2
    %v1029 = vmul.f32 %v1021, 0.2
    %v1030 = vsel %vm1022, %v1018, %v1026
    %v1031 = vsel %vm1023, %v1019, %v1027
    %v1032 = vsel %vm1024, %v1020, %v1028
    %v1033 = vsel %vm1025, %v1021, %v1029
    %v1034 = vld [vmem:[#allocation15] sm:$0xff]
    %v1035 = vld [vmem:[#allocation15 + $0x8] sm:$0xff]
    %v1036 = vld [vmem:[#allocation15 + $0x10] sm:$0xff]
    %v1037 = vld [vmem:[#allocation15 + $0x18] sm:$0xff]
    %v1038 = vld [vmem:[#allocation15 + $0x20] sm:$0xff]
    %v1039 = vld [vmem:[#allocation15 + $0x28] sm:$0xff]
    %v1040 = vld [vmem:[#allocation15 + $0x30] sm:$0xff]
    %v1041 = vld [vmem:[#allocation15 + $0x38] sm:$0xff]
    %v1042 = vld [vmem:[#allocation15 + $0x40] sm:$0xff]
    %v1043 = vld [vmem:[#allocation15 + $0x48] sm:$0xff]
    %v1044 = vld [vmem:[#allocation15 + $0x50] sm:$0xff]
    %v1045 = vld [vmem:[#allocation15 + $0x58] sm:$0xff]
    %v1046 = vld [vmem:[#allocation15 + $0x60] sm:$0xff]
    %v1047 = vld [vmem:[#allocation15 + $0x68] sm:$0xff]
    %v1048 = vld [vmem:[#allocation15 + $0x70] sm:$0xff]
    %v1049 = vld [vmem:[#allocation15 + $0x78] sm:$0xff]
    %v1050 = vld [vmem:[#allocation16] sm:$0xff]
    %v1051 = vld [vmem:[#allocation16 + $0x8] sm:$0xff]
    %v1052 = vld [vmem:[#allocation16 + $0x10] sm:$0xff]
    %v1053 = vld [vmem:[#allocation16 + $0x18] sm:$0xff]
    %v1054 = vld [vmem:[#allocation16 + $0x20] sm:$0xff]
    %v1055 = vld [vmem:[#allocation16 + $0x28] sm:$0xff]
    %v1056 = vld [vmem:[#allocation16 + $0x30] sm:$0xff]
    %v1057 = vld [vmem:[#allocation16 + $0x38] sm:$0xff]
    %v1058 = vld [vmem:[#allocation16 + $0x40] sm:$0xff]
    %v1059 = vld [vmem:[#allocation16 + $0x48] sm:$0xff]
    %v1060 = vld [vmem:[#allocation16 + $0x50] sm:$0xff]
    %v1061 = vld [vmem:[#allocation16 + $0x58] sm:$0xff]
    %v1062 = vld [vmem:[#allocation16 + $0x60] sm:$0xff]
    %v1063 = vld [vmem:[#allocation16 + $0x68] sm:$0xff]
    %v1064 = vld [vmem:[#allocation16 + $0x70] sm:$0xff]
    %v1065 = vld [vmem:[#allocation16 + $0x78] sm:$0xff]
    %1066 = vmatprep.subr.mxu0 0.0
    %1067 = vmatpush1.msra.mxu0 0.0
    %1068 = vmatprep.subr.mxu0 0.0
    %1069 = vmatpush1.msra.mxu0 0.0
    %1070 = vmatprep.subr.mxu0 0.0
    %1071 = vmatpush1.msra.mxu0 0.0
    %1072 = vmatprep.subr.mxu0 0.0
    %1073 = vmatpush1.msra.mxu0 0.0
    %1074 = vmatprep.subr.mxu0 0.0
    %1075 = vmatpush1.msra.mxu0 0.0
    %1076 = vmatprep.subr.mxu0 0.0
    %1077 = vmatpush1.msra.mxu0 0.0
    %1078 = vmatprep.subr.mxu0 0.0
    %1079 = vmatpush1.msra.mxu0 0.0
    %1080 = vmatprep.subr.mxu0 0.0
    %1081 = vmatpush1.msra.mxu0 0.0
    %1082 = vmatprep.subr.mxu0 %v1065
    %1083 = vmatpush1.msra.mxu0 %v1064
    %1084 = vmatprep.subr.mxu0 %v1063
    %1085 = vmatpush1.msra.mxu0 %v1062
    %1086 = vmatprep.subr.mxu0 %v1061
    %1087 = vmatpush1.msra.mxu0 %v1060
    %1088 = vmatprep.subr.mxu0 %v1059
    %1089 = vmatpush1.msra.mxu0 %v1058
    %1090 = vmatprep.subr.mxu0 %v1057
    %1091 = vmatpush1.msra.mxu0 %v1056
    %1092 = vmatprep.subr.mxu0 %v1055
    %1093 = vmatpush1.msra.mxu0 %v1054
    %1094 = vmatprep.subr.mxu0 %v1053
    %1095 = vmatpush1.msra.mxu0 %v1052
    %1096 = vmatprep.subr.mxu0 %v1051
    %1097 = vmatpush1.msra.mxu0 %v1050
    %1098 = vmatprep.subr.mxu0 0.0
    %1099 = vmatpush2.msra.mxu0 0.0
    %1100 = vmatprep.subr.mxu0 0.0
    %1101 = vmatpush2.msra.mxu0 0.0
    %1102 = vmatprep.subr.mxu0 0.0
    %1103 = vmatpush2.msra.mxu0 0.0
    %1104 = vmatprep.subr.mxu0 0.0
    %1105 = vmatpush2.msra.mxu0 0.0
    %1106 = vmatprep.subr.mxu0 0.0
    %1107 = vmatpush2.msra.mxu0 0.0
    %1108 = vmatprep.subr.mxu0 0.0
    %1109 = vmatpush2.msra.mxu0 0.0
    %1110 = vmatprep.subr.mxu0 0.0
    %1111 = vmatpush2.msra.mxu0 0.0
    %1112 = vmatprep.subr.mxu0 0.0
    %1113 = vmatpush2.msra.mxu0 0.0
    %1114 = vmatprep.subr.mxu0 0.0
    %1115 = vmatpush2.msra.mxu0 0.0
    %1116 = vmatprep.subr.mxu0 0.0
    %1117 = vmatpush2.msra.mxu0 0.0
    %1118 = vmatprep.subr.mxu0 0.0
    %1119 = vmatpush2.msra.mxu0 0.0
    %1120 = vmatprep.subr.mxu0 0.0
    %1121 = vmatpush2.msra.mxu0 0.0
    %1122 = vmatprep.subr.mxu0 0.0
    %1123 = vmatpush2.msra.mxu0 0.0
    %1124 = vmatprep.subr.mxu0 0.0
    %1125 = vmatpush2.msra.mxu0 0.0
    %1126 = vmatprep.subr.mxu0 0.0
    %1127 = vmatpush2.msra.mxu0 0.0
    %1128 = vmatprep.subr.mxu0 0.0
    %1129 = vmatpush2.msra.mxu0 0.0
    %1130 = vmatprep.mubr.f32.mxu0 0.0
    %1131 = vmatmul.mubr.f32.gmra.mxu0 %v692
    %v1132 = vpop.f32.mrf.mxu0
    %v1133 = vadd.f32 0.0, %v1132
    %v1134 = vpop.f32.mrf.mxu0
    %v1135 = vadd.f32 0.0, %v1134
    %1136 = vmatprep.mubr.f32.mxu0 0.0
    %1137 = vmatmul.mubr.f32.gmra.mxu0 %v695
    %v1138 = vpop.f32.mrf.mxu0
    %v1139 = vadd.f32 0.0, %v1138
    %v1140 = vpop.f32.mrf.mxu0
    %v1141 = vadd.f32 0.0, %v1140
    %1142 = vmatprep.mubr.f32.mxu0 0.0
    %1143 = vmatmul.mubr.f32.gmra.mxu0 %v698
    %v1144 = vpop.f32.mrf.mxu0
    %v1145 = vadd.f32 0.0, %v1144
    %v1146 = vpop.f32.mrf.mxu0
    %v1147 = vadd.f32 0.0, %v1146
    %1148 = vmatprep.mubr.f32.mxu0 0.0
    %1149 = vmatmul.mubr.f32.gmra.mxu0 %v701
    %v1150 = vpop.f32.mrf.mxu0
    %v1151 = vadd.f32 0.0, %v1150
    %v1152 = vpop.f32.mrf.mxu0
    %v1153 = vadd.f32 0.0, %v1152
    %1154 = vdwg.mxu0
    %v1156 = vsel %vm590, %v1030, 0
    %v1159 = vsel %vm590, %v1031, 0
    %v1162 = vsel %vm590, %v1032, 0
    %v1165 = vsel %vm590, %v1033, 0
    %1167 = vmatprep.subr.mxu0 0.0
    %1168 = vmatpush1.msra.mxu0 0.0
    %1169 = vmatprep.subr.mxu0 0.0
    %1170 = vmatpush1.msra.mxu0 0.0
    %1171 = vmatprep.subr.mxu0 0.0
    %1172 = vmatpush1.msra.mxu0 0.0
    %1173 = vmatprep.subr.mxu0 0.0
    %1174 = vmatpush1.msra.mxu0 0.0
    %1175 = vmatprep.subr.mxu0 0.0
    %1176 = vmatpush1.msra.mxu0 0.0
    %1177 = vmatprep.subr.mxu0 0.0
    %1178 = vmatpush1.msra.mxu0 0.0
    %1179 = vmatprep.subr.mxu0 0.0
    %1180 = vmatpush1.msra.mxu0 0.0
    %1181 = vmatprep.subr.mxu0 0.0
    %1182 = vmatpush1.msra.mxu0 0.0
    %1183 = vmatprep.subr.mxu0 %v1049
    %1184 = vmatpush1.msra.mxu0 %v1048
    %1185 = vmatprep.subr.mxu0 %v1047
    %1186 = vmatpush1.msra.mxu0 %v1046
    %1187 = vmatprep.subr.mxu0 %v1045
    %1188 = vmatpush1.msra.mxu0 %v1044
    %1189 = vmatprep.subr.mxu0 %v1043
    %1190 = vmatpush1.msra.mxu0 %v1042
    %1191 = vmatprep.subr.mxu0 %v1041
    %1192 = vmatpush1.msra.mxu0 %v1040
    %1193 = vmatprep.subr.mxu0 %v1039
    %1194 = vmatpush1.msra.mxu0 %v1038
    %1195 = vmatprep.subr.mxu0 %v1037
    %1196 = vmatpush1.msra.mxu0 %v1036
    %1197 = vmatprep.subr.mxu0 %v1035
    %1198 = vmatpush1.msra.mxu0 %v1034
    %1199 = vmatprep.subr.mxu0 0.0
    %1200 = vmatpush2.msra.mxu0 0.0
    %1201 = vmatprep.subr.mxu0 0.0
    %1202 = vmatpush2.msra.mxu0 0.0
    %1203 = vmatprep.subr.mxu0 0.0
    %1204 = vmatpush2.msra.mxu0 0.0
    %1205 = vmatprep.subr.mxu0 0.0
    %1206 = vmatpush2.msra.mxu0 0.0
    %1207 = vmatprep.subr.mxu0 0.0
    %1208 = vmatpush2.msra.mxu0 0.0
    %1209 = vmatprep.subr.mxu0 0.0
    %1210 = vmatpush2.msra.mxu0 0.0
    %1211 = vmatprep.subr.mxu0 0.0
    %1212 = vmatpush2.msra.mxu0 0.0
    %1213 = vmatprep.subr.mxu0 0.0
    %1214 = vmatpush2.msra.mxu0 0.0
    %1215 = vmatprep.subr.mxu0 0.0
    %1216 = vmatpush2.msra.mxu0 0.0
    %1217 = vmatprep.subr.mxu0 0.0
    %1218 = vmatpush2.msra.mxu0 0.0
    %1219 = vmatprep.subr.mxu0 0.0
    %1220 = vmatpush2.msra.mxu0 0.0
    %1221 = vmatprep.subr.mxu0 0.0
    %1222 = vmatpush2.msra.mxu0 0.0
    %1223 = vmatprep.subr.mxu0 0.0
    %1224 = vmatpush2.msra.mxu0 0.0
    %1225 = vmatprep.subr.mxu0 0.0
    %1226 = vmatpush2.msra.mxu0 0.0
    %1227 = vmatprep.subr.mxu0 0.0
    %1228 = vmatpush2.msra.mxu0 0.0
    %1229 = vmatprep.subr.mxu0 0.0
    %1230 = vmatpush2.msra.mxu0 0.0
    %1231 = vmatprep.mubr.f32.mxu0 0.0
    %1232 = vmatmul.mubr.f32.gmra.mxu0 %v1156
    %v1233 = vpop.f32.mrf.mxu0
    %v1234 = vadd.f32 %v1133, %v1233
    %v1235 = vpop.f32.mrf.mxu0
    %v1236 = vadd.f32 %v1135, %v1235
    %1237 = vmatprep.mubr.f32.mxu0 0.0
    %1238 = vmatmul.mubr.f32.gmra.mxu0 %v1159
    %v1239 = vpop.f32.mrf.mxu0
    %v1240 = vadd.f32 %v1139, %v1239
    %v1241 = vpop.f32.mrf.mxu0
    %v1242 = vadd.f32 %v1141, %v1241
    %1243 = vmatprep.mubr.f32.mxu0 0.0
    %1244 = vmatmul.mubr.f32.gmra.mxu0 %v1162
    %v1245 = vpop.f32.mrf.mxu0
    %v1246 = vadd.f32 %v1145, %v1245
    %v1247 = vpop.f32.mrf.mxu0
    %v1248 = vadd.f32 %v1147, %v1247
    %1249 = vmatprep.mubr.f32.mxu0 0.0
    %1250 = vmatmul.mubr.f32.gmra.mxu0 %v1165
    %v1251 = vpop.f32.mrf.mxu0
    %v1252 = vadd.f32 %v1151, %v1251
    %v1253 = vpop.f32.mrf.mxu0
    %v1254 = vadd.f32 %v1153, %v1253
    %1255 = vdwg.mxu0
    %v1256 = vld [vmem:[%s11] sm:$0xff]
    %v1257 = vld [vmem:[%s11 + $0x8] sm:$0xff]
    %v1258 = vld [vmem:[%s11 + $0x10] sm:$0xff]
    %v1259 = vld [vmem:[%s11 + $0x18] sm:$0xff]
    %v1260 = vld [vmem:[%s11 + $0x20] sm:$0xff]
    %v1261 = vld [vmem:[%s11 + $0x28] sm:$0xff]
    %v1262 = vld [vmem:[%s11 + $0x30] sm:$0xff]
    %v1263 = vld [vmem:[%s11 + $0x38] sm:$0xff]
    %s1264 = scalar_lea.vmem [#allocation15], 128
    %v1265 = vld [vmem:[%s1264] sm:$0xff]
    %v1266 = vld [vmem:[%s1264 + $0x8] sm:$0xff]
    %v1267 = vld [vmem:[%s1264 + $0x10] sm:$0xff]
    %v1268 = vld [vmem:[%s1264 + $0x18] sm:$0xff]
    %v1269 = vld [vmem:[%s1264 + $0x20] sm:$0xff]
    %v1270 = vld [vmem:[%s1264 + $0x28] sm:$0xff]
    %v1271 = vld [vmem:[%s1264 + $0x30] sm:$0xff]
    %v1272 = vld [vmem:[%s1264 + $0x38] sm:$0xff]
    %v1273 = vld [vmem:[%s1264 + $0x40] sm:$0xff]
    %v1274 = vld [vmem:[%s1264 + $0x48] sm:$0xff]
    %v1275 = vld [vmem:[%s1264 + $0x50] sm:$0xff]
    %v1276 = vld [vmem:[%s1264 + $0x58] sm:$0xff]
    %v1277 = vld [vmem:[%s1264 + $0x60] sm:$0xff]
    %v1278 = vld [vmem:[%s1264 + $0x68] sm:$0xff]
    %v1279 = vld [vmem:[%s1264 + $0x70] sm:$0xff]
    %v1280 = vld [vmem:[%s1264 + $0x78] sm:$0xff]
    %s1281 = scalar_lea.vmem [#allocation16], 128
    %v1282 = vld [vmem:[%s1281] sm:$0xff]
    %v1283 = vld [vmem:[%s1281 + $0x8] sm:$0xff]
    %v1284 = vld [vmem:[%s1281 + $0x10] sm:$0xff]
    %v1285 = vld [vmem:[%s1281 + $0x18] sm:$0xff]
    %v1286 = vld [vmem:[%s1281 + $0x20] sm:$0xff]
    %v1287 = vld [vmem:[%s1281 + $0x28] sm:$0xff]
    %v1288 = vld [vmem:[%s1281 + $0x30] sm:$0xff]
    %v1289 = vld [vmem:[%s1281 + $0x38] sm:$0xff]
    %v1290 = vld [vmem:[%s1281 + $0x40] sm:$0xff]
    %v1291 = vld [vmem:[%s1281 + $0x48] sm:$0xff]
    %v1292 = vld [vmem:[%s1281 + $0x50] sm:$0xff]
    %v1293 = vld [vmem:[%s1281 + $0x58] sm:$0xff]
    %v1294 = vld [vmem:[%s1281 + $0x60] sm:$0xff]
    %v1295 = vld [vmem:[%s1281 + $0x68] sm:$0xff]
    %v1296 = vld [vmem:[%s1281 + $0x70] sm:$0xff]
    %v1297 = vld [vmem:[%s1281 + $0x78] sm:$0xff]
    %1298 = vmatprep.subr.mxu0 0.0
    %1299 = vmatpush1.msra.mxu0 0.0
    %1300 = vmatprep.subr.mxu0 0.0
    %1301 = vmatpush1.msra.mxu0 0.0
    %1302 = vmatprep.subr.mxu0 0.0
    %1303 = vmatpush1.msra.mxu0 0.0
    %1304 = vmatprep.subr.mxu0 0.0
    %1305 = vmatpush1.msra.mxu0 0.0
    %1306 = vmatprep.subr.mxu0 0.0
    %1307 = vmatpush1.msra.mxu0 0.0
    %1308 = vmatprep.subr.mxu0 0.0
    %1309 = vmatpush1.msra.mxu0 0.0
    %1310 = vmatprep.subr.mxu0 0.0
    %1311 = vmatpush1.msra.mxu0 0.0
    %1312 = vmatprep.subr.mxu0 0.0
    %1313 = vmatpush1.msra.mxu0 0.0
    %1314 = vmatprep.subr.mxu0 %v1297
    %1315 = vmatpush1.msra.mxu0 %v1296
    %1316 = vmatprep.subr.mxu0 %v1295
    %1317 = vmatpush1.msra.mxu0 %v1294
    %1318 = vmatprep.subr.mxu0 %v1293
    %1319 = vmatpush1.msra.mxu0 %v1292
    %1320 = vmatprep.subr.mxu0 %v1291
    %1321 = vmatpush1.msra.mxu0 %v1290
    %1322 = vmatprep.subr.mxu0 %v1289
    %1323 = vmatpush1.msra.mxu0 %v1288
    %1324 = vmatprep.subr.mxu0 %v1287
    %1325 = vmatpush1.msra.mxu0 %v1286
    %1326 = vmatprep.subr.mxu0 %v1285
    %1327 = vmatpush1.msra.mxu0 %v1284
    %1328 = vmatprep.subr.mxu0 %v1283
    %1329 = vmatpush1.msra.mxu0 %v1282
    %1330 = vmatprep.subr.mxu0 0.0
    %1331 = vmatpush2.msra.mxu0 0.0
    %1332 = vmatprep.subr.mxu0 0.0
    %1333 = vmatpush2.msra.mxu0 0.0
    %1334 = vmatprep.subr.mxu0 0.0
    %1335 = vmatpush2.msra.mxu0 0.0
    %1336 = vmatprep.subr.mxu0 0.0
    %1337 = vmatpush2.msra.mxu0 0.0
    %1338 = vmatprep.subr.mxu0 0.0
    %1339 = vmatpush2.msra.mxu0 0.0
    %1340 = vmatprep.subr.mxu0 0.0
    %1341 = vmatpush2.msra.mxu0 0.0
    %1342 = vmatprep.subr.mxu0 0.0
    %1343 = vmatpush2.msra.mxu0 0.0
    %1344 = vmatprep.subr.mxu0 0.0
    %1345 = vmatpush2.msra.mxu0 0.0
    %1346 = vmatprep.subr.mxu0 0.0
    %1347 = vmatpush2.msra.mxu0 0.0
    %1348 = vmatprep.subr.mxu0 0.0
    %1349 = vmatpush2.msra.mxu0 0.0
    %1350 = vmatprep.subr.mxu0 0.0
    %1351 = vmatpush2.msra.mxu0 0.0
    %1352 = vmatprep.subr.mxu0 0.0
    %1353 = vmatpush2.msra.mxu0 0.0
    %1354 = vmatprep.subr.mxu0 0.0
    %1355 = vmatpush2.msra.mxu0 0.0
    %1356 = vmatprep.subr.mxu0 0.0
    %1357 = vmatpush2.msra.mxu0 0.0
    %1358 = vmatprep.subr.mxu0 0.0
    %1359 = vmatpush2.msra.mxu0 0.0
    %1360 = vmatprep.subr.mxu0 0.0
    %1361 = vmatpush2.msra.mxu0 0.0
    %1362 = vmatprep.mubr.f32.mxu0 0.0
    %1363 = vmatmul.mubr.f32.gmra.mxu0 %v692
    %v1364 = vpop.f32.mrf.mxu0
    %v1365 = vadd.f32 0.0, %v1364
    %v1366 = vpop.f32.mrf.mxu0
    %v1367 = vadd.f32 0.0, %v1366
    %1368 = vmatprep.mubr.f32.mxu0 0.0
    %1369 = vmatmul.mubr.f32.gmra.mxu0 %v695
    %v1370 = vpop.f32.mrf.mxu0
    %v1371 = vadd.f32 0.0, %v1370
    %v1372 = vpop.f32.mrf.mxu0
    %v1373 = vadd.f32 0.0, %v1372
    %1374 = vmatprep.mubr.f32.mxu0 0.0
    %1375 = vmatmul.mubr.f32.gmra.mxu0 %v698
    %v1376 = vpop.f32.mrf.mxu0
    %v1377 = vadd.f32 0.0, %v1376
    %v1378 = vpop.f32.mrf.mxu0
    %v1379 = vadd.f32 0.0, %v1378
    %1380 = vmatprep.mubr.f32.mxu0 0.0
    %1381 = vmatmul.mubr.f32.gmra.mxu0 %v701
    %v1382 = vpop.f32.mrf.mxu0
    %v1383 = vadd.f32 0.0, %v1382
    %v1384 = vpop.f32.mrf.mxu0
    %v1385 = vadd.f32 0.0, %v1384
    %1386 = vdwg.mxu0
    %1387 = vmatprep.subr.mxu0 0.0
    %1388 = vmatpush1.msra.mxu0 0.0
    %1389 = vmatprep.subr.mxu0 0.0
    %1390 = vmatpush1.msra.mxu0 0.0
    %1391 = vmatprep.subr.mxu0 0.0
    %1392 = vmatpush1.msra.mxu0 0.0
    %1393 = vmatprep.subr.mxu0 0.0
    %1394 = vmatpush1.msra.mxu0 0.0
    %1395 = vmatprep.subr.mxu0 0.0
    %1396 = vmatpush1.msra.mxu0 0.0
    %1397 = vmatprep.subr.mxu0 0.0
    %1398 = vmatpush1.msra.mxu0 0.0
    %1399 = vmatprep.subr.mxu0 0.0
    %1400 = vmatpush1.msra.mxu0 0.0
    %1401 = vmatprep.subr.mxu0 0.0
    %1402 = vmatpush1.msra.mxu0 0.0
    %1403 = vmatprep.subr.mxu0 %v1280
    %1404 = vmatpush1.msra.mxu0 %v1279
    %1405 = vmatprep.subr.mxu0 %v1278
    %1406 = vmatpush1.msra.mxu0 %v1277
    %1407 = vmatprep.subr.mxu0 %v1276
    %1408 = vmatpush1.msra.mxu0 %v1275
    %1409 = vmatprep.subr.mxu0 %v1274
    %1410 = vmatpush1.msra.mxu0 %v1273
    %1411 = vmatprep.subr.mxu0 %v1272
    %1412 = vmatpush1.msra.mxu0 %v1271
    %1413 = vmatprep.subr.mxu0 %v1270
    %1414 = vmatpush1.msra.mxu0 %v1269
    %1415 = vmatprep.subr.mxu0 %v1268
    %1416 = vmatpush1.msra.mxu0 %v1267
    %1417 = vmatprep.subr.mxu0 %v1266
    %1418 = vmatpush1.msra.mxu0 %v1265
    %1419 = vmatprep.subr.mxu0 0.0
    %1420 = vmatpush2.msra.mxu0 0.0
    %1421 = vmatprep.subr.mxu0 0.0
    %1422 = vmatpush2.msra.mxu0 0.0
    %1423 = vmatprep.subr.mxu0 0.0
    %1424 = vmatpush2.msra.mxu0 0.0
    %1425 = vmatprep.subr.mxu0 0.0
    %1426 = vmatpush2.msra.mxu0 0.0
    %1427 = vmatprep.subr.mxu0 0.0
    %1428 = vmatpush2.msra.mxu0 0.0
    %1429 = vmatprep.subr.mxu0 0.0
    %1430 = vmatpush2.msra.mxu0 0.0
    %1431 = vmatprep.subr.mxu0 0.0
    %1432 = vmatpush2.msra.mxu0 0.0
    %1433 = vmatprep.subr.mxu0 0.0
    %1434 = vmatpush2.msra.mxu0 0.0
    %1435 = vmatprep.subr.mxu0 0.0
    %1436 = vmatpush2.msra.mxu0 0.0
    %1437 = vmatprep.subr.mxu0 0.0
    %1438 = vmatpush2.msra.mxu0 0.0
    %1439 = vmatprep.subr.mxu0 0.0
    %1440 = vmatpush2.msra.mxu0 0.0
    %1441 = vmatprep.subr.mxu0 0.0
    %1442 = vmatpush2.msra.mxu0 0.0
    %1443 = vmatprep.subr.mxu0 0.0
    %1444 = vmatpush2.msra.mxu0 0.0
    %1445 = vmatprep.subr.mxu0 0.0
    %1446 = vmatpush2.msra.mxu0 0.0
    %1447 = vmatprep.subr.mxu0 0.0
    %1448 = vmatpush2.msra.mxu0 0.0
    %1449 = vmatprep.subr.mxu0 0.0
    %1450 = vmatpush2.msra.mxu0 0.0
    %1451 = vmatprep.mubr.f32.mxu0 0.0
    %1452 = vmatmul.mubr.f32.gmra.mxu0 %v1156
    %v1453 = vpop.f32.mrf.mxu0
    %v1454 = vadd.f32 %v1365, %v1453
    %v1455 = vpop.f32.mrf.mxu0
    %v1456 = vadd.f32 %v1367, %v1455
    %1457 = vmatprep.mubr.f32.mxu0 0.0
    %1458 = vmatmul.mubr.f32.gmra.mxu0 %v1159
    %v1459 = vpop.f32.mrf.mxu0
    %v1460 = vadd.f32 %v1371, %v1459
    %v1461 = vpop.f32.mrf.mxu0
    %v1462 = vadd.f32 %v1373, %v1461
    %1463 = vmatprep.mubr.f32.mxu0 0.0
    %1464 = vmatmul.mubr.f32.gmra.mxu0 %v1162
    %v1465 = vpop.f32.mrf.mxu0
    %v1466 = vadd.f32 %v1377, %v1465
    %v1467 = vpop.f32.mrf.mxu0
    %v1468 = vadd.f32 %v1379, %v1467
    %1469 = vmatprep.mubr.f32.mxu0 0.0
    %1470 = vmatmul.mubr.f32.gmra.mxu0 %v1165
    %v1471 = vpop.f32.mrf.mxu0
    %v1472 = vadd.f32 %v1383, %v1471
    %v1473 = vpop.f32.mrf.mxu0
    %v1474 = vadd.f32 %v1385, %v1473
    %1475 = vdwg.mxu0
    %s1476 = scalar_lea.vmem %s11, 64
    %v1477 = vld [vmem:[%s1476] sm:$0xff]
    %v1478 = vld [vmem:[%s1476 + $0x8] sm:$0xff]
    %v1479 = vld [vmem:[%s1476 + $0x10] sm:$0xff]
    %v1480 = vld [vmem:[%s1476 + $0x18] sm:$0xff]
    %v1481 = vld [vmem:[%s1476 + $0x20] sm:$0xff]
    %v1482 = vld [vmem:[%s1476 + $0x28] sm:$0xff]
    %v1483 = vld [vmem:[%s1476 + $0x30] sm:$0xff]
    %v1484 = vld [vmem:[%s1476 + $0x38] sm:$0xff]
    %vm1485 = vcmask 261120
    %v1487 = vsel %vm1485, %v1477, 0
    %v1490 = vsel %vm1485, %v1478, 0
    %v1493 = vsel %vm1485, %v1479, 0
    %v1496 = vsel %vm1485, %v1480, 0
    %v1499 = vsel %vm1485, %v1481, 0
    %v1502 = vsel %vm1485, %v1482, 0
    %v1505 = vsel %vm1485, %v1483, 0
    %v1508 = vsel %vm1485, %v1484, 0
    %1510 = vmatprep.subr.mxu0 0.0
    %1511 = vmatpush1.msra.mxu0 0.0
    %1512 = vmatprep.subr.mxu0 0.0
    %1513 = vmatpush1.msra.mxu0 0.0
    %1514 = vmatprep.subr.mxu0 0.0
    %1515 = vmatpush1.msra.mxu0 0.0
    %1516 = vmatprep.subr.mxu0 0.0
    %1517 = vmatpush1.msra.mxu0 0.0
    %1518 = vmatprep.subr.mxu0 0.0
    %1519 = vmatpush1.msra.mxu0 0.0
    %1520 = vmatprep.subr.mxu0 0.0
    %1521 = vmatpush1.msra.mxu0 0.0
    %1522 = vmatprep.subr.mxu0 0.0
    %1523 = vmatpush1.msra.mxu0 0.0
    %1524 = vmatprep.subr.mxu0 0.0
    %1525 = vmatpush1.msra.mxu0 0.0
    %1526 = vmatprep.subr.mxu0 0.0
    %1527 = vmatpush1.msra.mxu0 0.0
    %1528 = vmatprep.subr.mxu0 0.0
    %1529 = vmatpush1.msra.mxu0 0.0
    %1530 = vmatprep.subr.mxu0 0.0
    %1531 = vmatpush1.msra.mxu0 0.0
    %1532 = vmatprep.subr.mxu0 0.0
    %1533 = vmatpush1.msra.mxu0 0.0
    %1534 = vmatprep.subr.mxu0 %v1474
    %1535 = vmatpush1.msra.mxu0 %v1472
    %1536 = vmatprep.subr.mxu0 %v1468
    %1537 = vmatpush1.msra.mxu0 %v1466
    %1538 = vmatprep.subr.mxu0 %v1462
    %1539 = vmatpush1.msra.mxu0 %v1460
    %1540 = vmatprep.subr.mxu0 %v1456
    %1541 = vmatpush1.msra.mxu0 %v1454
    %1542 = vmatprep.subr.mxu0 0.0
    %1543 = vmatpush2.msra.mxu0 0.0
    %1544 = vmatprep.subr.mxu0 0.0
    %1545 = vmatpush2.msra.mxu0 0.0
    %1546 = vmatprep.subr.mxu0 0.0
    %1547 = vmatpush2.msra.mxu0 0.0
    %1548 = vmatprep.subr.mxu0 0.0
    %1549 = vmatpush2.msra.mxu0 0.0
    %1550 = vmatprep.subr.mxu0 0.0
    %1551 = vmatpush2.msra.mxu0 0.0
    %1552 = vmatprep.subr.mxu0 0.0
    %1553 = vmatpush2.msra.mxu0 0.0
    %1554 = vmatprep.subr.mxu0 0.0
    %1555 = vmatpush2.msra.mxu0 0.0
    %1556 = vmatprep.subr.mxu0 0.0
    %1557 = vmatpush2.msra.mxu0 0.0
    %1558 = vmatprep.subr.mxu0 0.0
    %1559 = vmatpush2.msra.mxu0 0.0
    %1560 = vmatprep.subr.mxu0 0.0
    %1561 = vmatpush2.msra.mxu0 0.0
    %1562 = vmatprep.subr.mxu0 0.0
    %1563 = vmatpush2.msra.mxu0 0.0
    %1564 = vmatprep.subr.mxu0 0.0
    %1565 = vmatpush2.msra.mxu0 0.0
    %1566 = vmatprep.subr.mxu0 0.0
    %1567 = vmatpush2.msra.mxu0 0.0
    %1568 = vmatprep.subr.mxu0 0.0
    %1569 = vmatpush2.msra.mxu0 0.0
    %1570 = vmatprep.subr.mxu0 0.0
    %1571 = vmatpush2.msra.mxu0 0.0
    %1572 = vmatprep.subr.mxu0 0.0
    %1573 = vmatpush2.msra.mxu0 0.0
    %1574 = vmatprep.mubr.f32.mxu0 0.0
    %1575 = vmatmul.mubr.f32.gmra.mxu0 %v1487
    %v1576 = vpop.f32.mrf.mxu0
    %v1577 = vadd.f32 0.0, %v1576
    %v1578 = vpop.f32.mrf.mxu0
    %v1579 = vadd.f32 0.0, %v1578
    %1580 = vmatprep.mubr.f32.mxu0 0.0
    %1581 = vmatmul.mubr.f32.gmra.mxu0 %v1490
    %v1582 = vpop.f32.mrf.mxu0
    %v1583 = vadd.f32 0.0, %v1582
    %v1584 = vpop.f32.mrf.mxu0
    %v1585 = vadd.f32 0.0, %v1584
    %1586 = vmatprep.mubr.f32.mxu0 0.0
    %1587 = vmatmul.mubr.f32.gmra.mxu0 %v1493
    %v1588 = vpop.f32.mrf.mxu0
    %v1589 = vadd.f32 0.0, %v1588
    %v1590 = vpop.f32.mrf.mxu0
    %v1591 = vadd.f32 0.0, %v1590
    %1592 = vmatprep.mubr.f32.mxu0 0.0
    %1593 = vmatmul.mubr.f32.gmra.mxu0 %v1496
    %v1594 = vpop.f32.mrf.mxu0
    %v1595 = vadd.f32 0.0, %v1594
    %v1596 = vpop.f32.mrf.mxu0
    %v1597 = vadd.f32 0.0, %v1596
    %1598 = vmatprep.mubr.f32.mxu0 0.0
    %1599 = vmatmul.mubr.f32.gmra.mxu0 %v1499
    %v1600 = vpop.f32.mrf.mxu0
    %v1601 = vadd.f32 0.0, %v1600
    %v1602 = vpop.f32.mrf.mxu0
    %v1603 = vadd.f32 0.0, %v1602
    %1604 = vmatprep.mubr.f32.mxu0 0.0
    %1605 = vmatmul.mubr.f32.gmra.mxu0 %v1502
    %v1606 = vpop.f32.mrf.mxu0
    %v1607 = vadd.f32 0.0, %v1606
    %v1608 = vpop.f32.mrf.mxu0
    %v1609 = vadd.f32 0.0, %v1608
    %1610 = vmatprep.mubr.f32.mxu0 0.0
    %1611 = vmatmul.mubr.f32.gmra.mxu0 %v1505
    %v1612 = vpop.f32.mrf.mxu0
    %v1613 = vadd.f32 0.0, %v1612
    %v1614 = vpop.f32.mrf.mxu0
    %v1615 = vadd.f32 0.0, %v1614
    %1616 = vmatprep.mubr.f32.mxu0 0.0
    %1617 = vmatmul.mubr.f32.gmra.mxu0 %v1508
    %v1618 = vpop.f32.mrf.mxu0
    %v1619 = vadd.f32 0.0, %v1618
    %v1620 = vpop.f32.mrf.mxu0
    %v1621 = vadd.f32 0.0, %v1620
    %1622 = vdwg.mxu0
    %v1624 = vsel %vm1485, %v1256, 0
    %v1627 = vsel %vm1485, %v1257, 0
    %v1630 = vsel %vm1485, %v1258, 0
    %v1633 = vsel %vm1485, %v1259, 0
    %v1636 = vsel %vm1485, %v1260, 0
    %v1639 = vsel %vm1485, %v1261, 0
    %v1642 = vsel %vm1485, %v1262, 0
    %v1645 = vsel %vm1485, %v1263, 0
    %1647 = vmatprep.subr.mxu0 0.0
    %1648 = vmatpush1.msra.mxu0 0.0
    %1649 = vmatprep.subr.mxu0 0.0
    %1650 = vmatpush1.msra.mxu0 0.0
    %1651 = vmatprep.subr.mxu0 0.0
    %1652 = vmatpush1.msra.mxu0 0.0
    %1653 = vmatprep.subr.mxu0 0.0
    %1654 = vmatpush1.msra.mxu0 0.0
    %1655 = vmatprep.subr.mxu0 0.0
    %1656 = vmatpush1.msra.mxu0 0.0
    %1657 = vmatprep.subr.mxu0 0.0
    %1658 = vmatpush1.msra.mxu0 0.0
    %1659 = vmatprep.subr.mxu0 0.0
    %1660 = vmatpush1.msra.mxu0 0.0
    %1661 = vmatprep.subr.mxu0 0.0
    %1662 = vmatpush1.msra.mxu0 0.0
    %1663 = vmatprep.subr.mxu0 0.0
    %1664 = vmatpush1.msra.mxu0 0.0
    %1665 = vmatprep.subr.mxu0 0.0
    %1666 = vmatpush1.msra.mxu0 0.0
    %1667 = vmatprep.subr.mxu0 0.0
    %1668 = vmatpush1.msra.mxu0 0.0
    %1669 = vmatprep.subr.mxu0 0.0
    %1670 = vmatpush1.msra.mxu0 0.0
    %1671 = vmatprep.subr.mxu0 %v1254
    %1672 = vmatpush1.msra.mxu0 %v1252
    %1673 = vmatprep.subr.mxu0 %v1248
    %1674 = vmatpush1.msra.mxu0 %v1246
    %1675 = vmatprep.subr.mxu0 %v1242
    %1676 = vmatpush1.msra.mxu0 %v1240
    %1677 = vmatprep.subr.mxu0 %v1236
    %1678 = vmatpush1.msra.mxu0 %v1234
    %1679 = vmatprep.subr.mxu0 0.0
    %1680 = vmatpush2.msra.mxu0 0.0
    %1681 = vmatprep.subr.mxu0 0.0
    %1682 = vmatpush2.msra.mxu0 0.0
    %1683 = vmatprep.subr.mxu0 0.0
    %1684 = vmatpush2.msra.mxu0 0.0
    %1685 = vmatprep.subr.mxu0 0.0
    %1686 = vmatpush2.msra.mxu0 0.0
    %1687 = vmatprep.subr.mxu0 0.0
    %1688 = vmatpush2.msra.mxu0 0.0
    %1689 = vmatprep.subr.mxu0 0.0
    %1690 = vmatpush2.msra.mxu0 0.0
    %1691 = vmatprep.subr.mxu0 0.0
    %1692 = vmatpush2.msra.mxu0 0.0
    %1693 = vmatprep.subr.mxu0 0.0
    %1694 = vmatpush2.msra.mxu0 0.0
    %1695 = vmatprep.subr.mxu0 0.0
    %1696 = vmatpush2.msra.mxu0 0.0
    %1697 = vmatprep.subr.mxu0 0.0
    %1698 = vmatpush2.msra.mxu0 0.0
    %1699 = vmatprep.subr.mxu0 0.0
    %1700 = vmatpush2.msra.mxu0 0.0
    %1701 = vmatprep.subr.mxu0 0.0
    %1702 = vmatpush2.msra.mxu0 0.0
    %1703 = vmatprep.subr.mxu0 0.0
    %1704 = vmatpush2.msra.mxu0 0.0
    %1705 = vmatprep.subr.mxu0 0.0
    %1706 = vmatpush2.msra.mxu0 0.0
    %1707 = vmatprep.subr.mxu0 0.0
    %1708 = vmatpush2.msra.mxu0 0.0
    %1709 = vmatprep.subr.mxu0 0.0
    %1710 = vmatpush2.msra.mxu0 0.0
    %1711 = vmatprep.mubr.f32.mxu0 0.0
    %1712 = vmatmul.mubr.f32.gmra.mxu0 %v1624
    %v1713 = vpop.f32.mrf.mxu0
    %v1714 = vadd.f32 %v1577, %v1713
    %v1715 = vpop.f32.mrf.mxu0
    %v1716 = vadd.f32 %v1579, %v1715
    %1717 = vmatprep.mubr.f32.mxu0 0.0
    %1718 = vmatmul.mubr.f32.gmra.mxu0 %v1627
    %v1719 = vpop.f32.mrf.mxu0
    %v1720 = vadd.f32 %v1583, %v1719
    %v1721 = vpop.f32.mrf.mxu0
    %v1722 = vadd.f32 %v1585, %v1721
    %1723 = vmatprep.mubr.f32.mxu0 0.0
    %1724 = vmatmul.mubr.f32.gmra.mxu0 %v1630
    %v1725 = vpop.f32.mrf.mxu0
    %v1726 = vadd.f32 %v1589, %v1725
    %v1727 = vpop.f32.mrf.mxu0
    %v1728 = vadd.f32 %v1591, %v1727
    %1729 = vmatprep.mubr.f32.mxu0 0.0
    %1730 = vmatmul.mubr.f32.gmra.mxu0 %v1633
    %v1731 = vpop.f32.mrf.mxu0
    %v1732 = vadd.f32 %v1595, %v1731
    %v1733 = vpop.f32.mrf.mxu0
    %v1734 = vadd.f32 %v1597, %v1733
    %1735 = vmatprep.mubr.f32.mxu0 0.0
    %1736 = vmatmul.mubr.f32.gmra.mxu0 %v1636
    %v1737 = vpop.f32.mrf.mxu0
    %v1738 = vadd.f32 %v1601, %v1737
    %v1739 = vpop.f32.mrf.mxu0
    %v1740 = vadd.f32 %v1603, %v1739
    %1741 = vmatprep.mubr.f32.mxu0 0.0
    %1742 = vmatmul.mubr.f32.gmra.mxu0 %v1639
    %v1743 = vpop.f32.mrf.mxu0
    %v1744 = vadd.f32 %v1607, %v1743
    %v1745 = vpop.f32.mrf.mxu0
    %v1746 = vadd.f32 %v1609, %v1745
    %1747 = vmatprep.mubr.f32.mxu0 0.0
    %1748 = vmatmul.mubr.f32.gmra.mxu0 %v1642
    %v1749 = vpop.f32.mrf.mxu0
    %v1750 = vadd.f32 %v1613, %v1749
    %v1751 = vpop.f32.mrf.mxu0
    %v1752 = vadd.f32 %v1615, %v1751
    %1753 = vmatprep.mubr.f32.mxu0 0.0
    %1754 = vmatmul.mubr.f32.gmra.mxu0 %v1645
    %v1755 = vpop.f32.mrf.mxu0
    %v1756 = vadd.f32 %v1619, %v1755
    %v1757 = vpop.f32.mrf.mxu0
    %v1758 = vadd.f32 %v1621, %v1757
    %1759 = vdwg.mxu0
    %s1760 = scalar_lea.vmem [#allocation15], 256
    %v1761 = vld [vmem:[%s1760] sm:$0xff]
    %v1762 = vld [vmem:[%s1760 + $0x8] sm:$0xff]
    %v1763 = vld [vmem:[%s1760 + $0x10] sm:$0xff]
    %v1764 = vld [vmem:[%s1760 + $0x18] sm:$0xff]
    %v1765 = vld [vmem:[%s1760 + $0x20] sm:$0xff]
    %v1766 = vld [vmem:[%s1760 + $0x28] sm:$0xff]
    %v1767 = vld [vmem:[%s1760 + $0x30] sm:$0xff]
    %v1768 = vld [vmem:[%s1760 + $0x38] sm:$0xff]
    %v1769 = vld [vmem:[%s1760 + $0x40] sm:$0xff]
    %v1770 = vld [vmem:[%s1760 + $0x48] sm:$0xff]
    %v1771 = vld [vmem:[%s1760 + $0x50] sm:$0xff]
    %v1772 = vld [vmem:[%s1760 + $0x58] sm:$0xff]
    %v1773 = vld [vmem:[%s1760 + $0x60] sm:$0xff]
    %v1774 = vld [vmem:[%s1760 + $0x68] sm:$0xff]
    %v1775 = vld [vmem:[%s1760 + $0x70] sm:$0xff]
    %v1776 = vld [vmem:[%s1760 + $0x78] sm:$0xff]
    %s1777 = scalar_lea.vmem [#allocation16], 256
    %v1778 = vld [vmem:[%s1777] sm:$0xff]
    %v1779 = vld [vmem:[%s1777 + $0x8] sm:$0xff]
    %v1780 = vld [vmem:[%s1777 + $0x10] sm:$0xff]
    %v1781 = vld [vmem:[%s1777 + $0x18] sm:$0xff]
    %v1782 = vld [vmem:[%s1777 + $0x20] sm:$0xff]
    %v1783 = vld [vmem:[%s1777 + $0x28] sm:$0xff]
    %v1784 = vld [vmem:[%s1777 + $0x30] sm:$0xff]
    %v1785 = vld [vmem:[%s1777 + $0x38] sm:$0xff]
    %v1786 = vld [vmem:[%s1777 + $0x40] sm:$0xff]
    %v1787 = vld [vmem:[%s1777 + $0x48] sm:$0xff]
    %v1788 = vld [vmem:[%s1777 + $0x50] sm:$0xff]
    %v1789 = vld [vmem:[%s1777 + $0x58] sm:$0xff]
    %v1790 = vld [vmem:[%s1777 + $0x60] sm:$0xff]
    %v1791 = vld [vmem:[%s1777 + $0x68] sm:$0xff]
    %v1792 = vld [vmem:[%s1777 + $0x70] sm:$0xff]
    %v1793 = vld [vmem:[%s1777 + $0x78] sm:$0xff]
    %1794 = vmatprep.subr.mxu0 0.0
    %1795 = vmatpush1.msra.mxu0 0.0
    %1796 = vmatprep.subr.mxu0 0.0
    %1797 = vmatpush1.msra.mxu0 0.0
    %1798 = vmatprep.subr.mxu0 0.0
    %1799 = vmatpush1.msra.mxu0 0.0
    %1800 = vmatprep.subr.mxu0 0.0
    %1801 = vmatpush1.msra.mxu0 0.0
    %1802 = vmatprep.subr.mxu0 0.0
    %1803 = vmatpush1.msra.mxu0 0.0
    %1804 = vmatprep.subr.mxu0 0.0
    %1805 = vmatpush1.msra.mxu0 0.0
    %1806 = vmatprep.subr.mxu0 0.0
    %1807 = vmatpush1.msra.mxu0 0.0
    %1808 = vmatprep.subr.mxu0 0.0
    %1809 = vmatpush1.msra.mxu0 0.0
    %1810 = vmatprep.subr.mxu0 %v1793
    %1811 = vmatpush1.msra.mxu0 %v1792
    %1812 = vmatprep.subr.mxu0 %v1791
    %1813 = vmatpush1.msra.mxu0 %v1790
    %1814 = vmatprep.subr.mxu0 %v1789
    %1815 = vmatpush1.msra.mxu0 %v1788
    %1816 = vmatprep.subr.mxu0 %v1787
    %1817 = vmatpush1.msra.mxu0 %v1786
    %1818 = vmatprep.subr.mxu0 %v1785
    %1819 = vmatpush1.msra.mxu0 %v1784
    %1820 = vmatprep.subr.mxu0 %v1783
    %1821 = vmatpush1.msra.mxu0 %v1782
    %1822 = vmatprep.subr.mxu0 %v1781
    %1823 = vmatpush1.msra.mxu0 %v1780
    %1824 = vmatprep.subr.mxu0 %v1779
    %1825 = vmatpush1.msra.mxu0 %v1778
    %1826 = vmatprep.subr.mxu0 0.0
    %1827 = vmatpush2.msra.mxu0 0.0
    %1828 = vmatprep.subr.mxu0 0.0
    %1829 = vmatpush2.msra.mxu0 0.0
    %1830 = vmatprep.subr.mxu0 0.0
    %1831 = vmatpush2.msra.mxu0 0.0
    %1832 = vmatprep.subr.mxu0 0.0
    %1833 = vmatpush2.msra.mxu0 0.0
    %1834 = vmatprep.subr.mxu0 0.0
    %1835 = vmatpush2.msra.mxu0 0.0
    %1836 = vmatprep.subr.mxu0 0.0
    %1837 = vmatpush2.msra.mxu0 0.0
    %1838 = vmatprep.subr.mxu0 0.0
    %1839 = vmatpush2.msra.mxu0 0.0
    %1840 = vmatprep.subr.mxu0 0.0
    %1841 = vmatpush2.msra.mxu0 0.0
    %1842 = vmatprep.subr.mxu0 0.0
    %1843 = vmatpush2.msra.mxu0 0.0
    %1844 = vmatprep.subr.mxu0 0.0
    %1845 = vmatpush2.msra.mxu0 0.0
    %1846 = vmatprep.subr.mxu0 0.0
    %1847 = vmatpush2.msra.mxu0 0.0
    %1848 = vmatprep.subr.mxu0 0.0
    %1849 = vmatpush2.msra.mxu0 0.0
    %1850 = vmatprep.subr.mxu0 0.0
    %1851 = vmatpush2.msra.mxu0 0.0
    %1852 = vmatprep.subr.mxu0 0.0
    %1853 = vmatpush2.msra.mxu0 0.0
    %1854 = vmatprep.subr.mxu0 0.0
    %1855 = vmatpush2.msra.mxu0 0.0
    %1856 = vmatprep.subr.mxu0 0.0
    %1857 = vmatpush2.msra.mxu0 0.0
    %1858 = vmatprep.mubr.f32.mxu0 0.0
    %1859 = vmatmul.mubr.f32.gmra.mxu0 %v692
    %v1860 = vpop.f32.mrf.mxu0
    %v1861 = vadd.f32 0.0, %v1860
    %v1862 = vpop.f32.mrf.mxu0
    %v1863 = vadd.f32 0.0, %v1862
    %1864 = vmatprep.mubr.f32.mxu0 0.0
    %1865 = vmatmul.mubr.f32.gmra.mxu0 %v695
    %v1866 = vpop.f32.mrf.mxu0
    %v1867 = vadd.f32 0.0, %v1866
    %v1868 = vpop.f32.mrf.mxu0
    %v1869 = vadd.f32 0.0, %v1868
    %1870 = vmatprep.mubr.f32.mxu0 0.0
    %1871 = vmatmul.mubr.f32.gmra.mxu0 %v698
    %v1872 = vpop.f32.mrf.mxu0
    %v1873 = vadd.f32 0.0, %v1872
    %v1874 = vpop.f32.mrf.mxu0
    %v1875 = vadd.f32 0.0, %v1874
    %1876 = vmatprep.mubr.f32.mxu0 0.0
    %1877 = vmatmul.mubr.f32.gmra.mxu0 %v701
    %v1878 = vpop.f32.mrf.mxu0
    %v1879 = vadd.f32 0.0, %v1878
    %v1880 = vpop.f32.mrf.mxu0
    %v1881 = vadd.f32 0.0, %v1880
    %1882 = vdwg.mxu0
    %1883 = vmatprep.subr.mxu0 0.0
    %1884 = vmatpush1.msra.mxu0 0.0
    %1885 = vmatprep.subr.mxu0 0.0
    %1886 = vmatpush1.msra.mxu0 0.0
    %1887 = vmatprep.subr.mxu0 0.0
    %1888 = vmatpush1.msra.mxu0 0.0
    %1889 = vmatprep.subr.mxu0 0.0
    %1890 = vmatpush1.msra.mxu0 0.0
    %1891 = vmatprep.subr.mxu0 0.0
    %1892 = vmatpush1.msra.mxu0 0.0
    %1893 = vmatprep.subr.mxu0 0.0
    %1894 = vmatpush1.msra.mxu0 0.0
    %1895 = vmatprep.subr.mxu0 0.0
    %1896 = vmatpush1.msra.mxu0 0.0
    %1897 = vmatprep.subr.mxu0 0.0
    %1898 = vmatpush1.msra.mxu0 0.0
    %1899 = vmatprep.subr.mxu0 %v1776
    %1900 = vmatpush1.msra.mxu0 %v1775
    %1901 = vmatprep.subr.mxu0 %v1774
    %1902 = vmatpush1.msra.mxu0 %v1773
    %1903 = vmatprep.subr.mxu0 %v1772
    %1904 = vmatpush1.msra.mxu0 %v1771
    %1905 = vmatprep.subr.mxu0 %v1770
    %1906 = vmatpush1.msra.mxu0 %v1769
    %1907 = vmatprep.subr.mxu0 %v1768
    %1908 = vmatpush1.msra.mxu0 %v1767
    %1909 = vmatprep.subr.mxu0 %v1766
    %1910 = vmatpush1.msra.mxu0 %v1765
    %1911 = vmatprep.subr.mxu0 %v1764
    %1912 = vmatpush1.msra.mxu0 %v1763
    %1913 = vmatprep.subr.mxu0 %v1762
    %1914 = vmatpush1.msra.mxu0 %v1761
    %1915 = vmatprep.subr.mxu0 0.0
    %1916 = vmatpush2.msra.mxu0 0.0
    %1917 = vmatprep.subr.mxu0 0.0
    %1918 = vmatpush2.msra.mxu0 0.0
    %1919 = vmatprep.subr.mxu0 0.0
    %1920 = vmatpush2.msra.mxu0 0.0
    %1921 = vmatprep.subr.mxu0 0.0
    %1922 = vmatpush2.msra.mxu0 0.0
    %1923 = vmatprep.subr.mxu0 0.0
    %1924 = vmatpush2.msra.mxu0 0.0
    %1925 = vmatprep.subr.mxu0 0.0
    %1926 = vmatpush2.msra.mxu0 0.0
    %1927 = vmatprep.subr.mxu0 0.0
    %1928 = vmatpush2.msra.mxu0 0.0
    %1929 = vmatprep.subr.mxu0 0.0
    %1930 = vmatpush2.msra.mxu0 0.0
    %1931 = vmatprep.subr.mxu0 0.0
    %1932 = vmatpush2.msra.mxu0 0.0
    %1933 = vmatprep.subr.mxu0 0.0
    %1934 = vmatpush2.msra.mxu0 0.0
    %1935 = vmatprep.subr.mxu0 0.0
    %1936 = vmatpush2.msra.mxu0 0.0
    %1937 = vmatprep.subr.mxu0 0.0
    %1938 = vmatpush2.msra.mxu0 0.0
    %1939 = vmatprep.subr.mxu0 0.0
    %1940 = vmatpush2.msra.mxu0 0.0
    %1941 = vmatprep.subr.mxu0 0.0
    %1942 = vmatpush2.msra.mxu0 0.0
    %1943 = vmatprep.subr.mxu0 0.0
    %1944 = vmatpush2.msra.mxu0 0.0
    %1945 = vmatprep.subr.mxu0 0.0
    %1946 = vmatpush2.msra.mxu0 0.0
    %1947 = vmatprep.mubr.f32.mxu0 0.0
    %1948 = vmatmul.mubr.f32.gmra.mxu0 %v1156
    %v1949 = vpop.f32.mrf.mxu0
    %v1950 = vadd.f32 %v1861, %v1949
    %v1951 = vpop.f32.mrf.mxu0
    %v1952 = vadd.f32 %v1863, %v1951
    %1953 = vmatprep.mubr.f32.mxu0 0.0
    %1954 = vmatmul.mubr.f32.gmra.mxu0 %v1159
    %v1955 = vpop.f32.mrf.mxu0
    %v1956 = vadd.f32 %v1867, %v1955
    %v1957 = vpop.f32.mrf.mxu0
    %v1958 = vadd.f32 %v1869, %v1957
    %1959 = vmatprep.mubr.f32.mxu0 0.0
    %1960 = vmatmul.mubr.f32.gmra.mxu0 %v1162
    %v1961 = vpop.f32.mrf.mxu0
    %v1962 = vadd.f32 %v1873, %v1961
    %v1963 = vpop.f32.mrf.mxu0
    %v1964 = vadd.f32 %v1875, %v1963
    %1965 = vmatprep.mubr.f32.mxu0 0.0
    %1966 = vmatmul.mubr.f32.gmra.mxu0 %v1165
    %v1967 = vpop.f32.mrf.mxu0
    %v1968 = vadd.f32 %v1879, %v1967
    %v1969 = vpop.f32.mrf.mxu0
    %v1970 = vadd.f32 %v1881, %v1969
    %1971 = vdwg.mxu0
    %s1972 = scalar_lea.vmem %s11, 128
    %v1973 = vld [vmem:[%s1972] sm:$0xff]
    %v1974 = vld [vmem:[%s1972 + $0x8] sm:$0xff]
    %v1975 = vld [vmem:[%s1972 + $0x10] sm:$0xff]
    %v1976 = vld [vmem:[%s1972 + $0x18] sm:$0xff]
    %v1977 = vld [vmem:[%s1972 + $0x20] sm:$0xff]
    %v1978 = vld [vmem:[%s1972 + $0x28] sm:$0xff]
    %v1979 = vld [vmem:[%s1972 + $0x30] sm:$0xff]
    %v1980 = vld [vmem:[%s1972 + $0x38] sm:$0xff]
    %v1982 = vsel %vm1485, %v1973, 0
    %v1985 = vsel %vm1485, %v1974, 0
    %v1988 = vsel %vm1485, %v1975, 0
    %v1991 = vsel %vm1485, %v1976, 0
    %v1994 = vsel %vm1485, %v1977, 0
    %v1997 = vsel %vm1485, %v1978, 0
    %v2000 = vsel %vm1485, %v1979, 0
    %v2003 = vsel %vm1485, %v1980, 0
    %2005 = vmatprep.subr.mxu0 0.0
    %2006 = vmatpush1.msra.mxu0 0.0
    %2007 = vmatprep.subr.mxu0 0.0
    %2008 = vmatpush1.msra.mxu0 0.0
    %2009 = vmatprep.subr.mxu0 0.0
    %2010 = vmatpush1.msra.mxu0 0.0
    %2011 = vmatprep.subr.mxu0 0.0
    %2012 = vmatpush1.msra.mxu0 0.0
    %2013 = vmatprep.subr.mxu0 0.0
    %2014 = vmatpush1.msra.mxu0 0.0
    %2015 = vmatprep.subr.mxu0 0.0
    %2016 = vmatpush1.msra.mxu0 0.0
    %2017 = vmatprep.subr.mxu0 0.0
    %2018 = vmatpush1.msra.mxu0 0.0
    %2019 = vmatprep.subr.mxu0 0.0
    %2020 = vmatpush1.msra.mxu0 0.0
    %2021 = vmatprep.subr.mxu0 0.0
    %2022 = vmatpush1.msra.mxu0 0.0
    %2023 = vmatprep.subr.mxu0 0.0
    %2024 = vmatpush1.msra.mxu0 0.0
    %2025 = vmatprep.subr.mxu0 0.0
    %2026 = vmatpush1.msra.mxu0 0.0
    %2027 = vmatprep.subr.mxu0 0.0
    %2028 = vmatpush1.msra.mxu0 0.0
    %2029 = vmatprep.subr.mxu0 %v1970
    %2030 = vmatpush1.msra.mxu0 %v1968
    %2031 = vmatprep.subr.mxu0 %v1964
    %2032 = vmatpush1.msra.mxu0 %v1962
    %2033 = vmatprep.subr.mxu0 %v1958
    %2034 = vmatpush1.msra.mxu0 %v1956
    %2035 = vmatprep.subr.mxu0 %v1952
    %2036 = vmatpush1.msra.mxu0 %v1950
    %2037 = vmatprep.subr.mxu0 0.0
    %2038 = vmatpush2.msra.mxu0 0.0
    %2039 = vmatprep.subr.mxu0 0.0
    %2040 = vmatpush2.msra.mxu0 0.0
    %2041 = vmatprep.subr.mxu0 0.0
    %2042 = vmatpush2.msra.mxu0 0.0
    %2043 = vmatprep.subr.mxu0 0.0
    %2044 = vmatpush2.msra.mxu0 0.0
    %2045 = vmatprep.subr.mxu0 0.0
    %2046 = vmatpush2.msra.mxu0 0.0
    %2047 = vmatprep.subr.mxu0 0.0
    %2048 = vmatpush2.msra.mxu0 0.0
    %2049 = vmatprep.subr.mxu0 0.0
    %2050 = vmatpush2.msra.mxu0 0.0
    %2051 = vmatprep.subr.mxu0 0.0
    %2052 = vmatpush2.msra.mxu0 0.0
    %2053 = vmatprep.subr.mxu0 0.0
    %2054 = vmatpush2.msra.mxu0 0.0
    %2055 = vmatprep.subr.mxu0 0.0
    %2056 = vmatpush2.msra.mxu0 0.0
    %2057 = vmatprep.subr.mxu0 0.0
    %2058 = vmatpush2.msra.mxu0 0.0
    %2059 = vmatprep.subr.mxu0 0.0
    %2060 = vmatpush2.msra.mxu0 0.0
    %2061 = vmatprep.subr.mxu0 0.0
    %2062 = vmatpush2.msra.mxu0 0.0
    %2063 = vmatprep.subr.mxu0 0.0
    %2064 = vmatpush2.msra.mxu0 0.0
    %2065 = vmatprep.subr.mxu0 0.0
    %2066 = vmatpush2.msra.mxu0 0.0
    %2067 = vmatprep.subr.mxu0 0.0
    %2068 = vmatpush2.msra.mxu0 0.0
    %2069 = vmatprep.mubr.f32.mxu0 0.0
    %2070 = vmatmul.mubr.f32.gmra.mxu0 %v1982
    %v2071 = vpop.f32.mrf.mxu0
    %v2072 = vadd.f32 0.0, %v2071
    %v2073 = vpop.f32.mrf.mxu0
    %v2074 = vadd.f32 0.0, %v2073
    %2075 = vmatprep.mubr.f32.mxu0 0.0
    %2076 = vmatmul.mubr.f32.gmra.mxu0 %v1985
    %v2077 = vpop.f32.mrf.mxu0
    %v2078 = vadd.f32 0.0, %v2077
    %v2079 = vpop.f32.mrf.mxu0
    %v2080 = vadd.f32 0.0, %v2079
    %2081 = vmatprep.mubr.f32.mxu0 0.0
    %2082 = vmatmul.mubr.f32.gmra.mxu0 %v1988
    %v2083 = vpop.f32.mrf.mxu0
    %v2084 = vadd.f32 0.0, %v2083
    %v2085 = vpop.f32.mrf.mxu0
    %v2086 = vadd.f32 0.0, %v2085
    %2087 = vmatprep.mubr.f32.mxu0 0.0
    %2088 = vmatmul.mubr.f32.gmra.mxu0 %v1991
    %v2089 = vpop.f32.mrf.mxu0
    %v2090 = vadd.f32 0.0, %v2089
    %v2091 = vpop.f32.mrf.mxu0
    %v2092 = vadd.f32 0.0, %v2091
    %2093 = vmatprep.mubr.f32.mxu0 0.0
    %2094 = vmatmul.mubr.f32.gmra.mxu0 %v1994
    %v2095 = vpop.f32.mrf.mxu0
    %v2096 = vadd.f32 0.0, %v2095
    %v2097 = vpop.f32.mrf.mxu0
    %v2098 = vadd.f32 0.0, %v2097
    %2099 = vmatprep.mubr.f32.mxu0 0.0
    %2100 = vmatmul.mubr.f32.gmra.mxu0 %v1997
    %v2101 = vpop.f32.mrf.mxu0
    %v2102 = vadd.f32 0.0, %v2101
    %v2103 = vpop.f32.mrf.mxu0
    %v2104 = vadd.f32 0.0, %v2103
    %2105 = vmatprep.mubr.f32.mxu0 0.0
    %2106 = vmatmul.mubr.f32.gmra.mxu0 %v2000
    %v2107 = vpop.f32.mrf.mxu0
    %v2108 = vadd.f32 0.0, %v2107
    %v2109 = vpop.f32.mrf.mxu0
    %v2110 = vadd.f32 0.0, %v2109
    %2111 = vmatprep.mubr.f32.mxu0 0.0
    %2112 = vmatmul.mubr.f32.gmra.mxu0 %v2003
    %v2113 = vpop.f32.mrf.mxu0
    %v2114 = vadd.f32 0.0, %v2113
    %v2115 = vpop.f32.mrf.mxu0
    %v2116 = vadd.f32 0.0, %v2115
    %2117 = vdwg.mxu0
    %v2118 = vadd.f32 %v1714, %v2072
    %v2119 = vadd.f32 %v1716, %v2074
    %v2120 = vadd.f32 %v1720, %v2078
    %v2121 = vadd.f32 %v1722, %v2080
    %v2122 = vadd.f32 %v1726, %v2084
    %v2123 = vadd.f32 %v1728, %v2086
    %v2124 = vadd.f32 %v1732, %v2090
    %v2125 = vadd.f32 %v1734, %v2092
    %v2126 = vadd.f32 %v1738, %v2096
    %v2127 = vadd.f32 %v1740, %v2098
    %v2128 = vadd.f32 %v1744, %v2102
    %v2129 = vadd.f32 %v1746, %v2104
    %v2130 = vadd.f32 %v1750, %v2108
    %v2131 = vadd.f32 %v1752, %v2110
    %v2132 = vadd.f32 %v1756, %v2114
    %v2133 = vadd.f32 %v1758, %v2116
    %v2134 = vld [vmem:[%s14] sm:$0x3]
    %v2136 = vlaneseq
    %v2137 = vshrl.u32 %v2136, 7
    %v2138 = vsub.s32 0, %v2137
    %v2139 = vrot.slane %v2134, %v2138
    %v2140 = vlaneseq
    %v2141 = vshrl.u32 %v2140, 7
    %v2142 = vsub.s32 1, %v2141
    %v2143 = vrot.slane %v2134, %v2142
    %v2146 = vadd.f32 %v2118, %v2139
    %v2147 = vadd.f32 %v2119, %v2143
    %v2148 = vadd.f32 %v2120, %v2139
    %v2149 = vadd.f32 %v2121, %v2143
    %v2150 = vadd.f32 %v2122, %v2139
    %v2151 = vadd.f32 %v2123, %v2143
    %v2152 = vadd.f32 %v2124, %v2139
    %v2153 = vadd.f32 %v2125, %v2143
    %v2154 = vadd.f32 %v2126, %v2139
    %v2155 = vadd.f32 %v2127, %v2143
    %v2156 = vadd.f32 %v2128, %v2139
    %v2157 = vadd.f32 %v2129, %v2143
    %v2158 = vadd.f32 %v2130, %v2139
    %v2159 = vadd.f32 %v2131, %v2143
    %v2160 = vadd.f32 %v2132, %v2139
    %v2161 = vadd.f32 %v2133, %v2143
    %v2162 = vld [vmem:[%s17] sm:$0xff]
    %v2163 = vld [vmem:[%s17 + $0x8] sm:$0xff]
    %v2164 = vld [vmem:[%s17 + $0x10] sm:$0xff]
    %v2165 = vld [vmem:[%s17 + $0x18] sm:$0xff]
    %v2166 = vld [vmem:[%s17 + $0x20] sm:$0xff]
    %v2167 = vld [vmem:[%s17 + $0x28] sm:$0xff]
    %v2168 = vld [vmem:[%s17 + $0x30] sm:$0xff]
    %v2169 = vld [vmem:[%s17 + $0x38] sm:$0xff]
    %v2170 = vld [vmem:[%s17 + $0x40] sm:$0xff]
    %v2171 = vld [vmem:[%s17 + $0x48] sm:$0xff]
    %v2172 = vld [vmem:[%s17 + $0x50] sm:$0xff]
    %v2173 = vld [vmem:[%s17 + $0x58] sm:$0xff]
    %v2174 = vld [vmem:[%s17 + $0x60] sm:$0xff]
    %v2175 = vld [vmem:[%s17 + $0x68] sm:$0xff]
    %v2176 = vld [vmem:[%s17 + $0x70] sm:$0xff]
    %v2177 = vld [vmem:[%s17 + $0x78] sm:$0xff]
    %v2178 = vld [vmem:[%s17 + $0x80] sm:$0xff]
    %v2179 = vld [vmem:[%s17 + $0x88] sm:$0xff]
    %v2180 = vld [vmem:[%s17 + $0x90] sm:$0xff]
    %v2181 = vld [vmem:[%s17 + $0x98] sm:$0xff]
    %v2182 = vld [vmem:[%s17 + $0xa0] sm:$0xff]
    %v2183 = vld [vmem:[%s17 + $0xa8] sm:$0xff]
    %v2184 = vld [vmem:[%s17 + $0xb0] sm:$0xff]
    %v2185 = vld [vmem:[%s17 + $0xb8] sm:$0xff]
    %v2186 = vld [vmem:[%s17 + $0xc0] sm:$0xff]
    %v2187 = vld [vmem:[%s17 + $0xc8] sm:$0xff]
    %v2188 = vld [vmem:[%s17 + $0xd0] sm:$0xff]
    %v2189 = vld [vmem:[%s17 + $0xd8] sm:$0xff]
    %v2190 = vld [vmem:[%s17 + $0xe0] sm:$0xff]
    %v2191 = vld [vmem:[%s17 + $0xe8] sm:$0xff]
    %v2192 = vld [vmem:[%s17 + $0xf0] sm:$0xff]
    %v2193 = vld [vmem:[%s17 + $0xf8] sm:$0xff]
    %v2194 = vld [vmem:[%s17 + $0x100] sm:$0xff]
    %v2195 = vld [vmem:[%s17 + $0x108] sm:$0xff]
    %v2196 = vld [vmem:[%s17 + $0x110] sm:$0xff]
    %v2197 = vld [vmem:[%s17 + $0x118] sm:$0xff]
    %v2198 = vld [vmem:[%s17 + $0x120] sm:$0xff]
    %v2199 = vld [vmem:[%s17 + $0x128] sm:$0xff]
    %v2200 = vld [vmem:[%s17 + $0x130] sm:$0xff]
    %v2201 = vld [vmem:[%s17 + $0x138] sm:$0xff]
    %v2202 = vld [vmem:[%s17 + $0x140] sm:$0xff]
    %v2203 = vld [vmem:[%s17 + $0x148] sm:$0xff]
    %v2204 = vld [vmem:[%s17 + $0x150] sm:$0xff]
    %v2205 = vld [vmem:[%s17 + $0x158] sm:$0xff]
    %v2206 = vld [vmem:[%s17 + $0x160] sm:$0xff]
    %v2207 = vld [vmem:[%s17 + $0x168] sm:$0xff]
    %v2208 = vld [vmem:[%s17 + $0x170] sm:$0xff]
    %v2209 = vld [vmem:[%s17 + $0x178] sm:$0xff]
    %v2210 = vld [vmem:[%s17 + $0x180] sm:$0xff]
    %v2211 = vld [vmem:[%s17 + $0x188] sm:$0xff]
    %v2212 = vld [vmem:[%s17 + $0x190] sm:$0xff]
    %v2213 = vld [vmem:[%s17 + $0x198] sm:$0xff]
    %v2214 = vld [vmem:[%s17 + $0x1a0] sm:$0xff]
    %v2215 = vld [vmem:[%s17 + $0x1a8] sm:$0xff]
    %v2216 = vld [vmem:[%s17 + $0x1b0] sm:$0xff]
    %v2217 = vld [vmem:[%s17 + $0x1b8] sm:$0xff]
    %v2218 = vld [vmem:[%s17 + $0x1c0] sm:$0xff]
    %v2219 = vld [vmem:[%s17 + $0x1c8] sm:$0xff]
    %v2220 = vld [vmem:[%s17 + $0x1d0] sm:$0xff]
    %v2221 = vld [vmem:[%s17 + $0x1d8] sm:$0xff]
    %v2222 = vld [vmem:[%s17 + $0x1e0] sm:$0xff]
    %v2223 = vld [vmem:[%s17 + $0x1e8] sm:$0xff]
    %v2224 = vld [vmem:[%s17 + $0x1f0] sm:$0xff]
    %v2225 = vld [vmem:[%s17 + $0x1f8] sm:$0xff]
    %v2226 = vadd.f32 %v2146, %v2148
    %v2227 = vadd.f32 %v2226, %v2150
    %v2228 = vadd.f32 %v2227, %v2152
    %v2229 = vadd.f32 %v2228, %v2154
    %v2230 = vadd.f32 %v2229, %v2156
    %v2231 = vadd.f32 %v2230, %v2158
    %v2232 = vadd.f32 %v2231, %v2160
    %v2233 = vrot.slane %v2232, 4
    %v2234 = vadd.f32 %v2232, %v2233
    %v2235 = vrot.slane %v2234, 2
    %v2236 = vadd.f32 %v2234, %v2235
    %v2237 = vrot.slane %v2236, 1
    %v2238 = vadd.f32 %v2236, %v2237
    %v2239 = vadd.f32 %v2147, %v2149
    %v2240 = vadd.f32 %v2239, %v2151
    %v2241 = vadd.f32 %v2240, %v2153
    %v2242 = vadd.f32 %v2241, %v2155
    %v2243 = vadd.f32 %v2242, %v2157
    %v2244 = vadd.f32 %v2243, %v2159
    %v2245 = vadd.f32 %v2244, %v2161
    %v2246 = vrot.slane %v2245, 4
    %v2247 = vadd.f32 %v2245, %v2246
    %v2248 = vrot.slane %v2247, 2
    %v2249 = vadd.f32 %v2247, %v2248
    %v2250 = vrot.slane %v2249, 1
    %v2251 = vadd.f32 %v2249, %v2250
    %v2252 = vmul.f32 %v2146, %v2146
    %v2253 = vmul.f32 %v2147, %v2147
    %v2254 = vmul.f32 %v2148, %v2148
    %v2255 = vmul.f32 %v2149, %v2149
    %v2256 = vmul.f32 %v2150, %v2150
    %v2257 = vmul.f32 %v2151, %v2151
    %v2258 = vmul.f32 %v2152, %v2152
    %v2259 = vmul.f32 %v2153, %v2153
    %v2260 = vmul.f32 %v2154, %v2154
    %v2261 = vmul.f32 %v2155, %v2155
    %v2262 = vmul.f32 %v2156, %v2156
    %v2263 = vmul.f32 %v2157, %v2157
    %v2264 = vmul.f32 %v2158, %v2158
    %v2265 = vmul.f32 %v2159, %v2159
    %v2266 = vmul.f32 %v2160, %v2160
    %v2267 = vmul.f32 %v2161, %v2161
    %v2268 = vadd.f32 %v2252, %v2254
    %v2269 = vadd.f32 %v2268, %v2256
    %v2270 = vadd.f32 %v2269, %v2258
    %v2271 = vadd.f32 %v2270, %v2260
    %v2272 = vadd.f32 %v2271, %v2262
    %v2273 = vadd.f32 %v2272, %v2264
    %v2274 = vadd.f32 %v2273, %v2266
    %v2275 = vrot.slane %v2274, 4
    %v2276 = vadd.f32 %v2274, %v2275
    %v2277 = vrot.slane %v2276, 2
    %v2278 = vadd.f32 %v2276, %v2277
    %v2279 = vrot.slane %v2278, 1
    %v2280 = vadd.f32 %v2278, %v2279
    %v2281 = vadd.f32 %v2253, %v2255
    %v2282 = vadd.f32 %v2281, %v2257
    %v2283 = vadd.f32 %v2282, %v2259
    %v2284 = vadd.f32 %v2283, %v2261
    %v2285 = vadd.f32 %v2284, %v2263
    %v2286 = vadd.f32 %v2285, %v2265
    %v2287 = vadd.f32 %v2286, %v2267
    %v2288 = vrot.slane %v2287, 4
    %v2289 = vadd.f32 %v2287, %v2288
    %v2290 = vrot.slane %v2289, 2
    %v2291 = vadd.f32 %v2289, %v2290
    %v2292 = vrot.slane %v2291, 1
    %v2293 = vadd.f32 %v2291, %v2292
    %2294 = vmatprep.subr.mxu0 %v2193
    %2295 = vmatpush1.msra.mxu0 %v2192
    %2296 = vmatprep.subr.mxu0 %v2191
    %2297 = vmatpush1.msra.mxu0 %v2190
    %2298 = vmatprep.subr.mxu0 %v2189
    %2299 = vmatpush1.msra.mxu0 %v2188
    %2300 = vmatprep.subr.mxu0 %v2187
    %2301 = vmatpush1.msra.mxu0 %v2186
    %2302 = vmatprep.subr.mxu0 %v2185
    %2303 = vmatpush1.msra.mxu0 %v2184
    %2304 = vmatprep.subr.mxu0 %v2183
    %2305 = vmatpush1.msra.mxu0 %v2182
    %2306 = vmatprep.subr.mxu0 %v2181
    %2307 = vmatpush1.msra.mxu0 %v2180
    %2308 = vmatprep.subr.mxu0 %v2179
    %2309 = vmatpush1.msra.mxu0 %v2178
    %2310 = vmatprep.subr.mxu0 %v2177
    %2311 = vmatpush1.msra.mxu0 %v2176
    %2312 = vmatprep.subr.mxu0 %v2175
    %2313 = vmatpush1.msra.mxu0 %v2174
    %2314 = vmatprep.subr.mxu0 %v2173
    %2315 = vmatpush1.msra.mxu0 %v2172
    %2316 = vmatprep.subr.mxu0 %v2171
    %2317 = vmatpush1.msra.mxu0 %v2170
    %2318 = vmatprep.subr.mxu0 %v2169
    %2319 = vmatpush1.msra.mxu0 %v2168
    %2320 = vmatprep.subr.mxu0 %v2167
    %2321 = vmatpush1.msra.mxu0 %v2166
    %2322 = vmatprep.subr.mxu0 %v2165
    %2323 = vmatpush1.msra.mxu0 %v2164
    %2324 = vmatprep.subr.mxu0 %v2163
    %2325 = vmatpush1.msra.mxu0 %v2162
    %2326 = vmatprep.subr.mxu0 %v2225
    %2327 = vmatpush2.msra.mxu0 %v2224
    %2328 = vmatprep.subr.mxu0 %v2223
    %2329 = vmatpush2.msra.mxu0 %v2222
    %2330 = vmatprep.subr.mxu0 %v2221
    %2331 = vmatpush2.msra.mxu0 %v2220
    %2332 = vmatprep.subr.mxu0 %v2219
    %2333 = vmatpush2.msra.mxu0 %v2218
    %2334 = vmatprep.subr.mxu0 %v2217
    %2335 = vmatpush2.msra.mxu0 %v2216
    %2336 = vmatprep.subr.mxu0 %v2215
    %2337 = vmatpush2.msra.mxu0 %v2214
    %2338 = vmatprep.subr.mxu0 %v2213
    %2339 = vmatpush2.msra.mxu0 %v2212
    %2340 = vmatprep.subr.mxu0 %v2211
    %2341 = vmatpush2.msra.mxu0 %v2210
    %2342 = vmatprep.subr.mxu0 %v2209
    %2343 = vmatpush2.msra.mxu0 %v2208
    %2344 = vmatprep.subr.mxu0 %v2207
    %2345 = vmatpush2.msra.mxu0 %v2206
    %2346 = vmatprep.subr.mxu0 %v2205
    %2347 = vmatpush2.msra.mxu0 %v2204
    %2348 = vmatprep.subr.mxu0 %v2203
    %2349 = vmatpush2.msra.mxu0 %v2202
    %2350 = vmatprep.subr.mxu0 %v2201
    %2351 = vmatpush2.msra.mxu0 %v2200
    %2352 = vmatprep.subr.mxu0 %v2199
    %2353 = vmatpush2.msra.mxu0 %v2198
    %2354 = vmatprep.subr.mxu0 %v2197
    %2355 = vmatpush2.msra.mxu0 %v2196
    %2356 = vmatprep.subr.mxu0 %v2195
    %2357 = vmatpush2.msra.mxu0 %v2194
    %2358 = vmatprep.mubr.f32.mxu0 %v2251
    %2359 = vmatmul.mubr.f32.gmra.mxu0 %v2238
    %v2360 = vpop.f32.mrf.mxu0
    %v2361 = vadd.f32 0.0, %v2360
    %v2362 = vpop.f32.mrf.mxu0
    %v2363 = vadd.f32 0.0, %v2362
    %2364 = vdwg.mxu0
    %v2365 = vmul.f32 %v2361, 0.00048828125
    %v2366 = vmul.f32 %v2363, 0.00048828125
    %2367 = vmatprep.subr.mxu0 %v2193
    %2368 = vmatpush1.msra.mxu0 %v2192
    %2369 = vmatprep.subr.mxu0 %v2191
    %2370 = vmatpush1.msra.mxu0 %v2190
    %2371 = vmatprep.subr.mxu0 %v2189
    %2372 = vmatpush1.msra.mxu0 %v2188
    %2373 = vmatprep.subr.mxu0 %v2187
    %2374 = vmatpush1.msra.mxu0 %v2186
    %2375 = vmatprep.subr.mxu0 %v2185
    %2376 = vmatpush1.msra.mxu0 %v2184
    %2377 = vmatprep.subr.mxu0 %v2183
    %2378 = vmatpush1.msra.mxu0 %v2182
    %2379 = vmatprep.subr.mxu0 %v2181
    %2380 = vmatpush1.msra.mxu0 %v2180
    %2381 = vmatprep.subr.mxu0 %v2179
    %2382 = vmatpush1.msra.mxu0 %v2178
    %2383 = vmatprep.subr.mxu0 %v2177
    %2384 = vmatpush1.msra.mxu0 %v2176
    %2385 = vmatprep.subr.mxu0 %v2175
    %2386 = vmatpush1.msra.mxu0 %v2174
    %2387 = vmatprep.subr.mxu0 %v2173
    %2388 = vmatpush1.msra.mxu0 %v2172
    %2389 = vmatprep.subr.mxu0 %v2171
    %2390 = vmatpush1.msra.mxu0 %v2170
    %2391 = vmatprep.subr.mxu0 %v2169
    %2392 = vmatpush1.msra.mxu0 %v2168
    %2393 = vmatprep.subr.mxu0 %v2167
    %2394 = vmatpush1.msra.mxu0 %v2166
    %2395 = vmatprep.subr.mxu0 %v2165
    %2396 = vmatpush1.msra.mxu0 %v2164
    %2397 = vmatprep.subr.mxu0 %v2163
    %2398 = vmatpush1.msra.mxu0 %v2162
    %2399 = vmatprep.subr.mxu0 %v2225
    %2400 = vmatpush2.msra.mxu0 %v2224
    %2401 = vmatprep.subr.mxu0 %v2223
    %2402 = vmatpush2.msra.mxu0 %v2222
    %2403 = vmatprep.subr.mxu0 %v2221
    %2404 = vmatpush2.msra.mxu0 %v2220
    %2405 = vmatprep.subr.mxu0 %v2219
    %2406 = vmatpush2.msra.mxu0 %v2218
    %2407 = vmatprep.subr.mxu0 %v2217
    %2408 = vmatpush2.msra.mxu0 %v2216
    %2409 = vmatprep.subr.mxu0 %v2215
    %2410 = vmatpush2.msra.mxu0 %v2214
    %2411 = vmatprep.subr.mxu0 %v2213
    %2412 = vmatpush2.msra.mxu0 %v2212
    %2413 = vmatprep.subr.mxu0 %v2211
    %2414 = vmatpush2.msra.mxu0 %v2210
    %2415 = vmatprep.subr.mxu0 %v2209
    %2416 = vmatpush2.msra.mxu0 %v2208
    %2417 = vmatprep.subr.mxu0 %v2207
    %2418 = vmatpush2.msra.mxu0 %v2206
    %2419 = vmatprep.subr.mxu0 %v2205
    %2420 = vmatpush2.msra.mxu0 %v2204
    %2421 = vmatprep.subr.mxu0 %v2203
    %2422 = vmatpush2.msra.mxu0 %v2202
    %2423 = vmatprep.subr.mxu0 %v2201
    %2424 = vmatpush2.msra.mxu0 %v2200
    %2425 = vmatprep.subr.mxu0 %v2199
    %2426 = vmatpush2.msra.mxu0 %v2198
    %2427 = vmatprep.subr.mxu0 %v2197
    %2428 = vmatpush2.msra.mxu0 %v2196
    %2429 = vmatprep.subr.mxu0 %v2195
    %2430 = vmatpush2.msra.mxu0 %v2194
    %2431 = vmatprep.mubr.f32.mxu0 %v2293
    %2432 = vmatmul.mubr.f32.gmra.mxu0 %v2280
    %v2433 = vpop.f32.mrf.mxu0
    %v2434 = vadd.f32 0.0, %v2433
    %v2435 = vpop.f32.mrf.mxu0
    %v2436 = vadd.f32 0.0, %v2435
    %2437 = vdwg.mxu0
    %v2438 = vmul.f32 %v2434, 0.00048828125
    %v2439 = vmul.f32 %v2436, 0.00048828125
    %v2440 = vmul.f32 %v2365, %v2365
    %v2441 = vmul.f32 %v2366, %v2366
    %v2442 = vsub.f32 %v2438, %v2440
    %v2443 = vsub.f32 %v2439, %v2441
    %v2444 = vadd.f32 %v2442, 1e-05
    %v2445 = vadd.f32 %v2443, 1e-05
    %v2446 = vrsqrt.pop %v2444
    %v2447 = vrsqrt.pop %v2445
    %v2448 = vld [vmem:[%s15] sm:$0x3]
    %v2450 = vlaneseq
    %v2451 = vshrl.u32 %v2450, 7
    %v2452 = vsub.s32 0, %v2451
    %v2453 = vrot.slane %v2448, %v2452
    %v2454 = vlaneseq
    %v2455 = vshrl.u32 %v2454, 7
    %v2456 = vsub.s32 1, %v2455
    %v2457 = vrot.slane %v2448, %v2456
    %v2460 = vmul.f32 %v2446, %v2453
    %v2461 = vmul.f32 %v2447, %v2457
    %v2462 = vlaneseq
    %v2463 = vshrl.u32 %v2462, 7
    %v2464 = vsub.s32 0, %v2463
    %v2465 = vrot.slane %v2365, %v2464
    %v2466 = vlaneseq
    %v2467 = vshrl.u32 %v2466, 7
    %v2468 = vsub.s32 0, %v2467
    %v2469 = vrot.slane %v2366, %v2468
    %v2470 = vsub.f32 %v2146, %v2465
    %v2471 = vsub.f32 %v2147, %v2469
    %v2472 = vsub.f32 %v2148, %v2465
    %v2473 = vsub.f32 %v2149, %v2469
    %v2474 = vsub.f32 %v2150, %v2465
    %v2475 = vsub.f32 %v2151, %v2469
    %v2476 = vsub.f32 %v2152, %v2465
    %v2477 = vsub.f32 %v2153, %v2469
    %v2478 = vsub.f32 %v2154, %v2465
    %v2479 = vsub.f32 %v2155, %v2469
    %v2480 = vsub.f32 %v2156, %v2465
    %v2481 = vsub.f32 %v2157, %v2469
    %v2482 = vsub.f32 %v2158, %v2465
    %v2483 = vsub.f32 %v2159, %v2469
    %v2484 = vsub.f32 %v2160, %v2465
    %v2485 = vsub.f32 %v2161, %v2469
    %v2486 = vlaneseq
    %v2487 = vshrl.u32 %v2486, 7
    %v2488 = vsub.s32 0, %v2487
    %v2489 = vrot.slane %v2460, %v2488
    %v2490 = vlaneseq
    %v2491 = vshrl.u32 %v2490, 7
    %v2492 = vsub.s32 0, %v2491
    %v2493 = vrot.slane %v2461, %v2492
    %v2494 = vmul.f32 %v2470, %v2489
    %v2495 = vmul.f32 %v2471, %v2493
    %v2496 = vmul.f32 %v2472, %v2489
    %v2497 = vmul.f32 %v2473, %v2493
    %v2498 = vmul.f32 %v2474, %v2489
    %v2499 = vmul.f32 %v2475, %v2493
    %v2500 = vmul.f32 %v2476, %v2489
    %v2501 = vmul.f32 %v2477, %v2493
    %v2502 = vmul.f32 %v2478, %v2489
    %v2503 = vmul.f32 %v2479, %v2493
    %v2504 = vmul.f32 %v2480, %v2489
    %v2505 = vmul.f32 %v2481, %v2493
    %v2506 = vmul.f32 %v2482, %v2489
    %v2507 = vmul.f32 %v2483, %v2493
    %v2508 = vmul.f32 %v2484, %v2489
    %v2509 = vmul.f32 %v2485, %v2493
    %v2510 = vld [vmem:[%s16] sm:$0x3]
    %v2512 = vlaneseq
    %v2513 = vshrl.u32 %v2512, 7
    %v2514 = vsub.s32 0, %v2513
    %v2515 = vrot.slane %v2510, %v2514
    %v2516 = vlaneseq
    %v2517 = vshrl.u32 %v2516, 7
    %v2518 = vsub.s32 1, %v2517
    %v2519 = vrot.slane %v2510, %v2518
    %v2522 = vadd.f32 %v2494, %v2515
    %v2523 = vadd.f32 %v2495, %v2519
    %v2524 = vadd.f32 %v2496, %v2515
    %v2525 = vadd.f32 %v2497, %v2519
    %v2526 = vadd.f32 %v2498, %v2515
    %v2527 = vadd.f32 %v2499, %v2519
    %v2528 = vadd.f32 %v2500, %v2515
    %v2529 = vadd.f32 %v2501, %v2519
    %v2530 = vadd.f32 %v2502, %v2515
    %v2531 = vadd.f32 %v2503, %v2519
    %v2532 = vadd.f32 %v2504, %v2515
    %v2533 = vadd.f32 %v2505, %v2519
    %v2534 = vadd.f32 %v2506, %v2515
    %v2535 = vadd.f32 %v2507, %v2519
    %v2536 = vadd.f32 %v2508, %v2515
    %v2537 = vadd.f32 %v2509, %v2519
    %vm2538 = vcmp.gt.f32.partialorder %v2522, 0.0
    %vm2539 = vcmp.gt.f32.partialorder %v2523, 0.0
    %vm2540 = vcmp.gt.f32.partialorder %v2524, 0.0
    %vm2541 = vcmp.gt.f32.partialorder %v2525, 0.0
    %vm2542 = vcmp.gt.f32.partialorder %v2526, 0.0
    %vm2543 = vcmp.gt.f32.partialorder %v2527, 0.0
    %vm2544 = vcmp.gt.f32.partialorder %v2528, 0.0
    %vm2545 = vcmp.gt.f32.partialorder %v2529, 0.0
    %vm2546 = vcmp.gt.f32.partialorder %v2530, 0.0
    %vm2547 = vcmp.gt.f32.partialorder %v2531, 0.0
    %vm2548 = vcmp.gt.f32.partialorder %v2532, 0.0
    %vm2549 = vcmp.gt.f32.partialorder %v2533, 0.0
    %vm2550 = vcmp.gt.f32.partialorder %v2534, 0.0
    %vm2551 = vcmp.gt.f32.partialorder %v2535, 0.0
    %vm2552 = vcmp.gt.f32.partialorder %v2536, 0.0
    %vm2553 = vcmp.gt.f32.partialorder %v2537, 0.0
    %v2554 = vmul.f32 %v2522, 0.2
    %v2555 = vmul.f32 %v2523, 0.2
    %v2556 = vmul.f32 %v2524, 0.2
    %v2557 = vmul.f32 %v2525, 0.2
    %v2558 = vmul.f32 %v2526, 0.2
    %v2559 = vmul.f32 %v2527, 0.2
    %v2560 = vmul.f32 %v2528, 0.2
    %v2561 = vmul.f32 %v2529, 0.2
    %v2562 = vmul.f32 %v2530, 0.2
    %v2563 = vmul.f32 %v2531, 0.2
    %v2564 = vmul.f32 %v2532, 0.2
    %v2565 = vmul.f32 %v2533, 0.2
    %v2566 = vmul.f32 %v2534, 0.2
    %v2567 = vmul.f32 %v2535, 0.2
    %v2568 = vmul.f32 %v2536, 0.2
    %v2569 = vmul.f32 %v2537, 0.2
    %v2570 = vsel %vm2538, %v2522, %v2554
    %v2571 = vsel %vm2539, %v2523, %v2555
    %v2572 = vsel %vm2540, %v2524, %v2556
    %v2573 = vsel %vm2541, %v2525, %v2557
    %v2574 = vsel %vm2542, %v2526, %v2558
    %v2575 = vsel %vm2543, %v2527, %v2559
    %v2576 = vsel %vm2544, %v2528, %v2560
    %v2577 = vsel %vm2545, %v2529, %v2561
    %v2578 = vsel %vm2546, %v2530, %v2562
    %v2579 = vsel %vm2547, %v2531, %v2563
    %v2580 = vsel %vm2548, %v2532, %v2564
    %v2581 = vsel %vm2549, %v2533, %v2565
    %v2582 = vsel %vm2550, %v2534, %v2566
    %v2583 = vsel %vm2551, %v2535, %v2567
    %v2584 = vsel %vm2552, %v2536, %v2568
    %v2585 = vsel %vm2553, %v2537, %v2569
    %v2586 = vld [vmem:[%s18] sm:$0xff]
    %v2587 = vld [vmem:[%s18 + $0x8] sm:$0xff]
    %v2588 = vld [vmem:[%s18 + $0x10] sm:$0xff]
    %v2589 = vld [vmem:[%s18 + $0x18] sm:$0xff]
    %v2590 = vld [vmem:[%s18 + $0x20] sm:$0xff]
    %v2591 = vld [vmem:[%s18 + $0x28] sm:$0xff]
    %v2592 = vld [vmem:[%s18 + $0x30] sm:$0xff]
    %v2593 = vld [vmem:[%s18 + $0x38] sm:$0xff]
    %v2594 = vld [vmem:[#allocation18] sm:$0xff]
    %v2595 = vld [vmem:[#allocation18 + $0x8] sm:$0xff]
    %v2596 = vld [vmem:[#allocation18 + $0x10] sm:$0xff]
    %v2597 = vld [vmem:[#allocation18 + $0x18] sm:$0xff]
    %v2598 = vld [vmem:[#allocation18 + $0x20] sm:$0xff]
    %v2599 = vld [vmem:[#allocation18 + $0x28] sm:$0xff]
    %v2600 = vld [vmem:[#allocation18 + $0x30] sm:$0xff]
    %v2601 = vld [vmem:[#allocation18 + $0x38] sm:$0xff]
    %v2602 = vld [vmem:[#allocation18 + $0x40] sm:$0xff]
    %v2603 = vld [vmem:[#allocation18 + $0x48] sm:$0xff]
    %v2604 = vld [vmem:[#allocation18 + $0x50] sm:$0xff]
    %v2605 = vld [vmem:[#allocation18 + $0x58] sm:$0xff]
    %v2606 = vld [vmem:[#allocation18 + $0x60] sm:$0xff]
    %v2607 = vld [vmem:[#allocation18 + $0x68] sm:$0xff]
    %v2608 = vld [vmem:[#allocation18 + $0x70] sm:$0xff]
    %v2609 = vld [vmem:[#allocation18 + $0x78] sm:$0xff]
    %v2610 = vld [vmem:[#allocation18 + $0x80] sm:$0xff]
    %v2611 = vld [vmem:[#allocation18 + $0x88] sm:$0xff]
    %v2612 = vld [vmem:[#allocation18 + $0x90] sm:$0xff]
    %v2613 = vld [vmem:[#allocation18 + $0x98] sm:$0xff]
    %v2614 = vld [vmem:[#allocation18 + $0xa0] sm:$0xff]
    %v2615 = vld [vmem:[#allocation18 + $0xa8] sm:$0xff]
    %v2616 = vld [vmem:[#allocation18 + $0xb0] sm:$0xff]
    %v2617 = vld [vmem:[#allocation18 + $0xb8] sm:$0xff]
    %v2618 = vld [vmem:[#allocation18 + $0xc0] sm:$0xff]
    %v2619 = vld [vmem:[#allocation18 + $0xc8] sm:$0xff]
    %v2620 = vld [vmem:[#allocation18 + $0xd0] sm:$0xff]
    %v2621 = vld [vmem:[#allocation18 + $0xd8] sm:$0xff]
    %v2622 = vld [vmem:[#allocation18 + $0xe0] sm:$0xff]
    %v2623 = vld [vmem:[#allocation18 + $0xe8] sm:$0xff]
    %v2624 = vld [vmem:[#allocation18 + $0xf0] sm:$0xff]
    %v2625 = vld [vmem:[#allocation18 + $0xf8] sm:$0xff]
    %v2626 = vld [vmem:[#allocation18 + $0x100] sm:$0xff]
    %v2627 = vld [vmem:[#allocation18 + $0x108] sm:$0xff]
    %v2628 = vld [vmem:[#allocation18 + $0x110] sm:$0xff]
    %v2629 = vld [vmem:[#allocation18 + $0x118] sm:$0xff]
    %v2630 = vld [vmem:[#allocation18 + $0x120] sm:$0xff]
    %v2631 = vld [vmem:[#allocation18 + $0x128] sm:$0xff]
    %v2632 = vld [vmem:[#allocation18 + $0x130] sm:$0xff]
    %v2633 = vld [vmem:[#allocation18 + $0x138] sm:$0xff]
    %v2634 = vld [vmem:[#allocation18 + $0x140] sm:$0xff]
    %v2635 = vld [vmem:[#allocation18 + $0x148] sm:$0xff]
    %v2636 = vld [vmem:[#allocation18 + $0x150] sm:$0xff]
    %v2637 = vld [vmem:[#allocation18 + $0x158] sm:$0xff]
    %v2638 = vld [vmem:[#allocation18 + $0x160] sm:$0xff]
    %v2639 = vld [vmem:[#allocation18 + $0x168] sm:$0xff]
    %v2640 = vld [vmem:[#allocation18 + $0x170] sm:$0xff]
    %v2641 = vld [vmem:[#allocation18 + $0x178] sm:$0xff]
    %v2642 = vld [vmem:[#allocation18 + $0x180] sm:$0xff]
    %v2643 = vld [vmem:[#allocation18 + $0x188] sm:$0xff]
    %v2644 = vld [vmem:[#allocation18 + $0x190] sm:$0xff]
    %v2645 = vld [vmem:[#allocation18 + $0x198] sm:$0xff]
    %v2646 = vld [vmem:[#allocation18 + $0x1a0] sm:$0xff]
    %v2647 = vld [vmem:[#allocation18 + $0x1a8] sm:$0xff]
    %v2648 = vld [vmem:[#allocation18 + $0x1b0] sm:$0xff]
    %v2649 = vld [vmem:[#allocation18 + $0x1b8] sm:$0xff]
    %v2650 = vld [vmem:[#allocation18 + $0x1c0] sm:$0xff]
    %v2651 = vld [vmem:[#allocation18 + $0x1c8] sm:$0xff]
    %v2652 = vld [vmem:[#allocation18 + $0x1d0] sm:$0xff]
    %v2653 = vld [vmem:[#allocation18 + $0x1d8] sm:$0xff]
    %v2654 = vld [vmem:[#allocation18 + $0x1e0] sm:$0xff]
    %v2655 = vld [vmem:[#allocation18 + $0x1e8] sm:$0xff]
    %v2656 = vld [vmem:[#allocation18 + $0x1f0] sm:$0xff]
    %v2657 = vld [vmem:[#allocation18 + $0x1f8] sm:$0xff]
    %2658 = vmatprep.subr.mxu0 %v2625
    %2659 = vmatpush1.msra.mxu0 %v2624
    %2660 = vmatprep.subr.mxu0 %v2623
    %2661 = vmatpush1.msra.mxu0 %v2622
    %2662 = vmatprep.subr.mxu0 %v2621
    %2663 = vmatpush1.msra.mxu0 %v2620
    %2664 = vmatprep.subr.mxu0 %v2619
    %2665 = vmatpush1.msra.mxu0 %v2618
    %2666 = vmatprep.subr.mxu0 %v2617
    %2667 = vmatpush1.msra.mxu0 %v2616
    %2668 = vmatprep.subr.mxu0 %v2615
    %2669 = vmatpush1.msra.mxu0 %v2614
    %2670 = vmatprep.subr.mxu0 %v2613
    %2671 = vmatpush1.msra.mxu0 %v2612
    %2672 = vmatprep.subr.mxu0 %v2611
    %2673 = vmatpush1.msra.mxu0 %v2610
    %2674 = vmatprep.subr.mxu0 %v2609
    %2675 = vmatpush1.msra.mxu0 %v2608
    %2676 = vmatprep.subr.mxu0 %v2607
    %2677 = vmatpush1.msra.mxu0 %v2606
    %2678 = vmatprep.subr.mxu0 %v2605
    %2679 = vmatpush1.msra.mxu0 %v2604
    %2680 = vmatprep.subr.mxu0 %v2603
    %2681 = vmatpush1.msra.mxu0 %v2602
    %2682 = vmatprep.subr.mxu0 %v2601
    %2683 = vmatpush1.msra.mxu0 %v2600
    %2684 = vmatprep.subr.mxu0 %v2599
    %2685 = vmatpush1.msra.mxu0 %v2598
    %2686 = vmatprep.subr.mxu0 %v2597
    %2687 = vmatpush1.msra.mxu0 %v2596
    %2688 = vmatprep.subr.mxu0 %v2595
    %2689 = vmatpush1.msra.mxu0 %v2594
    %2690 = vmatprep.subr.mxu0 %v2657
    %2691 = vmatpush2.msra.mxu0 %v2656
    %2692 = vmatprep.subr.mxu0 %v2655
    %2693 = vmatpush2.msra.mxu0 %v2654
    %2694 = vmatprep.subr.mxu0 %v2653
    %2695 = vmatpush2.msra.mxu0 %v2652
    %2696 = vmatprep.subr.mxu0 %v2651
    %2697 = vmatpush2.msra.mxu0 %v2650
    %2698 = vmatprep.subr.mxu0 %v2649
    %2699 = vmatpush2.msra.mxu0 %v2648
    %2700 = vmatprep.subr.mxu0 %v2647
    %2701 = vmatpush2.msra.mxu0 %v2646
    %2702 = vmatprep.subr.mxu0 %v2645
    %2703 = vmatpush2.msra.mxu0 %v2644
    %2704 = vmatprep.subr.mxu0 %v2643
    %2705 = vmatpush2.msra.mxu0 %v2642
    %2706 = vmatprep.subr.mxu0 %v2641
    %2707 = vmatpush2.msra.mxu0 %v2640
    %2708 = vmatprep.subr.mxu0 %v2639
    %2709 = vmatpush2.msra.mxu0 %v2638
    %2710 = vmatprep.subr.mxu0 %v2637
    %2711 = vmatpush2.msra.mxu0 %v2636
    %2712 = vmatprep.subr.mxu0 %v2635
    %2713 = vmatpush2.msra.mxu0 %v2634
    %2714 = vmatprep.subr.mxu0 %v2633
    %2715 = vmatpush2.msra.mxu0 %v2632
    %2716 = vmatprep.subr.mxu0 %v2631
    %2717 = vmatpush2.msra.mxu0 %v2630
    %2718 = vmatprep.subr.mxu0 %v2629
    %2719 = vmatpush2.msra.mxu0 %v2628
    %2720 = vmatprep.subr.mxu0 %v2627
    %2721 = vmatpush2.msra.mxu0 %v2626
    %2722 = vmatprep.mubr.f32.mxu0 %v2571
    %2723 = vmatmul.mubr.f32.gmra.mxu0 %v2570
    %v2724 = vpop.f32.mrf.mxu0
    %v2725 = vadd.f32 0.0, %v2724
    %v2726 = vpop.f32.mrf.mxu0
    %v2727 = vadd.f32 0.0, %v2726
    %2728 = vmatprep.mubr.f32.mxu0 %v2573
    %2729 = vmatmul.mubr.f32.gmra.mxu0 %v2572
    %v2730 = vpop.f32.mrf.mxu0
    %v2731 = vadd.f32 0.0, %v2730
    %v2732 = vpop.f32.mrf.mxu0
    %v2733 = vadd.f32 0.0, %v2732
    %2734 = vmatprep.mubr.f32.mxu0 %v2575
    %2735 = vmatmul.mubr.f32.gmra.mxu0 %v2574
    %v2736 = vpop.f32.mrf.mxu0
    %v2737 = vadd.f32 0.0, %v2736
    %v2738 = vpop.f32.mrf.mxu0
    %v2739 = vadd.f32 0.0, %v2738
    %2740 = vmatprep.mubr.f32.mxu0 %v2577
    %2741 = vmatmul.mubr.f32.gmra.mxu0 %v2576
    %v2742 = vpop.f32.mrf.mxu0
    %v2743 = vadd.f32 0.0, %v2742
    %v2744 = vpop.f32.mrf.mxu0
    %v2745 = vadd.f32 0.0, %v2744
    %2746 = vmatprep.mubr.f32.mxu0 %v2579
    %2747 = vmatmul.mubr.f32.gmra.mxu0 %v2578
    %v2748 = vpop.f32.mrf.mxu0
    %v2749 = vadd.f32 0.0, %v2748
    %v2750 = vpop.f32.mrf.mxu0
    %v2751 = vadd.f32 0.0, %v2750
    %2752 = vmatprep.mubr.f32.mxu0 %v2581
    %2753 = vmatmul.mubr.f32.gmra.mxu0 %v2580
    %v2754 = vpop.f32.mrf.mxu0
    %v2755 = vadd.f32 0.0, %v2754
    %v2756 = vpop.f32.mrf.mxu0
    %v2757 = vadd.f32 0.0, %v2756
    %2758 = vmatprep.mubr.f32.mxu0 %v2583
    %2759 = vmatmul.mubr.f32.gmra.mxu0 %v2582
    %v2760 = vpop.f32.mrf.mxu0
    %v2761 = vadd.f32 0.0, %v2760
    %v2762 = vpop.f32.mrf.mxu0
    %v2763 = vadd.f32 0.0, %v2762
    %2764 = vmatprep.mubr.f32.mxu0 %v2585
    %2765 = vmatmul.mubr.f32.gmra.mxu0 %v2584
    %v2766 = vpop.f32.mrf.mxu0
    %v2767 = vadd.f32 0.0, %v2766
    %v2768 = vpop.f32.mrf.mxu0
    %v2769 = vadd.f32 0.0, %v2768
    %2770 = vdwg.mxu0
    %s2771 = scalar_lea.vmem %s18, 64
    %v2772 = vld [vmem:[%s2771] sm:$0xff]
    %v2773 = vld [vmem:[%s2771 + $0x8] sm:$0xff]
    %v2774 = vld [vmem:[%s2771 + $0x10] sm:$0xff]
    %v2775 = vld [vmem:[%s2771 + $0x18] sm:$0xff]
    %v2776 = vld [vmem:[%s2771 + $0x20] sm:$0xff]
    %v2777 = vld [vmem:[%s2771 + $0x28] sm:$0xff]
    %v2778 = vld [vmem:[%s2771 + $0x30] sm:$0xff]
    %v2779 = vld [vmem:[%s2771 + $0x38] sm:$0xff]
    %s2780 = scalar_lea.vmem [#allocation18], 512
    %v2781 = vld [vmem:[%s2780] sm:$0xff]
    %v2782 = vld [vmem:[%s2780 + $0x8] sm:$0xff]
    %v2783 = vld [vmem:[%s2780 + $0x10] sm:$0xff]
    %v2784 = vld [vmem:[%s2780 + $0x18] sm:$0xff]
    %v2785 = vld [vmem:[%s2780 + $0x20] sm:$0xff]
    %v2786 = vld [vmem:[%s2780 + $0x28] sm:$0xff]
    %v2787 = vld [vmem:[%s2780 + $0x30] sm:$0xff]
    %v2788 = vld [vmem:[%s2780 + $0x38] sm:$0xff]
    %v2789 = vld [vmem:[%s2780 + $0x40] sm:$0xff]
    %v2790 = vld [vmem:[%s2780 + $0x48] sm:$0xff]
    %v2791 = vld [vmem:[%s2780 + $0x50] sm:$0xff]
    %v2792 = vld [vmem:[%s2780 + $0x58] sm:$0xff]
    %v2793 = vld [vmem:[%s2780 + $0x60] sm:$0xff]
    %v2794 = vld [vmem:[%s2780 + $0x68] sm:$0xff]
    %v2795 = vld [vmem:[%s2780 + $0x70] sm:$0xff]
    %v2796 = vld [vmem:[%s2780 + $0x78] sm:$0xff]
    %v2797 = vld [vmem:[%s2780 + $0x80] sm:$0xff]
    %v2798 = vld [vmem:[%s2780 + $0x88] sm:$0xff]
    %v2799 = vld [vmem:[%s2780 + $0x90] sm:$0xff]
    %v2800 = vld [vmem:[%s2780 + $0x98] sm:$0xff]
    %v2801 = vld [vmem:[%s2780 + $0xa0] sm:$0xff]
    %v2802 = vld [vmem:[%s2780 + $0xa8] sm:$0xff]
    %v2803 = vld [vmem:[%s2780 + $0xb0] sm:$0xff]
    %v2804 = vld [vmem:[%s2780 + $0xb8] sm:$0xff]
    %v2805 = vld [vmem:[%s2780 + $0xc0] sm:$0xff]
    %v2806 = vld [vmem:[%s2780 + $0xc8] sm:$0xff]
    %v2807 = vld [vmem:[%s2780 + $0xd0] sm:$0xff]
    %v2808 = vld [vmem:[%s2780 + $0xd8] sm:$0xff]
    %v2809 = vld [vmem:[%s2780 + $0xe0] sm:$0xff]
    %v2810 = vld [vmem:[%s2780 + $0xe8] sm:$0xff]
    %v2811 = vld [vmem:[%s2780 + $0xf0] sm:$0xff]
    %v2812 = vld [vmem:[%s2780 + $0xf8] sm:$0xff]
    %v2813 = vld [vmem:[%s2780 + $0x100] sm:$0xff]
    %v2814 = vld [vmem:[%s2780 + $0x108] sm:$0xff]
    %v2815 = vld [vmem:[%s2780 + $0x110] sm:$0xff]
    %v2816 = vld [vmem:[%s2780 + $0x118] sm:$0xff]
    %v2817 = vld [vmem:[%s2780 + $0x120] sm:$0xff]
    %v2818 = vld [vmem:[%s2780 + $0x128] sm:$0xff]
    %v2819 = vld [vmem:[%s2780 + $0x130] sm:$0xff]
    %v2820 = vld [vmem:[%s2780 + $0x138] sm:$0xff]
    %v2821 = vld [vmem:[%s2780 + $0x140] sm:$0xff]
    %v2822 = vld [vmem:[%s2780 + $0x148] sm:$0xff]
    %v2823 = vld [vmem:[%s2780 + $0x150] sm:$0xff]
    %v2824 = vld [vmem:[%s2780 + $0x158] sm:$0xff]
    %v2825 = vld [vmem:[%s2780 + $0x160] sm:$0xff]
    %v2826 = vld [vmem:[%s2780 + $0x168] sm:$0xff]
    %v2827 = vld [vmem:[%s2780 + $0x170] sm:$0xff]
    %v2828 = vld [vmem:[%s2780 + $0x178] sm:$0xff]
    %v2829 = vld [vmem:[%s2780 + $0x180] sm:$0xff]
    %v2830 = vld [vmem:[%s2780 + $0x188] sm:$0xff]
    %v2831 = vld [vmem:[%s2780 + $0x190] sm:$0xff]
    %v2832 = vld [vmem:[%s2780 + $0x198] sm:$0xff]
    %v2833 = vld [vmem:[%s2780 + $0x1a0] sm:$0xff]
    %v2834 = vld [vmem:[%s2780 + $0x1a8] sm:$0xff]
    %v2835 = vld [vmem:[%s2780 + $0x1b0] sm:$0xff]
    %v2836 = vld [vmem:[%s2780 + $0x1b8] sm:$0xff]
    %v2837 = vld [vmem:[%s2780 + $0x1c0] sm:$0xff]
    %v2838 = vld [vmem:[%s2780 + $0x1c8] sm:$0xff]
    %v2839 = vld [vmem:[%s2780 + $0x1d0] sm:$0xff]
    %v2840 = vld [vmem:[%s2780 + $0x1d8] sm:$0xff]
    %v2841 = vld [vmem:[%s2780 + $0x1e0] sm:$0xff]
    %v2842 = vld [vmem:[%s2780 + $0x1e8] sm:$0xff]
    %v2843 = vld [vmem:[%s2780 + $0x1f0] sm:$0xff]
    %v2844 = vld [vmem:[%s2780 + $0x1f8] sm:$0xff]
    %2845 = vmatprep.subr.mxu0 %v2812
    %2846 = vmatpush1.msra.mxu0 %v2811
    %2847 = vmatprep.subr.mxu0 %v2810
    %2848 = vmatpush1.msra.mxu0 %v2809
    %2849 = vmatprep.subr.mxu0 %v2808
    %2850 = vmatpush1.msra.mxu0 %v2807
    %2851 = vmatprep.subr.mxu0 %v2806
    %2852 = vmatpush1.msra.mxu0 %v2805
    %2853 = vmatprep.subr.mxu0 %v2804
    %2854 = vmatpush1.msra.mxu0 %v2803
    %2855 = vmatprep.subr.mxu0 %v2802
    %2856 = vmatpush1.msra.mxu0 %v2801
    %2857 = vmatprep.subr.mxu0 %v2800
    %2858 = vmatpush1.msra.mxu0 %v2799
    %2859 = vmatprep.subr.mxu0 %v2798
    %2860 = vmatpush1.msra.mxu0 %v2797
    %2861 = vmatprep.subr.mxu0 %v2796
    %2862 = vmatpush1.msra.mxu0 %v2795
    %2863 = vmatprep.subr.mxu0 %v2794
    %2864 = vmatpush1.msra.mxu0 %v2793
    %2865 = vmatprep.subr.mxu0 %v2792
    %2866 = vmatpush1.msra.mxu0 %v2791
    %2867 = vmatprep.subr.mxu0 %v2790
    %2868 = vmatpush1.msra.mxu0 %v2789
    %2869 = vmatprep.subr.mxu0 %v2788
    %2870 = vmatpush1.msra.mxu0 %v2787
    %2871 = vmatprep.subr.mxu0 %v2786
    %2872 = vmatpush1.msra.mxu0 %v2785
    %2873 = vmatprep.subr.mxu0 %v2784
    %2874 = vmatpush1.msra.mxu0 %v2783
    %2875 = vmatprep.subr.mxu0 %v2782
    %2876 = vmatpush1.msra.mxu0 %v2781
    %2877 = vmatprep.subr.mxu0 %v2844
    %2878 = vmatpush2.msra.mxu0 %v2843
    %2879 = vmatprep.subr.mxu0 %v2842
    %2880 = vmatpush2.msra.mxu0 %v2841
    %2881 = vmatprep.subr.mxu0 %v2840
    %2882 = vmatpush2.msra.mxu0 %v2839
    %2883 = vmatprep.subr.mxu0 %v2838
    %2884 = vmatpush2.msra.mxu0 %v2837
    %2885 = vmatprep.subr.mxu0 %v2836
    %2886 = vmatpush2.msra.mxu0 %v2835
    %2887 = vmatprep.subr.mxu0 %v2834
    %2888 = vmatpush2.msra.mxu0 %v2833
    %2889 = vmatprep.subr.mxu0 %v2832
    %2890 = vmatpush2.msra.mxu0 %v2831
    %2891 = vmatprep.subr.mxu0 %v2830
    %2892 = vmatpush2.msra.mxu0 %v2829
    %2893 = vmatprep.subr.mxu0 %v2828
    %2894 = vmatpush2.msra.mxu0 %v2827
    %2895 = vmatprep.subr.mxu0 %v2826
    %2896 = vmatpush2.msra.mxu0 %v2825
    %2897 = vmatprep.subr.mxu0 %v2824
    %2898 = vmatpush2.msra.mxu0 %v2823
    %2899 = vmatprep.subr.mxu0 %v2822
    %2900 = vmatpush2.msra.mxu0 %v2821
    %2901 = vmatprep.subr.mxu0 %v2820
    %2902 = vmatpush2.msra.mxu0 %v2819
    %2903 = vmatprep.subr.mxu0 %v2818
    %2904 = vmatpush2.msra.mxu0 %v2817
    %2905 = vmatprep.subr.mxu0 %v2816
    %2906 = vmatpush2.msra.mxu0 %v2815
    %2907 = vmatprep.subr.mxu0 %v2814
    %2908 = vmatpush2.msra.mxu0 %v2813
    %2909 = vmatprep.mubr.f32.mxu0 %v2571
    %2910 = vmatmul.mubr.f32.gmra.mxu0 %v2570
    %v2911 = vpop.f32.mrf.mxu0
    %v2912 = vadd.f32 0.0, %v2911
    %v2913 = vpop.f32.mrf.mxu0
    %v2914 = vadd.f32 0.0, %v2913
    %2915 = vmatprep.mubr.f32.mxu0 %v2573
    %2916 = vmatmul.mubr.f32.gmra.mxu0 %v2572
    %v2917 = vpop.f32.mrf.mxu0
    %v2918 = vadd.f32 0.0, %v2917
    %v2919 = vpop.f32.mrf.mxu0
    %v2920 = vadd.f32 0.0, %v2919
    %2921 = vmatprep.mubr.f32.mxu0 %v2575
    %2922 = vmatmul.mubr.f32.gmra.mxu0 %v2574
    %v2923 = vpop.f32.mrf.mxu0
    %v2924 = vadd.f32 0.0, %v2923
    %v2925 = vpop.f32.mrf.mxu0
    %v2926 = vadd.f32 0.0, %v2925
    %2927 = vmatprep.mubr.f32.mxu0 %v2577
    %2928 = vmatmul.mubr.f32.gmra.mxu0 %v2576
    %v2929 = vpop.f32.mrf.mxu0
    %v2930 = vadd.f32 0.0, %v2929
    %v2931 = vpop.f32.mrf.mxu0
    %v2932 = vadd.f32 0.0, %v2931
    %2933 = vmatprep.mubr.f32.mxu0 %v2579
    %2934 = vmatmul.mubr.f32.gmra.mxu0 %v2578
    %v2935 = vpop.f32.mrf.mxu0
    %v2936 = vadd.f32 0.0, %v2935
    %v2937 = vpop.f32.mrf.mxu0
    %v2938 = vadd.f32 0.0, %v2937
    %2939 = vmatprep.mubr.f32.mxu0 %v2581
    %2940 = vmatmul.mubr.f32.gmra.mxu0 %v2580
    %v2941 = vpop.f32.mrf.mxu0
    %v2942 = vadd.f32 0.0, %v2941
    %v2943 = vpop.f32.mrf.mxu0
    %v2944 = vadd.f32 0.0, %v2943
    %2945 = vmatprep.mubr.f32.mxu0 %v2583
    %2946 = vmatmul.mubr.f32.gmra.mxu0 %v2582
    %v2947 = vpop.f32.mrf.mxu0
    %v2948 = vadd.f32 0.0, %v2947
    %v2949 = vpop.f32.mrf.mxu0
    %v2950 = vadd.f32 0.0, %v2949
    %2951 = vmatprep.mubr.f32.mxu0 %v2585
    %2952 = vmatmul.mubr.f32.gmra.mxu0 %v2584
    %v2953 = vpop.f32.mrf.mxu0
    %v2954 = vadd.f32 0.0, %v2953
    %v2955 = vpop.f32.mrf.mxu0
    %v2956 = vadd.f32 0.0, %v2955
    %2957 = vdwg.mxu0
    %v2959 = vsel %vm590, %v2772, 0
    %v2962 = vsel %vm590, %v2773, 0
    %v2965 = vsel %vm590, %v2774, 0
    %v2968 = vsel %vm590, %v2775, 0
    %v2971 = vsel %vm590, %v2776, 0
    %v2974 = vsel %vm590, %v2777, 0
    %v2977 = vsel %vm590, %v2778, 0
    %v2980 = vsel %vm590, %v2779, 0
    %2982 = vmatprep.subr.mxu0 0.0
    %2983 = vmatpush1.msra.mxu0 0.0
    %2984 = vmatprep.subr.mxu0 0.0
    %2985 = vmatpush1.msra.mxu0 0.0
    %2986 = vmatprep.subr.mxu0 0.0
    %2987 = vmatpush1.msra.mxu0 0.0
    %2988 = vmatprep.subr.mxu0 0.0
    %2989 = vmatpush1.msra.mxu0 0.0
    %2990 = vmatprep.subr.mxu0 0.0
    %2991 = vmatpush1.msra.mxu0 0.0
    %2992 = vmatprep.subr.mxu0 0.0
    %2993 = vmatpush1.msra.mxu0 0.0
    %2994 = vmatprep.subr.mxu0 0.0
    %2995 = vmatpush1.msra.mxu0 0.0
    %2996 = vmatprep.subr.mxu0 0.0
    %2997 = vmatpush1.msra.mxu0 0.0
    %2998 = vmatprep.subr.mxu0 %v2956
    %2999 = vmatpush1.msra.mxu0 %v2954
    %3000 = vmatprep.subr.mxu0 %v2950
    %3001 = vmatpush1.msra.mxu0 %v2948
    %3002 = vmatprep.subr.mxu0 %v2944
    %3003 = vmatpush1.msra.mxu0 %v2942
    %3004 = vmatprep.subr.mxu0 %v2938
    %3005 = vmatpush1.msra.mxu0 %v2936
    %3006 = vmatprep.subr.mxu0 %v2932
    %3007 = vmatpush1.msra.mxu0 %v2930
    %3008 = vmatprep.subr.mxu0 %v2926
    %3009 = vmatpush1.msra.mxu0 %v2924
    %3010 = vmatprep.subr.mxu0 %v2920
    %3011 = vmatpush1.msra.mxu0 %v2918
    %3012 = vmatprep.subr.mxu0 %v2914
    %3013 = vmatpush1.msra.mxu0 %v2912
    %3014 = vmatprep.subr.mxu0 0.0
    %3015 = vmatpush2.msra.mxu0 0.0
    %3016 = vmatprep.subr.mxu0 0.0
    %3017 = vmatpush2.msra.mxu0 0.0
    %3018 = vmatprep.subr.mxu0 0.0
    %3019 = vmatpush2.msra.mxu0 0.0
    %3020 = vmatprep.subr.mxu0 0.0
    %3021 = vmatpush2.msra.mxu0 0.0
    %3022 = vmatprep.subr.mxu0 0.0
    %3023 = vmatpush2.msra.mxu0 0.0
    %3024 = vmatprep.subr.mxu0 0.0
    %3025 = vmatpush2.msra.mxu0 0.0
    %3026 = vmatprep.subr.mxu0 0.0
    %3027 = vmatpush2.msra.mxu0 0.0
    %3028 = vmatprep.subr.mxu0 0.0
    %3029 = vmatpush2.msra.mxu0 0.0
    %3030 = vmatprep.subr.mxu0 0.0
    %3031 = vmatpush2.msra.mxu0 0.0
    %3032 = vmatprep.subr.mxu0 0.0
    %3033 = vmatpush2.msra.mxu0 0.0
    %3034 = vmatprep.subr.mxu0 0.0
    %3035 = vmatpush2.msra.mxu0 0.0
    %3036 = vmatprep.subr.mxu0 0.0
    %3037 = vmatpush2.msra.mxu0 0.0
    %3038 = vmatprep.subr.mxu0 0.0
    %3039 = vmatpush2.msra.mxu0 0.0
    %3040 = vmatprep.subr.mxu0 0.0
    %3041 = vmatpush2.msra.mxu0 0.0
    %3042 = vmatprep.subr.mxu0 0.0
    %3043 = vmatpush2.msra.mxu0 0.0
    %3044 = vmatprep.subr.mxu0 0.0
    %3045 = vmatpush2.msra.mxu0 0.0
    %3046 = vmatprep.mubr.f32.mxu0 0.0
    %3047 = vmatmul.mubr.f32.gmra.mxu0 %v2959
    %v3048 = vpop.f32.mrf.mxu0
    %v3049 = vadd.f32 0.0, %v3048
    %v3050 = vpop.f32.mrf.mxu0
    %v3051 = vadd.f32 0.0, %v3050
    %3052 = vmatprep.mubr.f32.mxu0 0.0
    %3053 = vmatmul.mubr.f32.gmra.mxu0 %v2962
    %v3054 = vpop.f32.mrf.mxu0
    %v3055 = vadd.f32 0.0, %v3054
    %v3056 = vpop.f32.mrf.mxu0
    %v3057 = vadd.f32 0.0, %v3056
    %3058 = vmatprep.mubr.f32.mxu0 0.0
    %3059 = vmatmul.mubr.f32.gmra.mxu0 %v2965
    %v3060 = vpop.f32.mrf.mxu0
    %v3061 = vadd.f32 0.0, %v3060
    %v3062 = vpop.f32.mrf.mxu0
    %v3063 = vadd.f32 0.0, %v3062
    %3064 = vmatprep.mubr.f32.mxu0 0.0
    %3065 = vmatmul.mubr.f32.gmra.mxu0 %v2968
    %v3066 = vpop.f32.mrf.mxu0
    %v3067 = vadd.f32 0.0, %v3066
    %v3068 = vpop.f32.mrf.mxu0
    %v3069 = vadd.f32 0.0, %v3068
    %3070 = vmatprep.mubr.f32.mxu0 0.0
    %3071 = vmatmul.mubr.f32.gmra.mxu0 %v2971
    %v3072 = vpop.f32.mrf.mxu0
    %v3073 = vadd.f32 0.0, %v3072
    %v3074 = vpop.f32.mrf.mxu0
    %v3075 = vadd.f32 0.0, %v3074
    %3076 = vmatprep.mubr.f32.mxu0 0.0
    %3077 = vmatmul.mubr.f32.gmra.mxu0 %v2974
    %v3078 = vpop.f32.mrf.mxu0
    %v3079 = vadd.f32 0.0, %v3078
    %v3080 = vpop.f32.mrf.mxu0
    %v3081 = vadd.f32 0.0, %v3080
    %3082 = vmatprep.mubr.f32.mxu0 0.0
    %3083 = vmatmul.mubr.f32.gmra.mxu0 %v2977
    %v3084 = vpop.f32.mrf.mxu0
    %v3085 = vadd.f32 0.0, %v3084
    %v3086 = vpop.f32.mrf.mxu0
    %v3087 = vadd.f32 0.0, %v3086
    %3088 = vmatprep.mubr.f32.mxu0 0.0
    %3089 = vmatmul.mubr.f32.gmra.mxu0 %v2980
    %v3090 = vpop.f32.mrf.mxu0
    %v3091 = vadd.f32 0.0, %v3090
    %v3092 = vpop.f32.mrf.mxu0
    %v3093 = vadd.f32 0.0, %v3092
    %3094 = vdwg.mxu0
    %v3096 = vsel %vm590, %v2586, 0
    %v3099 = vsel %vm590, %v2587, 0
    %v3102 = vsel %vm590, %v2588, 0
    %v3105 = vsel %vm590, %v2589, 0
    %v3108 = vsel %vm590, %v2590, 0
    %v3111 = vsel %vm590, %v2591, 0
    %v3114 = vsel %vm590, %v2592, 0
    %v3117 = vsel %vm590, %v2593, 0
    %3119 = vmatprep.subr.mxu0 0.0
    %3120 = vmatpush1.msra.mxu0 0.0
    %3121 = vmatprep.subr.mxu0 0.0
    %3122 = vmatpush1.msra.mxu0 0.0
    %3123 = vmatprep.subr.mxu0 0.0
    %3124 = vmatpush1.msra.mxu0 0.0
    %3125 = vmatprep.subr.mxu0 0.0
    %3126 = vmatpush1.msra.mxu0 0.0
    %3127 = vmatprep.subr.mxu0 0.0
    %3128 = vmatpush1.msra.mxu0 0.0
    %3129 = vmatprep.subr.mxu0 0.0
    %3130 = vmatpush1.msra.mxu0 0.0
    %3131 = vmatprep.subr.mxu0 0.0
    %3132 = vmatpush1.msra.mxu0 0.0
    %3133 = vmatprep.subr.mxu0 0.0
    %3134 = vmatpush1.msra.mxu0 0.0
    %3135 = vmatprep.subr.mxu0 %v2769
    %3136 = vmatpush1.msra.mxu0 %v2767
    %3137 = vmatprep.subr.mxu0 %v2763
    %3138 = vmatpush1.msra.mxu0 %v2761
    %3139 = vmatprep.subr.mxu0 %v2757
    %3140 = vmatpush1.msra.mxu0 %v2755
    %3141 = vmatprep.subr.mxu0 %v2751
    %3142 = vmatpush1.msra.mxu0 %v2749
    %3143 = vmatprep.subr.mxu0 %v2745
    %3144 = vmatpush1.msra.mxu0 %v2743
    %3145 = vmatprep.subr.mxu0 %v2739
    %3146 = vmatpush1.msra.mxu0 %v2737
    %3147 = vmatprep.subr.mxu0 %v2733
    %3148 = vmatpush1.msra.mxu0 %v2731
    %3149 = vmatprep.subr.mxu0 %v2727
    %3150 = vmatpush1.msra.mxu0 %v2725
    %3151 = vmatprep.subr.mxu0 0.0
    %3152 = vmatpush2.msra.mxu0 0.0
    %3153 = vmatprep.subr.mxu0 0.0
    %3154 = vmatpush2.msra.mxu0 0.0
    %3155 = vmatprep.subr.mxu0 0.0
    %3156 = vmatpush2.msra.mxu0 0.0
    %3157 = vmatprep.subr.mxu0 0.0
    %3158 = vmatpush2.msra.mxu0 0.0
    %3159 = vmatprep.subr.mxu0 0.0
    %3160 = vmatpush2.msra.mxu0 0.0
    %3161 = vmatprep.subr.mxu0 0.0
    %3162 = vmatpush2.msra.mxu0 0.0
    %3163 = vmatprep.subr.mxu0 0.0
    %3164 = vmatpush2.msra.mxu0 0.0
    %3165 = vmatprep.subr.mxu0 0.0
    %3166 = vmatpush2.msra.mxu0 0.0
    %3167 = vmatprep.subr.mxu0 0.0
    %3168 = vmatpush2.msra.mxu0 0.0
    %3169 = vmatprep.subr.mxu0 0.0
    %3170 = vmatpush2.msra.mxu0 0.0
    %3171 = vmatprep.subr.mxu0 0.0
    %3172 = vmatpush2.msra.mxu0 0.0
    %3173 = vmatprep.subr.mxu0 0.0
    %3174 = vmatpush2.msra.mxu0 0.0
    %3175 = vmatprep.subr.mxu0 0.0
    %3176 = vmatpush2.msra.mxu0 0.0
    %3177 = vmatprep.subr.mxu0 0.0
    %3178 = vmatpush2.msra.mxu0 0.0
    %3179 = vmatprep.subr.mxu0 0.0
    %3180 = vmatpush2.msra.mxu0 0.0
    %3181 = vmatprep.subr.mxu0 0.0
    %3182 = vmatpush2.msra.mxu0 0.0
    %3183 = vmatprep.mubr.f32.mxu0 0.0
    %3184 = vmatmul.mubr.f32.gmra.mxu0 %v3096
    %v3185 = vpop.f32.mrf.mxu0
    %v3186 = vadd.f32 %v3049, %v3185
    %v3187 = vpop.f32.mrf.mxu0
    %v3188 = vadd.f32 %v3051, %v3187
    %3189 = vmatprep.mubr.f32.mxu0 0.0
    %3190 = vmatmul.mubr.f32.gmra.mxu0 %v3099
    %v3191 = vpop.f32.mrf.mxu0
    %v3192 = vadd.f32 %v3055, %v3191
    %v3193 = vpop.f32.mrf.mxu0
    %v3194 = vadd.f32 %v3057, %v3193
    %3195 = vmatprep.mubr.f32.mxu0 0.0
    %3196 = vmatmul.mubr.f32.gmra.mxu0 %v3102
    %v3197 = vpop.f32.mrf.mxu0
    %v3198 = vadd.f32 %v3061, %v3197
    %v3199 = vpop.f32.mrf.mxu0
    %v3200 = vadd.f32 %v3063, %v3199
    %3201 = vmatprep.mubr.f32.mxu0 0.0
    %3202 = vmatmul.mubr.f32.gmra.mxu0 %v3105
    %v3203 = vpop.f32.mrf.mxu0
    %v3204 = vadd.f32 %v3067, %v3203
    %v3205 = vpop.f32.mrf.mxu0
    %v3206 = vadd.f32 %v3069, %v3205
    %3207 = vmatprep.mubr.f32.mxu0 0.0
    %3208 = vmatmul.mubr.f32.gmra.mxu0 %v3108
    %v3209 = vpop.f32.mrf.mxu0
    %v3210 = vadd.f32 %v3073, %v3209
    %v3211 = vpop.f32.mrf.mxu0
    %v3212 = vadd.f32 %v3075, %v3211
    %3213 = vmatprep.mubr.f32.mxu0 0.0
    %3214 = vmatmul.mubr.f32.gmra.mxu0 %v3111
    %v3215 = vpop.f32.mrf.mxu0
    %v3216 = vadd.f32 %v3079, %v3215
    %v3217 = vpop.f32.mrf.mxu0
    %v3218 = vadd.f32 %v3081, %v3217
    %3219 = vmatprep.mubr.f32.mxu0 0.0
    %3220 = vmatmul.mubr.f32.gmra.mxu0 %v3114
    %v3221 = vpop.f32.mrf.mxu0
    %v3222 = vadd.f32 %v3085, %v3221
    %v3223 = vpop.f32.mrf.mxu0
    %v3224 = vadd.f32 %v3087, %v3223
    %3225 = vmatprep.mubr.f32.mxu0 0.0
    %3226 = vmatmul.mubr.f32.gmra.mxu0 %v3117
    %v3227 = vpop.f32.mrf.mxu0
    %v3228 = vadd.f32 %v3091, %v3227
    %v3229 = vpop.f32.mrf.mxu0
    %v3230 = vadd.f32 %v3093, %v3229
    %3231 = vdwg.mxu0
    %s3232 = scalar_lea.vmem %s18, 128
    %v3233 = vld [vmem:[%s3232] sm:$0xff]
    %v3234 = vld [vmem:[%s3232 + $0x8] sm:$0xff]
    %v3235 = vld [vmem:[%s3232 + $0x10] sm:$0xff]
    %v3236 = vld [vmem:[%s3232 + $0x18] sm:$0xff]
    %v3237 = vld [vmem:[%s3232 + $0x20] sm:$0xff]
    %v3238 = vld [vmem:[%s3232 + $0x28] sm:$0xff]
    %v3239 = vld [vmem:[%s3232 + $0x30] sm:$0xff]
    %v3240 = vld [vmem:[%s3232 + $0x38] sm:$0xff]
    %s3241 = scalar_lea.vmem [#allocation18], 1024
    %v3242 = vld [vmem:[%s3241] sm:$0xff]
    %v3243 = vld [vmem:[%s3241 + $0x8] sm:$0xff]
    %v3244 = vld [vmem:[%s3241 + $0x10] sm:$0xff]
    %v3245 = vld [vmem:[%s3241 + $0x18] sm:$0xff]
    %v3246 = vld [vmem:[%s3241 + $0x20] sm:$0xff]
    %v3247 = vld [vmem:[%s3241 + $0x28] sm:$0xff]
    %v3248 = vld [vmem:[%s3241 + $0x30] sm:$0xff]
    %v3249 = vld [vmem:[%s3241 + $0x38] sm:$0xff]
    %v3250 = vld [vmem:[%s3241 + $0x40] sm:$0xff]
    %v3251 = vld [vmem:[%s3241 + $0x48] sm:$0xff]
    %v3252 = vld [vmem:[%s3241 + $0x50] sm:$0xff]
    %v3253 = vld [vmem:[%s3241 + $0x58] sm:$0xff]
    %v3254 = vld [vmem:[%s3241 + $0x60] sm:$0xff]
    %v3255 = vld [vmem:[%s3241 + $0x68] sm:$0xff]
    %v3256 = vld [vmem:[%s3241 + $0x70] sm:$0xff]
    %v3257 = vld [vmem:[%s3241 + $0x78] sm:$0xff]
    %v3258 = vld [vmem:[%s3241 + $0x80] sm:$0xff]
    %v3259 = vld [vmem:[%s3241 + $0x88] sm:$0xff]
    %v3260 = vld [vmem:[%s3241 + $0x90] sm:$0xff]
    %v3261 = vld [vmem:[%s3241 + $0x98] sm:$0xff]
    %v3262 = vld [vmem:[%s3241 + $0xa0] sm:$0xff]
    %v3263 = vld [vmem:[%s3241 + $0xa8] sm:$0xff]
    %v3264 = vld [vmem:[%s3241 + $0xb0] sm:$0xff]
    %v3265 = vld [vmem:[%s3241 + $0xb8] sm:$0xff]
    %v3266 = vld [vmem:[%s3241 + $0xc0] sm:$0xff]
    %v3267 = vld [vmem:[%s3241 + $0xc8] sm:$0xff]
    %v3268 = vld [vmem:[%s3241 + $0xd0] sm:$0xff]
    %v3269 = vld [vmem:[%s3241 + $0xd8] sm:$0xff]
    %v3270 = vld [vmem:[%s3241 + $0xe0] sm:$0xff]
    %v3271 = vld [vmem:[%s3241 + $0xe8] sm:$0xff]
    %v3272 = vld [vmem:[%s3241 + $0xf0] sm:$0xff]
    %v3273 = vld [vmem:[%s3241 + $0xf8] sm:$0xff]
    %v3274 = vld [vmem:[%s3241 + $0x100] sm:$0xff]
    %v3275 = vld [vmem:[%s3241 + $0x108] sm:$0xff]
    %v3276 = vld [vmem:[%s3241 + $0x110] sm:$0xff]
    %v3277 = vld [vmem:[%s3241 + $0x118] sm:$0xff]
    %v3278 = vld [vmem:[%s3241 + $0x120] sm:$0xff]
    %v3279 = vld [vmem:[%s3241 + $0x128] sm:$0xff]
    %v3280 = vld [vmem:[%s3241 + $0x130] sm:$0xff]
    %v3281 = vld [vmem:[%s3241 + $0x138] sm:$0xff]
    %v3282 = vld [vmem:[%s3241 + $0x140] sm:$0xff]
    %v3283 = vld [vmem:[%s3241 + $0x148] sm:$0xff]
    %v3284 = vld [vmem:[%s3241 + $0x150] sm:$0xff]
    %v3285 = vld [vmem:[%s3241 + $0x158] sm:$0xff]
    %v3286 = vld [vmem:[%s3241 + $0x160] sm:$0xff]
    %v3287 = vld [vmem:[%s3241 + $0x168] sm:$0xff]
    %v3288 = vld [vmem:[%s3241 + $0x170] sm:$0xff]
    %v3289 = vld [vmem:[%s3241 + $0x178] sm:$0xff]
    %v3290 = vld [vmem:[%s3241 + $0x180] sm:$0xff]
    %v3291 = vld [vmem:[%s3241 + $0x188] sm:$0xff]
    %v3292 = vld [vmem:[%s3241 + $0x190] sm:$0xff]
    %v3293 = vld [vmem:[%s3241 + $0x198] sm:$0xff]
    %v3294 = vld [vmem:[%s3241 + $0x1a0] sm:$0xff]
    %v3295 = vld [vmem:[%s3241 + $0x1a8] sm:$0xff]
    %v3296 = vld [vmem:[%s3241 + $0x1b0] sm:$0xff]
    %v3297 = vld [vmem:[%s3241 + $0x1b8] sm:$0xff]
    %v3298 = vld [vmem:[%s3241 + $0x1c0] sm:$0xff]
    %v3299 = vld [vmem:[%s3241 + $0x1c8] sm:$0xff]
    %v3300 = vld [vmem:[%s3241 + $0x1d0] sm:$0xff]
    %v3301 = vld [vmem:[%s3241 + $0x1d8] sm:$0xff]
    %v3302 = vld [vmem:[%s3241 + $0x1e0] sm:$0xff]
    %v3303 = vld [vmem:[%s3241 + $0x1e8] sm:$0xff]
    %v3304 = vld [vmem:[%s3241 + $0x1f0] sm:$0xff]
    %v3305 = vld [vmem:[%s3241 + $0x1f8] sm:$0xff]
    %3306 = vmatprep.subr.mxu0 %v3273
    %3307 = vmatpush1.msra.mxu0 %v3272
    %3308 = vmatprep.subr.mxu0 %v3271
    %3309 = vmatpush1.msra.mxu0 %v3270
    %3310 = vmatprep.subr.mxu0 %v3269
    %3311 = vmatpush1.msra.mxu0 %v3268
    %3312 = vmatprep.subr.mxu0 %v3267
    %3313 = vmatpush1.msra.mxu0 %v3266
    %3314 = vmatprep.subr.mxu0 %v3265
    %3315 = vmatpush1.msra.mxu0 %v3264
    %3316 = vmatprep.subr.mxu0 %v3263
    %3317 = vmatpush1.msra.mxu0 %v3262
    %3318 = vmatprep.subr.mxu0 %v3261
    %3319 = vmatpush1.msra.mxu0 %v3260
    %3320 = vmatprep.subr.mxu0 %v3259
    %3321 = vmatpush1.msra.mxu0 %v3258
    %3322 = vmatprep.subr.mxu0 %v3257
    %3323 = vmatpush1.msra.mxu0 %v3256
    %3324 = vmatprep.subr.mxu0 %v3255
    %3325 = vmatpush1.msra.mxu0 %v3254
    %3326 = vmatprep.subr.mxu0 %v3253
    %3327 = vmatpush1.msra.mxu0 %v3252
    %3328 = vmatprep.subr.mxu0 %v3251
    %3329 = vmatpush1.msra.mxu0 %v3250
    %3330 = vmatprep.subr.mxu0 %v3249
    %3331 = vmatpush1.msra.mxu0 %v3248
    %3332 = vmatprep.subr.mxu0 %v3247
    %3333 = vmatpush1.msra.mxu0 %v3246
    %3334 = vmatprep.subr.mxu0 %v3245
    %3335 = vmatpush1.msra.mxu0 %v3244
    %3336 = vmatprep.subr.mxu0 %v3243
    %3337 = vmatpush1.msra.mxu0 %v3242
    %3338 = vmatprep.subr.mxu0 %v3305
    %3339 = vmatpush2.msra.mxu0 %v3304
    %3340 = vmatprep.subr.mxu0 %v3303
    %3341 = vmatpush2.msra.mxu0 %v3302
    %3342 = vmatprep.subr.mxu0 %v3301
    %3343 = vmatpush2.msra.mxu0 %v3300
    %3344 = vmatprep.subr.mxu0 %v3299
    %3345 = vmatpush2.msra.mxu0 %v3298
    %3346 = vmatprep.subr.mxu0 %v3297
    %3347 = vmatpush2.msra.mxu0 %v3296
    %3348 = vmatprep.subr.mxu0 %v3295
    %3349 = vmatpush2.msra.mxu0 %v3294
    %3350 = vmatprep.subr.mxu0 %v3293
    %3351 = vmatpush2.msra.mxu0 %v3292
    %3352 = vmatprep.subr.mxu0 %v3291
    %3353 = vmatpush2.msra.mxu0 %v3290
    %3354 = vmatprep.subr.mxu0 %v3289
    %3355 = vmatpush2.msra.mxu0 %v3288
    %3356 = vmatprep.subr.mxu0 %v3287
    %3357 = vmatpush2.msra.mxu0 %v3286
    %3358 = vmatprep.subr.mxu0 %v3285
    %3359 = vmatpush2.msra.mxu0 %v3284
    %3360 = vmatprep.subr.mxu0 %v3283
    %3361 = vmatpush2.msra.mxu0 %v3282
    %3362 = vmatprep.subr.mxu0 %v3281
    %3363 = vmatpush2.msra.mxu0 %v3280
    %3364 = vmatprep.subr.mxu0 %v3279
    %3365 = vmatpush2.msra.mxu0 %v3278
    %3366 = vmatprep.subr.mxu0 %v3277
    %3367 = vmatpush2.msra.mxu0 %v3276
    %3368 = vmatprep.subr.mxu0 %v3275
    %3369 = vmatpush2.msra.mxu0 %v3274
    %3370 = vmatprep.mubr.f32.mxu0 %v2571
    %3371 = vmatmul.mubr.f32.gmra.mxu0 %v2570
    %v3372 = vpop.f32.mrf.mxu0
    %v3373 = vadd.f32 0.0, %v3372
    %v3374 = vpop.f32.mrf.mxu0
    %v3375 = vadd.f32 0.0, %v3374
    %3376 = vmatprep.mubr.f32.mxu0 %v2573
    %3377 = vmatmul.mubr.f32.gmra.mxu0 %v2572
    %v3378 = vpop.f32.mrf.mxu0
    %v3379 = vadd.f32 0.0, %v3378
    %v3380 = vpop.f32.mrf.mxu0
    %v3381 = vadd.f32 0.0, %v3380
    %3382 = vmatprep.mubr.f32.mxu0 %v2575
    %3383 = vmatmul.mubr.f32.gmra.mxu0 %v2574
    %v3384 = vpop.f32.mrf.mxu0
    %v3385 = vadd.f32 0.0, %v3384
    %v3386 = vpop.f32.mrf.mxu0
    %v3387 = vadd.f32 0.0, %v3386
    %3388 = vmatprep.mubr.f32.mxu0 %v2577
    %3389 = vmatmul.mubr.f32.gmra.mxu0 %v2576
    %v3390 = vpop.f32.mrf.mxu0
    %v3391 = vadd.f32 0.0, %v3390
    %v3392 = vpop.f32.mrf.mxu0
    %v3393 = vadd.f32 0.0, %v3392
    %3394 = vmatprep.mubr.f32.mxu0 %v2579
    %3395 = vmatmul.mubr.f32.gmra.mxu0 %v2578
    %v3396 = vpop.f32.mrf.mxu0
    %v3397 = vadd.f32 0.0, %v3396
    %v3398 = vpop.f32.mrf.mxu0
    %v3399 = vadd.f32 0.0, %v3398
    %3400 = vmatprep.mubr.f32.mxu0 %v2581
    %3401 = vmatmul.mubr.f32.gmra.mxu0 %v2580
    %v3402 = vpop.f32.mrf.mxu0
    %v3403 = vadd.f32 0.0, %v3402
    %v3404 = vpop.f32.mrf.mxu0
    %v3405 = vadd.f32 0.0, %v3404
    %3406 = vmatprep.mubr.f32.mxu0 %v2583
    %3407 = vmatmul.mubr.f32.gmra.mxu0 %v2582
    %v3408 = vpop.f32.mrf.mxu0
    %v3409 = vadd.f32 0.0, %v3408
    %v3410 = vpop.f32.mrf.mxu0
    %v3411 = vadd.f32 0.0, %v3410
    %3412 = vmatprep.mubr.f32.mxu0 %v2585
    %3413 = vmatmul.mubr.f32.gmra.mxu0 %v2584
    %v3414 = vpop.f32.mrf.mxu0
    %v3415 = vadd.f32 0.0, %v3414
    %v3416 = vpop.f32.mrf.mxu0
    %v3417 = vadd.f32 0.0, %v3416
    %3418 = vdwg.mxu0
    %v3420 = vsel %vm590, %v3233, 0
    %v3423 = vsel %vm590, %v3234, 0
    %v3426 = vsel %vm590, %v3235, 0
    %v3429 = vsel %vm590, %v3236, 0
    %v3432 = vsel %vm590, %v3237, 0
    %v3435 = vsel %vm590, %v3238, 0
    %v3438 = vsel %vm590, %v3239, 0
    %v3441 = vsel %vm590, %v3240, 0
    %3443 = vmatprep.subr.mxu0 0.0
    %3444 = vmatpush1.msra.mxu0 0.0
    %3445 = vmatprep.subr.mxu0 0.0
    %3446 = vmatpush1.msra.mxu0 0.0
    %3447 = vmatprep.subr.mxu0 0.0
    %3448 = vmatpush1.msra.mxu0 0.0
    %3449 = vmatprep.subr.mxu0 0.0
    %3450 = vmatpush1.msra.mxu0 0.0
    %3451 = vmatprep.subr.mxu0 0.0
    %3452 = vmatpush1.msra.mxu0 0.0
    %3453 = vmatprep.subr.mxu0 0.0
    %3454 = vmatpush1.msra.mxu0 0.0
    %3455 = vmatprep.subr.mxu0 0.0
    %3456 = vmatpush1.msra.mxu0 0.0
    %3457 = vmatprep.subr.mxu0 0.0
    %3458 = vmatpush1.msra.mxu0 0.0
    %3459 = vmatprep.subr.mxu0 %v3417
    %3460 = vmatpush1.msra.mxu0 %v3415
    %3461 = vmatprep.subr.mxu0 %v3411
    %3462 = vmatpush1.msra.mxu0 %v3409
    %3463 = vmatprep.subr.mxu0 %v3405
    %3464 = vmatpush1.msra.mxu0 %v3403
    %3465 = vmatprep.subr.mxu0 %v3399
    %3466 = vmatpush1.msra.mxu0 %v3397
    %3467 = vmatprep.subr.mxu0 %v3393
    %3468 = vmatpush1.msra.mxu0 %v3391
    %3469 = vmatprep.subr.mxu0 %v3387
    %3470 = vmatpush1.msra.mxu0 %v3385
    %3471 = vmatprep.subr.mxu0 %v3381
    %3472 = vmatpush1.msra.mxu0 %v3379
    %3473 = vmatprep.subr.mxu0 %v3375
    %3474 = vmatpush1.msra.mxu0 %v3373
    %3475 = vmatprep.subr.mxu0 0.0
    %3476 = vmatpush2.msra.mxu0 0.0
    %3477 = vmatprep.subr.mxu0 0.0
    %3478 = vmatpush2.msra.mxu0 0.0
    %3479 = vmatprep.subr.mxu0 0.0
    %3480 = vmatpush2.msra.mxu0 0.0
    %3481 = vmatprep.subr.mxu0 0.0
    %3482 = vmatpush2.msra.mxu0 0.0
    %3483 = vmatprep.subr.mxu0 0.0
    %3484 = vmatpush2.msra.mxu0 0.0
    %3485 = vmatprep.subr.mxu0 0.0
    %3486 = vmatpush2.msra.mxu0 0.0
    %3487 = vmatprep.subr.mxu0 0.0
    %3488 = vmatpush2.msra.mxu0 0.0
    %3489 = vmatprep.subr.mxu0 0.0
    %3490 = vmatpush2.msra.mxu0 0.0
    %3491 = vmatprep.subr.mxu0 0.0
    %3492 = vmatpush2.msra.mxu0 0.0
    %3493 = vmatprep.subr.mxu0 0.0
    %3494 = vmatpush2.msra.mxu0 0.0
    %3495 = vmatprep.subr.mxu0 0.0
    %3496 = vmatpush2.msra.mxu0 0.0
    %3497 = vmatprep.subr.mxu0 0.0
    %3498 = vmatpush2.msra.mxu0 0.0
    %3499 = vmatprep.subr.mxu0 0.0
    %3500 = vmatpush2.msra.mxu0 0.0
    %3501 = vmatprep.subr.mxu0 0.0
    %3502 = vmatpush2.msra.mxu0 0.0
    %3503 = vmatprep.subr.mxu0 0.0
    %3504 = vmatpush2.msra.mxu0 0.0
    %3505 = vmatprep.subr.mxu0 0.0
    %3506 = vmatpush2.msra.mxu0 0.0
    %3507 = vmatprep.mubr.f32.mxu0 0.0
    %3508 = vmatmul.mubr.f32.gmra.mxu0 %v3420
    %v3509 = vpop.f32.mrf.mxu0
    %v3510 = vadd.f32 0.0, %v3509
    %v3511 = vpop.f32.mrf.mxu0
    %v3512 = vadd.f32 0.0, %v3511
    %3513 = vmatprep.mubr.f32.mxu0 0.0
    %3514 = vmatmul.mubr.f32.gmra.mxu0 %v3423
    %v3515 = vpop.f32.mrf.mxu0
    %v3516 = vadd.f32 0.0, %v3515
    %v3517 = vpop.f32.mrf.mxu0
    %v3518 = vadd.f32 0.0, %v3517
    %3519 = vmatprep.mubr.f32.mxu0 0.0
    %3520 = vmatmul.mubr.f32.gmra.mxu0 %v3426
    %v3521 = vpop.f32.mrf.mxu0
    %v3522 = vadd.f32 0.0, %v3521
    %v3523 = vpop.f32.mrf.mxu0
    %v3524 = vadd.f32 0.0, %v3523
    %3525 = vmatprep.mubr.f32.mxu0 0.0
    %3526 = vmatmul.mubr.f32.gmra.mxu0 %v3429
    %v3527 = vpop.f32.mrf.mxu0
    %v3528 = vadd.f32 0.0, %v3527
    %v3529 = vpop.f32.mrf.mxu0
    %v3530 = vadd.f32 0.0, %v3529
    %3531 = vmatprep.mubr.f32.mxu0 0.0
    %3532 = vmatmul.mubr.f32.gmra.mxu0 %v3432
    %v3533 = vpop.f32.mrf.mxu0
    %v3534 = vadd.f32 0.0, %v3533
    %v3535 = vpop.f32.mrf.mxu0
    %v3536 = vadd.f32 0.0, %v3535
    %3537 = vmatprep.mubr.f32.mxu0 0.0
    %3538 = vmatmul.mubr.f32.gmra.mxu0 %v3435
    %v3539 = vpop.f32.mrf.mxu0
    %v3540 = vadd.f32 0.0, %v3539
    %v3541 = vpop.f32.mrf.mxu0
    %v3542 = vadd.f32 0.0, %v3541
    %3543 = vmatprep.mubr.f32.mxu0 0.0
    %3544 = vmatmul.mubr.f32.gmra.mxu0 %v3438
    %v3545 = vpop.f32.mrf.mxu0
    %v3546 = vadd.f32 0.0, %v3545
    %v3547 = vpop.f32.mrf.mxu0
    %v3548 = vadd.f32 0.0, %v3547
    %3549 = vmatprep.mubr.f32.mxu0 0.0
    %3550 = vmatmul.mubr.f32.gmra.mxu0 %v3441
    %v3551 = vpop.f32.mrf.mxu0
    %v3552 = vadd.f32 0.0, %v3551
    %v3553 = vpop.f32.mrf.mxu0
    %v3554 = vadd.f32 0.0, %v3553
    %3555 = vdwg.mxu0
    %v3556 = vadd.f32 %v3186, %v3510
    %v3557 = vadd.f32 %v3188, %v3512
    %v3558 = vadd.f32 %v3192, %v3516
    %v3559 = vadd.f32 %v3194, %v3518
    %v3560 = vadd.f32 %v3198, %v3522
    %v3561 = vadd.f32 %v3200, %v3524
    %v3562 = vadd.f32 %v3204, %v3528
    %v3563 = vadd.f32 %v3206, %v3530
    %v3564 = vadd.f32 %v3210, %v3534
    %v3565 = vadd.f32 %v3212, %v3536
    %v3566 = vadd.f32 %v3216, %v3540
    %v3567 = vadd.f32 %v3218, %v3542
    %v3568 = vadd.f32 %v3222, %v3546
    %v3569 = vadd.f32 %v3224, %v3548
    %v3570 = vadd.f32 %v3228, %v3552
    %v3571 = vadd.f32 %v3230, %v3554
    %v3572 = vld [vmem:[%s20] sm:$0x3]
    %v3574 = vlaneseq
    %v3575 = vshrl.u32 %v3574, 7
    %v3576 = vsub.s32 0, %v3575
    %v3577 = vrot.slane %v3572, %v3576
    %v3578 = vlaneseq
    %v3579 = vshrl.u32 %v3578, 7
    %v3580 = vsub.s32 1, %v3579
    %v3581 = vrot.slane %v3572, %v3580
    %v3584 = vadd.f32 %v3556, %v3577
    %v3585 = vadd.f32 %v3557, %v3581
    %v3586 = vadd.f32 %v3558, %v3577
    %v3587 = vadd.f32 %v3559, %v3581
    %v3588 = vadd.f32 %v3560, %v3577
    %v3589 = vadd.f32 %v3561, %v3581
    %v3590 = vadd.f32 %v3562, %v3577
    %v3591 = vadd.f32 %v3563, %v3581
    %v3592 = vadd.f32 %v3564, %v3577
    %v3593 = vadd.f32 %v3565, %v3581
    %v3594 = vadd.f32 %v3566, %v3577
    %v3595 = vadd.f32 %v3567, %v3581
    %v3596 = vadd.f32 %v3568, %v3577
    %v3597 = vadd.f32 %v3569, %v3581
    %v3598 = vadd.f32 %v3570, %v3577
    %v3599 = vadd.f32 %v3571, %v3581
    %3600 = vst [vmem:[%s21] sm:$0xff] %v3584
    %3601 = vst [vmem:[%s21 + $0x8] sm:$0xff] %v3585
    %3602 = vst [vmem:[%s21 + $0x10] sm:$0xff] %v3586
    %3603 = vst [vmem:[%s21 + $0x18] sm:$0xff] %v3587
    %3604 = vst [vmem:[%s21 + $0x20] sm:$0xff] %v3588
    %3605 = vst [vmem:[%s21 + $0x28] sm:$0xff] %v3589
    %3606 = vst [vmem:[%s21 + $0x30] sm:$0xff] %v3590
    %3607 = vst [vmem:[%s21 + $0x38] sm:$0xff] %v3591
    %3608 = vst [vmem:[%s21 + $0x40] sm:$0xff] %v3592
    %3609 = vst [vmem:[%s21 + $0x48] sm:$0xff] %v3593
    %3610 = vst [vmem:[%s21 + $0x50] sm:$0xff] %v3594
    %3611 = vst [vmem:[%s21 + $0x58] sm:$0xff] %v3595
    %3612 = vst [vmem:[%s21 + $0x60] sm:$0xff] %v3596
    %3613 = vst [vmem:[%s21 + $0x68] sm:$0xff] %v3597
    %3614 = vst [vmem:[%s21 + $0x70] sm:$0xff] %v3598
    %3615 = vst [vmem:[%s21 + $0x78] sm:$0xff] %v3599
    // Predicated region
    $region122: #{eigen_block_forward.1} parent=1 // pred_check
      _
    $region123: #{eigen_block_forward.1} parent=1 // pred_check_branch
      %3617 = sbr.rel (0) target = $region125
    $region124: #{eigen_block_forward.1} parent=1 // pred_region
      _
    $region125: #{eigen_block_forward.1} parent=1 // pred_fallthru
      _
    // Predicated region
    $region126: #{eigen_block_forward.1} parent=1 // pred_check
      _
    $region127: #{eigen_block_forward.1} parent=1 // pred_check_branch
      %3619 = sbr.rel (0) target = $region129
    $region128: #{eigen_block_forward.1} parent=1 // pred_region
      %s3621 = ssub.s32 16, 16
      %3622 = vsyncadd [#allocation5], %s3621
      %s3624 = sshll.u32 [#allocation19], 4
      %s3625 = int_to_ptr.vmem [resolvable:$true] %s3624
      %3627 = dma.vmem_to_hbm [thread:$0]  %s3625, 16, %s22, [#allocation5]
    $region129: #{eigen_block_forward.1} parent=1 // pred_fallthru
      _
    // Predicated region
    $region130: #{eigen_block_forward.1} parent=1 // pred_check
      _
    $region131: #{eigen_block_forward.1} parent=1 // pred_check_branch
      %3629 = sbr.rel (0) target = $region133
    $region132: #{eigen_block_forward.1} parent=1 // pred_region
      _
    $region133: #{eigen_block_forward.1} parent=1 // pred_fallthru
      _
    // Predicated region
    $region134: #{eigen_block_forward.1} parent=1 // pred_check
      _
    $region135: #{eigen_block_forward.1} parent=1 // pred_check_branch
      %3631 = sbr.rel (0) target = $region137
    $region136: #{eigen_block_forward.1} parent=1 // pred_region
      %3632 = dma.done [#allocation5], 16
    $region137: #{eigen_block_forward.1} parent=1 // pred_fallthru
      _
    %3633 = vsyncpa [#allocation4], 1
    %3634 = vsyncpa [#allocation11], 1
    %3635 = vsyncpa [#allocation14], 1
    %3636 = vsyncpa [#allocation17], 1
    %3637 = vsyncpa [#allocation5], 1
    %3638 = vsyncpa [#allocation6], 1
    %3639 = vsyncpa [#allocation8], 1

</llo_original>
